<compile_context>
chip_gen: v7x
topology: tpu7x:2x2x1
jax: 0.10.0
libtpu: 0.0.40
codegen_flags: <defaults>
</compile_context>

<pallas_src>
import jax
import jax.numpy as jnp
from jax import lax
from jax.experimental import pallas as pl
from jax.experimental.pallas import tpu as pltpu


def _round_up(x, m):
    return (x + m - 1) // m * m


def _sigmoid(z):
    # explicit form (exp on EUP); identical expression used in the reference
    return 1.0 / (1.0 + jnp.exp(-z))


def lstm_kernel(x_ref, wih_ref, whh_ref, b_ref, wfc_ref, bfc_ref, h0_ref, c0_ref,
                out_ref, pre_ref):
    T, Bp, Dp = x_ref.shape
    H4 = wih_ref.shape[1]
    Hp = H4 // 4

    # ---- Phase 1: hoisted input projection for ALL timesteps (one big MXU matmul),
    #      bias added once, not inside the recurrence.
    x2d = x_ref[...].reshape(T * Bp, Dp)
    pre = jnp.dot(x2d, wih_ref[...], preferred_element_type=jnp.float32) + b_ref[...]
    pre_ref[...] = pre.reshape(T, Bp, H4)

    whh = whh_ref[...]          # (Hp, 4Hp), resident in vregs/VMEM across the loop

    # ---- Phase 2: serial LSTM recurrence, fully unrolled (T is small & static).
    def step(t, carry):
        h, c, acc = carry
        gates = pre_ref[t] + jnp.dot(h, whh, preferred_element_type=jnp.float32)
        i = _sigmoid(gates[:, 0 * Hp:1 * Hp])
        f = _sigmoid(gates[:, 1 * Hp:2 * Hp])
        g = jnp.tanh(gates[:, 2 * Hp:3 * Hp])
        o = _sigmoid(gates[:, 3 * Hp:4 * Hp])
        c = f * c + i * g
        h = o * jnp.tanh(c)
        # Final Linear over the flattened (B, T*H) folded into a per-step accumulate:
        #   out = sum_t h_t @ W_fc[:, t*H:(t+1)*H]^T + b_fc
        acc = acc + jnp.dot(h, wfc_ref[t], preferred_element_type=jnp.float32)
        return h, c, acc

    acc0 = jnp.zeros(out_ref.shape, jnp.float32)
    _, _, acc = lax.fori_loop(0, T, step, (h0_ref[...], c0_ref[...], acc0),
                              unroll=True)
    out_ref[...] = (acc + bfc_ref[...]).astype(out_ref.dtype)


@jax.jit
def lstm_forward(x_btd, w_ih, w_hh, b_ih, b_hh, w_fc, b_fc, h0, c0):
    """x_btd: (B, T, D_in) batch_first; weights in PyTorch nn.LSTM / nn.Linear layout.

    w_ih: (4H, D_in)  w_hh: (4H, H)  b_ih, b_hh: (4H,)
    w_fc: (D_out, T*H)  b_fc: (D_out,)  h0, c0: (B, H)
    """
    B, T, D_in = x_btd.shape
    H = w_hh.shape[1]
    D_out = w_fc.shape[0]
    f32 = jnp.float32

    Bp = _round_up(B, 8)       # sublane-aligned batch
    Hp = _round_up(H, 128)     # lane-aligned hidden (per gate)
    Dp = _round_up(D_in, 128)  # lane-aligned input features

    # time-major, zero-padded x: (T, Bp, Dp)
    x_p = jnp.zeros((T, Bp, Dp), f32).at[:, :B, :D_in].set(
        jnp.transpose(x_btd, (1, 0, 2)).astype(f32))

    # Pad each of the 4 gate blocks (i, f, g, o) independently to Hp rows so the
    # kernel can slice gates at 128-aligned lane offsets.
    def pad_gates(w, cols_pad):
        w4 = w.reshape(4, H, w.shape[1]).astype(f32)
        out = jnp.zeros((4, Hp, cols_pad), f32).at[:, :H, :w.shape[1]].set(w4)
        return out.reshape(4 * Hp, cols_pad)

    wih_t = pad_gates(w_ih, Dp).T                                   # (Dp, 4Hp)
    whh_t = pad_gates(w_hh, Hp).T                                   # (Hp, 4Hp)
    b = jnp.zeros((4, Hp), f32).at[:, :H].set(
        (b_ih + b_hh).astype(f32).reshape(4, H)).reshape(1, 4 * Hp)  # fused bias

    # Final Linear: (D_out, T*H) -> per-timestep slabs (T, Hp, D_out).
    wfc = jnp.transpose(w_fc.astype(f32).reshape(D_out, T, H), (1, 2, 0))
    wfc_p = jnp.zeros((T, Hp, D_out), f32).at[:, :H, :].set(wfc)
    bfc = b_fc.astype(f32).reshape(1, D_out)

    h0_p = jnp.zeros((Bp, Hp), f32).at[:B, :H].set(h0.astype(f32))
    c0_p = jnp.zeros((Bp, Hp), f32).at[:B, :H].set(c0.astype(f32))

    out_p = pl.pallas_call(
        lstm_kernel,
        out_shape=jax.ShapeDtypeStruct((Bp, D_out), f32),
        scratch_shapes=[pltpu.VMEM((T, Bp, 4 * Hp), f32)],   # hoisted pre-activations
    )(x_p, wih_t, whh_t, b, wfc_p, bfc, h0_p, c0_p)

    return out_p[:B, :]


def lstm_reference(x, w_ih, w_hh, b_ih, b_hh, w_fc, b_fc, h0, c0):
    B, T, _ = x.shape
    H = w_hh.shape[1]
    h, c = h0, c0
    hs = []
    for t in range(T):
        gates = x[:, t, :] @ w_ih.T + b_ih + h @ w_hh.T + b_hh
        i = _sigmoid(gates[:, 0:H])
        f = _sigmoid(gates[:, H:2 * H])
        g = jnp.tanh(gates[:, 2 * H:3 * H])
        o = _sigmoid(gates[:, 3 * H:4 * H])
        c = f * c + i * g
        h = o * jnp.tanh(c)
        hs.append(h)
    flat = jnp.stack(hs, axis=1).reshape(B, T * H)   # batch_first flatten (t*H + j)
    return flat @ w_fc.T + b_fc


if __name__ == "__main__":
    # Small stand-ins for the module: batch=2, seq_length=8, n_features=16,
    # n_hidden=32 (instead of 1000), output dim 1.
    B, T, D_in, H, D_out = 2, 8, 16, 32, 1

    key = jax.random.PRNGKey(0)
    ks = jax.random.split(key, 9)
    s = 1.0 / jnp.sqrt(jnp.float32(H))
    sf = 1.0 / jnp.sqrt(jnp.float32(T * H))

    x = jax.random.normal(ks[0], (B, T, D_in), jnp.float32)
    w_ih = jax.random.uniform(ks[1], (4 * H, D_in), jnp.float32, -s, s)
    w_hh = jax.random.uniform(ks[2], (4 * H, H), jnp.float32, -s, s)
    b_ih = jax.random.uniform(ks[3], (4 * H,), jnp.float32, -s, s)
    b_hh = jax.random.uniform(ks[4], (4 * H,), jnp.float32, -s, s)
    w_fc = jax.random.uniform(ks[5], (D_out, T * H), jnp.float32, -sf, sf)
    b_fc = jax.random.uniform(ks[6], (D_out,), jnp.float32, -sf, sf)
    # init_hidden in the PyTorch module uses torch.rand -> U[0, 1)
    h0 = jax.random.uniform(ks[7], (B, H), jnp.float32)
    c0 = jax.random.uniform(ks[8], (B, H), jnp.float32)

    out = lstm_forward(x, w_ih, w_hh, b_ih, b_hh, w_fc, b_fc, h0, c0)
    out = jax.block_until_ready(out)

    ref = lstm_reference(x, w_ih, w_hh, b_ih, b_hh, w_fc, b_fc, h0, c0)
    assert out.shape == (B, D_out)
    err = jnp.max(jnp.abs(out - ref))
    assert jnp.allclose(out, ref, atol=2e-5, rtol=2e-5), f"mismatch vs reference: {err}"

    print("KERNEL_OK")
</pallas_src>

<mosaic_0001>
module attributes {stable_mosaic.version = 11 : i64} {
  func.func @lstm_kernel(%arg0: memref<8x8x128xf32, #tpu.memory_space<vmem>>, %arg1: memref<128x512xf32, #tpu.memory_space<vmem>>, %arg2: memref<128x512xf32, #tpu.memory_space<vmem>>, %arg3: memref<1x512xf32, #tpu.memory_space<vmem>>, %arg4: memref<8x128x1xf32, #tpu.memory_space<vmem>>, %arg5: memref<1x1xf32, #tpu.memory_space<vmem>>, %arg6: memref<8x128xf32, #tpu.memory_space<vmem>>, %arg7: memref<8x128xf32, #tpu.memory_space<vmem>>, %arg8: memref<8x1xf32, #tpu.memory_space<vmem>>, %arg9: memref<8x8x512xf32, #tpu.memory_space<vmem>>) attributes {dimension_semantics = [], scalar_prefetch = 0 : i64, scratch_operands = 1 : i64, tpu.core_type = #tpu.core_type<tc>} {
    %c0 = arith.constant 0 : index
    %c0_0 = arith.constant 0 : index
    %c0_1 = arith.constant 0 : index
    %0 = vector.load %arg0[%c0, %c0_0, %c0_1] : memref<8x8x128xf32, #tpu.memory_space<vmem>>, vector<8x8x128xf32>
    %1 = vector.shape_cast %0 : vector<8x8x128xf32> to vector<64x128xf32>
    %c0_2 = arith.constant 0 : index
    %c0_3 = arith.constant 0 : index
    %2 = vector.load %arg1[%c0_2, %c0_3] : memref<128x512xf32, #tpu.memory_space<vmem>>, vector<128x512xf32>
    %cst = arith.constant dense<0.000000e+00> : vector<64x512xf32>
    %3 = tpu.matmul %1, %2, %cst {dimension_numbers = #tpu.dot_dimension_numbers<[1], [0], [0], [1], [0, 0, 1, 1], [], []>} : vector<64x128xf32>, vector<128x512xf32>, vector<64x512xf32> -> vector<64x512xf32>
    %c0_4 = arith.constant 0 : index
    %c0_5 = arith.constant 0 : index
    %4 = vector.load %arg3[%c0_4, %c0_5] : memref<1x512xf32, #tpu.memory_space<vmem>>, vector<1x512xf32>
    %5 = vector.broadcast %4 : vector<1x512xf32> to vector<64x512xf32>
    %6 = arith.addf %3, %5 : vector<64x512xf32>
    %7 = vector.shape_cast %6 : vector<64x512xf32> to vector<8x8x512xf32>
    %c0_6 = arith.constant 0 : index
    %c0_7 = arith.constant 0 : index
    %c0_8 = arith.constant 0 : index
    %8 = vector.load %arg9[%c0_6, %c0_7, %c0_8] : memref<8x8x512xf32, #tpu.memory_space<vmem>>, vector<8x8x512xf32>
    tpu.vector_store %arg9[%c0_6, %c0_7, %c0_8], %7 {strides = array<i32>} : memref<8x8x512xf32, #tpu.memory_space<vmem>>, vector<8x8x512xf32>,
    %c0_9 = arith.constant 0 : index
    %c0_10 = arith.constant 0 : index
    %9 = vector.load %arg2[%c0_9, %c0_10] : memref<128x512xf32, #tpu.memory_space<vmem>>, vector<128x512xf32>
    %cst_11 = arith.constant 0.000000e+00 : f32
    %10 = vector.broadcast %cst_11 : f32 to vector<8x1xf32>
    %c0_12 = arith.constant 0 : index
    %c0_13 = arith.constant 0 : index
    %11 = vector.load %arg6[%c0_12, %c0_13] : memref<8x128xf32, #tpu.memory_space<vmem>>, vector<8x128xf32>
    %c0_14 = arith.constant 0 : index
    %c0_15 = arith.constant 0 : index
    %12 = vector.load %arg7[%c0_14, %c0_15] : memref<8x128xf32, #tpu.memory_space<vmem>>, vector<8x128xf32>
    %c0_i32 = arith.constant 0 : i32
    %13 = arith.index_cast %c0_i32 : i32 to index
    %c0_16 = arith.constant 0 : index
    %c0_17 = arith.constant 0 : index
    %14 = vector.load %arg9[%13, %c0_16, %c0_17] : memref<8x8x512xf32, #tpu.memory_space<vmem>>, vector<1x8x512xf32>
    %15 = vector.shape_cast %14 : vector<1x8x512xf32> to vector<8x512xf32>
    %cst_18 = arith.constant dense<0.000000e+00> : vector<8x512xf32>
    %16 = tpu.matmul %11, %9, %cst_18 {dimension_numbers = #tpu.dot_dimension_numbers<[1], [0], [0], [1], [0, 0, 1, 1], [], []>} : vector<8x128xf32>, vector<128x512xf32>, vector<8x512xf32> -> vector<8x512xf32>
    %17 = arith.addf %15, %16 : vector<8x512xf32>
    %18 = vector.extract_strided_slice %17 {offsets = [0, 0], sizes = [8, 128], strides = [1, 1]} : vector<8x512xf32> to vector<8x128xf32>
    %cst_19 = arith.constant 0.000000e+00 : f32
    %19 = vector.broadcast %cst_19 : f32 to vector<8x128xf32>
    %20 = arith.subf %19, %18 : vector<8x128xf32>
    %21 = math.exp %20 : vector<8x128xf32>
    %cst_20 = arith.constant 1.000000e+00 : f32
    %22 = vector.broadcast %cst_20 : f32 to vector<8x128xf32>
    %23 = arith.addf %22, %21 : vector<8x128xf32>
    %cst_21 = arith.constant 1.000000e+00 : f32
    %24 = vector.broadcast %cst_21 : f32 to vector<8x128xf32>
    %25 = arith.divf %24, %23 : vector<8x128xf32>
    %26 = vector.extract_strided_slice %17 {offsets = [0, 128], sizes = [8, 128], strides = [1, 1]} : vector<8x512xf32> to vector<8x128xf32>
    %cst_22 = arith.constant 0.000000e+00 : f32
    %27 = vector.broadcast %cst_22 : f32 to vector<8x128xf32>
    %28 = arith.subf %27, %26 : vector<8x128xf32>
    %29 = math.exp %28 : vector<8x128xf32>
    %cst_23 = arith.constant 1.000000e+00 : f32
    %30 = vector.broadcast %cst_23 : f32 to vector<8x128xf32>
    %31 = arith.addf %30, %29 : vector<8x128xf32>
    %cst_24 = arith.constant 1.000000e+00 : f32
    %32 = vector.broadcast %cst_24 : f32 to vector<8x128xf32>
    %33 = arith.divf %32, %31 : vector<8x128xf32>
    %34 = vector.extract_strided_slice %17 {offsets = [0, 256], sizes = [8, 128], strides = [1, 1]} : vector<8x512xf32> to vector<8x128xf32>
    %35 = math.tanh %34 : vector<8x128xf32>
    %36 = vector.extract_strided_slice %17 {offsets = [0, 384], sizes = [8, 128], strides = [1, 1]} : vector<8x512xf32> to vector<8x128xf32>
    %cst_25 = arith.constant 0.000000e+00 : f32
    %37 = vector.broadcast %cst_25 : f32 to vector<8x128xf32>
    %38 = arith.subf %37, %36 : vector<8x128xf32>
    %39 = math.exp %38 : vector<8x128xf32>
    %cst_26 = arith.constant 1.000000e+00 : f32
    %40 = vector.broadcast %cst_26 : f32 to vector<8x128xf32>
    %41 = arith.addf %40, %39 : vector<8x128xf32>
    %cst_27 = arith.constant 1.000000e+00 : f32
    %42 = vector.broadcast %cst_27 : f32 to vector<8x128xf32>
    %43 = arith.divf %42, %41 : vector<8x128xf32>
    %44 = arith.mulf %33, %12 : vector<8x128xf32>
    %45 = arith.mulf %25, %35 : vector<8x128xf32>
    %46 = arith.addf %44, %45 : vector<8x128xf32>
    %47 = math.tanh %46 : vector<8x128xf32>
    %48 = arith.mulf %43, %47 : vector<8x128xf32>
    %49 = arith.index_cast %c0_i32 : i32 to index
    %c0_28 = arith.constant 0 : index
    %c0_29 = arith.constant 0 : index
    %50 = vector.load %arg4[%49, %c0_28, %c0_29] : memref<8x128x1xf32, #tpu.memory_space<vmem>>, vector<1x128x1xf32>
    %51 = vector.shape_cast %50 : vector<1x128x1xf32> to vector<128x1xf32>
    %cst_30 = arith.constant dense<0.000000e+00> : vector<8x1xf32>
    %52 = tpu.matmul %48, %51, %cst_30 {dimension_numbers = #tpu.dot_dimension_numbers<[1], [0], [0], [1], [0, 0, 1, 1], [], []>} : vector<8x128xf32>, vector<128x1xf32>, vector<8x1xf32> -> vector<8x1xf32>
    %53 = arith.addf %10, %52 : vector<8x1xf32>
    %c1_i32 = arith.constant 1 : i32
    %54 = arith.index_cast %c1_i32 : i32 to index
    %c0_31 = arith.constant 0 : index
    %c0_32 = arith.constant 0 : index
    %55 = vector.load %arg9[%54, %c0_31, %c0_32] : memref<8x8x512xf32, #tpu.memory_space<vmem>>, vector<1x8x512xf32>
    %56 = vector.shape_cast %55 : vector<1x8x512xf32> to vector<8x512xf32>
    %cst_33 = arith.constant dense<0.000000e+00> : vector<8x512xf32>
    %57 = tpu.matmul %48, %9, %cst_33 {dimension_numbers = #tpu.dot_dimension_numbers<[1], [0], [0], [1], [0, 0, 1, 1], [], []>} : vector<8x128xf32>, vector<128x512xf32>, vector<8x512xf32> -> vector<8x512xf32>
    %58 = arith.addf %56, %57 : vector<8x512xf32>
    %59 = vector.extract_strided_slice %58 {offsets = [0, 0], sizes = [8, 128], strides = [1, 1]} : vector<8x512xf32> to vector<8x128xf32>
    %cst_34 = arith.constant 0.000000e+00 : f32
    %60 = vector.broadcast %cst_34 : f32 to vector<8x128xf32>
    %61 = arith.subf %60, %59 : vector<8x128xf32>
    %62 = math.exp %61 : vector<8x128xf32>
    %cst_35 = arith.constant 1.000000e+00 : f32
    %63 = vector.broadcast %cst_35 : f32 to vector<8x128xf32>
    %64 = arith.addf %63, %62 : vector<8x128xf32>
    %cst_36 = arith.constant 1.000000e+00 : f32
    %65 = vector.broadcast %cst_36 : f32 to vector<8x128xf32>
    %66 = arith.divf %65, %64 : vector<8x128xf32>
    %67 = vector.extract_strided_slice %58 {offsets = [0, 128], sizes = [8, 128], strides = [1, 1]} : vector<8x512xf32> to vector<8x128xf32>
    %cst_37 = arith.constant 0.000000e+00 : f32
    %68 = vector.broadcast %cst_37 : f32 to vector<8x128xf32>
    %69 = arith.subf %68, %67 : vector<8x128xf32>
    %70 = math.exp %69 : vector<8x128xf32>
    %cst_38 = arith.constant 1.000000e+00 : f32
    %71 = vector.broadcast %cst_38 : f32 to vector<8x128xf32>
    %72 = arith.addf %71, %70 : vector<8x128xf32>
    %cst_39 = arith.constant 1.000000e+00 : f32
    %73 = vector.broadcast %cst_39 : f32 to vector<8x128xf32>
    %74 = arith.divf %73, %72 : vector<8x128xf32>
    %75 = vector.extract_strided_slice %58 {offsets = [0, 256], sizes = [8, 128], strides = [1, 1]} : vector<8x512xf32> to vector<8x128xf32>
    %76 = math.tanh %75 : vector<8x128xf32>
    %77 = vector.extract_strided_slice %58 {offsets = [0, 384], sizes = [8, 128], strides = [1, 1]} : vector<8x512xf32> to vector<8x128xf32>
    %cst_40 = arith.constant 0.000000e+00 : f32
    %78 = vector.broadcast %cst_40 : f32 to vector<8x128xf32>
    %79 = arith.subf %78, %77 : vector<8x128xf32>
    %80 = math.exp %79 : vector<8x128xf32>
    %cst_41 = arith.constant 1.000000e+00 : f32
    %81 = vector.broadcast %cst_41 : f32 to vector<8x128xf32>
    %82 = arith.addf %81, %80 : vector<8x128xf32>
    %cst_42 = arith.constant 1.000000e+00 : f32
    %83 = vector.broadcast %cst_42 : f32 to vector<8x128xf32>
    %84 = arith.divf %83, %82 : vector<8x128xf32>
    %85 = arith.mulf %74, %46 : vector<8x128xf32>
    %86 = arith.mulf %66, %76 : vector<8x128xf32>
    %87 = arith.addf %85, %86 : vector<8x128xf32>
    %88 = math.tanh %87 : vector<8x128xf32>
    %89 = arith.mulf %84, %88 : vector<8x128xf32>
    %90 = arith.index_cast %c1_i32 : i32 to index
    %c0_43 = arith.constant 0 : index
    %c0_44 = arith.constant 0 : index
    %91 = vector.load %arg4[%90, %c0_43, %c0_44] : memref<8x128x1xf32, #tpu.memory_space<vmem>>, vector<1x128x1xf32>
    %92 = vector.shape_cast %91 : vector<1x128x1xf32> to vector<128x1xf32>
    %cst_45 = arith.constant dense<0.000000e+00> : vector<8x1xf32>
    %93 = tpu.matmul %89, %92, %cst_45 {dimension_numbers = #tpu.dot_dimension_numbers<[1], [0], [0], [1], [0, 0, 1, 1], [], []>} : vector<8x128xf32>, vector<128x1xf32>, vector<8x1xf32> -> vector<8x1xf32>
    %94 = arith.addf %53, %93 : vector<8x1xf32>
    %c2_i32 = arith.constant 2 : i32
    %95 = arith.index_cast %c2_i32 : i32 to index
    %c0_46 = arith.constant 0 : index
    %c0_47 = arith.constant 0 : index
    %96 = vector.load %arg9[%95, %c0_46, %c0_47] : memref<8x8x512xf32, #tpu.memory_space<vmem>>, vector<1x8x512xf32>
    %97 = vector.shape_cast %96 : vector<1x8x512xf32> to vector<8x512xf32>
    %cst_48 = arith.constant dense<0.000000e+00> : vector<8x512xf32>
    %98 = tpu.matmul %89, %9, %cst_48 {dimension_numbers = #tpu.dot_dimension_numbers<[1], [0], [0], [1], [0, 0, 1, 1], [], []>} : vector<8x128xf32>, vector<128x512xf32>, vector<8x512xf32> -> vector<8x512xf32>
    %99 = arith.addf %97, %98 : vector<8x512xf32>
    %100 = vector.extract_strided_slice %99 {offsets = [0, 0], sizes = [8, 128], strides = [1, 1]} : vector<8x512xf32> to vector<8x128xf32>
    %cst_49 = arith.constant 0.000000e+00 : f32
    %101 = vector.broadcast %cst_49 : f32 to vector<8x128xf32>
    %102 = arith.subf %101, %100 : vector<8x128xf32>
    %103 = math.exp %102 : vector<8x128xf32>
    %cst_50 = arith.constant 1.000000e+00 : f32
    %104 = vector.broadcast %cst_50 : f32 to vector<8x128xf32>
    %105 = arith.addf %104, %103 : vector<8x128xf32>
    %cst_51 = arith.constant 1.000000e+00 : f32
    %106 = vector.broadcast %cst_51 : f32 to vector<8x128xf32>
    %107 = arith.divf %106, %105 : vector<8x128xf32>
    %108 = vector.extract_strided_slice %99 {offsets = [0, 128], sizes = [8, 128], strides = [1, 1]} : vector<8x512xf32> to vector<8x128xf32>
    %cst_52 = arith.constant 0.000000e+00 : f32
    %109 = vector.broadcast %cst_52 : f32 to vector<8x128xf32>
    %110 = arith.subf %109, %108 : vector<8x128xf32>
    %111 = math.exp %110 : vector<8x128xf32>
    %cst_53 = arith.constant 1.000000e+00 : f32
    %112 = vector.broadcast %cst_53 : f32 to vector<8x128xf32>
    %113 = arith.addf %112, %111 : vector<8x128xf32>
    %cst_54 = arith.constant 1.000000e+00 : f32
    %114 = vector.broadcast %cst_54 : f32 to vector<8x128xf32>
    %115 = arith.divf %114, %113 : vector<8x128xf32>
    %116 = vector.extract_strided_slice %99 {offsets = [0, 256], sizes = [8, 128], strides = [1, 1]} : vector<8x512xf32> to vector<8x128xf32>
    %117 = math.tanh %116 : vector<8x128xf32>
    %118 = vector.extract_strided_slice %99 {offsets = [0, 384], sizes = [8, 128], strides = [1, 1]} : vector<8x512xf32> to vector<8x128xf32>
    %cst_55 = arith.constant 0.000000e+00 : f32
    %119 = vector.broadcast %cst_55 : f32 to vector<8x128xf32>
    %120 = arith.subf %119, %118 : vector<8x128xf32>
    %121 = math.exp %120 : vector<8x128xf32>
    %cst_56 = arith.constant 1.000000e+00 : f32
    %122 = vector.broadcast %cst_56 : f32 to vector<8x128xf32>
    %123 = arith.addf %122, %121 : vector<8x128xf32>
    %cst_57 = arith.constant 1.000000e+00 : f32
    %124 = vector.broadcast %cst_57 : f32 to vector<8x128xf32>
    %125 = arith.divf %124, %123 : vector<8x128xf32>
    %126 = arith.mulf %115, %87 : vector<8x128xf32>
    %127 = arith.mulf %107, %117 : vector<8x128xf32>
    %128 = arith.addf %126, %127 : vector<8x128xf32>
    %129 = math.tanh %128 : vector<8x128xf32>
    %130 = arith.mulf %125, %129 : vector<8x128xf32>
    %131 = arith.index_cast %c2_i32 : i32 to index
    %c0_58 = arith.constant 0 : index
    %c0_59 = arith.constant 0 : index
    %132 = vector.load %arg4[%131, %c0_58, %c0_59] : memref<8x128x1xf32, #tpu.memory_space<vmem>>, vector<1x128x1xf32>
    %133 = vector.shape_cast %132 : vector<1x128x1xf32> to vector<128x1xf32>
    %cst_60 = arith.constant dense<0.000000e+00> : vector<8x1xf32>
    %134 = tpu.matmul %130, %133, %cst_60 {dimension_numbers = #tpu.dot_dimension_numbers<[1], [0], [0], [1], [0, 0, 1, 1], [], []>} : vector<8x128xf32>, vector<128x1xf32>, vector<8x1xf32> -> vector<8x1xf32>
    %135 = arith.addf %94, %134 : vector<8x1xf32>
    %c3_i32 = arith.constant 3 : i32
    %136 = arith.index_cast %c3_i32 : i32 to index
    %c0_61 = arith.constant 0 : index
    %c0_62 = arith.constant 0 : index
    %137 = vector.load %arg9[%136, %c0_61, %c0_62] : memref<8x8x512xf32, #tpu.memory_space<vmem>>, vector<1x8x512xf32>
    %138 = vector.shape_cast %137 : vector<1x8x512xf32> to vector<8x512xf32>
    %cst_63 = arith.constant dense<0.000000e+00> : vector<8x512xf32>
    %139 = tpu.matmul %130, %9, %cst_63 {dimension_numbers = #tpu.dot_dimension_numbers<[1], [0], [0], [1], [0, 0, 1, 1], [], []>} : vector<8x128xf32>, vector<128x512xf32>, vector<8x512xf32> -> vector<8x512xf32>
    %140 = arith.addf %138, %139 : vector<8x512xf32>
    %141 = vector.extract_strided_slice %140 {offsets = [0, 0], sizes = [8, 128], strides = [1, 1]} : vector<8x512xf32> to vector<8x128xf32>
    %cst_64 = arith.constant 0.000000e+00 : f32
    %142 = vector.broadcast %cst_64 : f32 to vector<8x128xf32>
    %143 = arith.subf %142, %141 : vector<8x128xf32>
    %144 = math.exp %143 : vector<8x128xf32>
    %cst_65 = arith.constant 1.000000e+00 : f32
    %145 = vector.broadcast %cst_65 : f32 to vector<8x128xf32>
    %146 = arith.addf %145, %144 : vector<8x128xf32>
    %cst_66 = arith.constant 1.000000e+00 : f32
    %147 = vector.broadcast %cst_66 : f32 to vector<8x128xf32>
    %148 = arith.divf %147, %146 : vector<8x128xf32>
    %149 = vector.extract_strided_slice %140 {offsets = [0, 128], sizes = [8, 128], strides = [1, 1]} : vector<8x512xf32> to vector<8x128xf32>
    %cst_67 = arith.constant 0.000000e+00 : f32
    %150 = vector.broadcast %cst_67 : f32 to vector<8x128xf32>
    %151 = arith.subf %150, %149 : vector<8x128xf32>
    %152 = math.exp %151 : vector<8x128xf32>
    %cst_68 = arith.constant 1.000000e+00 : f32
    %153 = vector.broadcast %cst_68 : f32 to vector<8x128xf32>
    %154 = arith.addf %153, %152 : vector<8x128xf32>
    %cst_69 = arith.constant 1.000000e+00 : f32
    %155 = vector.broadcast %cst_69 : f32 to vector<8x128xf32>
    %156 = arith.divf %155, %154 : vector<8x128xf32>
    %157 = vector.extract_strided_slice %140 {offsets = [0, 256], sizes = [8, 128], strides = [1, 1]} : vector<8x512xf32> to vector<8x128xf32>
    %158 = math.tanh %157 : vector<8x128xf32>
    %159 = vector.extract_strided_slice %140 {offsets = [0, 384], sizes = [8, 128], strides = [1, 1]} : vector<8x512xf32> to vector<8x128xf32>
    %cst_70 = arith.constant 0.000000e+00 : f32
    %160 = vector.broadcast %cst_70 : f32 to vector<8x128xf32>
    %161 = arith.subf %160, %159 : vector<8x128xf32>
    %162 = math.exp %161 : vector<8x128xf32>
    %cst_71 = arith.constant 1.000000e+00 : f32
    %163 = vector.broadcast %cst_71 : f32 to vector<8x128xf32>
    %164 = arith.addf %163, %162 : vector<8x128xf32>
    %cst_72 = arith.constant 1.000000e+00 : f32
    %165 = vector.broadcast %cst_72 : f32 to vector<8x128xf32>
    %166 = arith.divf %165, %164 : vector<8x128xf32>
    %167 = arith.mulf %156, %128 : vector<8x128xf32>
    %168 = arith.mulf %148, %158 : vector<8x128xf32>
    %169 = arith.addf %167, %168 : vector<8x128xf32>
    %170 = math.tanh %169 : vector<8x128xf32>
    %171 = arith.mulf %166, %170 : vector<8x128xf32>
    %172 = arith.index_cast %c3_i32 : i32 to index
    %c0_73 = arith.constant 0 : index
    %c0_74 = arith.constant 0 : index
    %173 = vector.load %arg4[%172, %c0_73, %c0_74] : memref<8x128x1xf32, #tpu.memory_space<vmem>>, vector<1x128x1xf32>
    %174 = vector.shape_cast %173 : vector<1x128x1xf32> to vector<128x1xf32>
    %cst_75 = arith.constant dense<0.000000e+00> : vector<8x1xf32>
    %175 = tpu.matmul %171, %174, %cst_75 {dimension_numbers = #tpu.dot_dimension_numbers<[1], [0], [0], [1], [0, 0, 1, 1], [], []>} : vector<8x128xf32>, vector<128x1xf32>, vector<8x1xf32> -> vector<8x1xf32>
    %176 = arith.addf %135, %175 : vector<8x1xf32>
    %c4_i32 = arith.constant 4 : i32
    %177 = arith.index_cast %c4_i32 : i32 to index
    %c0_76 = arith.constant 0 : index
    %c0_77 = arith.constant 0 : index
    %178 = vector.load %arg9[%177, %c0_76, %c0_77] : memref<8x8x512xf32, #tpu.memory_space<vmem>>, vector<1x8x512xf32>
    %179 = vector.shape_cast %178 : vector<1x8x512xf32> to vector<8x512xf32>
    %cst_78 = arith.constant dense<0.000000e+00> : vector<8x512xf32>
    %180 = tpu.matmul %171, %9, %cst_78 {dimension_numbers = #tpu.dot_dimension_numbers<[1], [0], [0], [1], [0, 0, 1, 1], [], []>} : vector<8x128xf32>, vector<128x512xf32>, vector<8x512xf32> -> vector<8x512xf32>
    %181 = arith.addf %179, %180 : vector<8x512xf32>
    %182 = vector.extract_strided_slice %181 {offsets = [0, 0], sizes = [8, 128], strides = [1, 1]} : vector<8x512xf32> to vector<8x128xf32>
    %cst_79 = arith.constant 0.000000e+00 : f32
    %183 = vector.broadcast %cst_79 : f32 to vector<8x128xf32>
    %184 = arith.subf %183, %182 : vector<8x128xf32>
    %185 = math.exp %184 : vector<8x128xf32>
    %cst_80 = arith.constant 1.000000e+00 : f32
    %186 = vector.broadcast %cst_80 : f32 to vector<8x128xf32>
    %187 = arith.addf %186, %185 : vector<8x128xf32>
    %cst_81 = arith.constant 1.000000e+00 : f32
    %188 = vector.broadcast %cst_81 : f32 to vector<8x128xf32>
    %189 = arith.divf %188, %187 : vector<8x128xf32>
    %190 = vector.extract_strided_slice %181 {offsets = [0, 128], sizes = [8, 128], strides = [1, 1]} : vector<8x512xf32> to vector<8x128xf32>
    %cst_82 = arith.constant 0.000000e+00 : f32
    %191 = vector.broadcast %cst_82 : f32 to vector<8x128xf32>
    %192 = arith.subf %191, %190 : vector<8x128xf32>
    %193 = math.exp %192 : vector<8x128xf32>
    %cst_83 = arith.constant 1.000000e+00 : f32
    %194 = vector.broadcast %cst_83 : f32 to vector<8x128xf32>
    %195 = arith.addf %194, %193 : vector<8x128xf32>
    %cst_84 = arith.constant 1.000000e+00 : f32
    %196 = vector.broadcast %cst_84 : f32 to vector<8x128xf32>
    %197 = arith.divf %196, %195 : vector<8x128xf32>
    %198 = vector.extract_strided_slice %181 {offsets = [0, 256], sizes = [8, 128], strides = [1, 1]} : vector<8x512xf32> to vector<8x128xf32>
    %199 = math.tanh %198 : vector<8x128xf32>
    %200 = vector.extract_strided_slice %181 {offsets = [0, 384], sizes = [8, 128], strides = [1, 1]} : vector<8x512xf32> to vector<8x128xf32>
    %cst_85 = arith.constant 0.000000e+00 : f32
    %201 = vector.broadcast %cst_85 : f32 to vector<8x128xf32>
    %202 = arith.subf %201, %200 : vector<8x128xf32>
    %203 = math.exp %202 : vector<8x128xf32>
    %cst_86 = arith.constant 1.000000e+00 : f32
    %204 = vector.broadcast %cst_86 : f32 to vector<8x128xf32>
    %205 = arith.addf %204, %203 : vector<8x128xf32>
    %cst_87 = arith.constant 1.000000e+00 : f32
    %206 = vector.broadcast %cst_87 : f32 to vector<8x128xf32>
    %207 = arith.divf %206, %205 : vector<8x128xf32>
    %208 = arith.mulf %197, %169 : vector<8x128xf32>
    %209 = arith.mulf %189, %199 : vector<8x128xf32>
    %210 = arith.addf %208, %209 : vector<8x128xf32>
    %211 = math.tanh %210 : vector<8x128xf32>
    %212 = arith.mulf %207, %211 : vector<8x128xf32>
    %213 = arith.index_cast %c4_i32 : i32 to index
    %c0_88 = arith.constant 0 : index
    %c0_89 = arith.constant 0 : index
    %214 = vector.load %arg4[%213, %c0_88, %c0_89] : memref<8x128x1xf32, #tpu.memory_space<vmem>>, vector<1x128x1xf32>
    %215 = vector.shape_cast %214 : vector<1x128x1xf32> to vector<128x1xf32>
    %cst_90 = arith.constant dense<0.000000e+00> : vector<8x1xf32>
    %216 = tpu.matmul %212, %215, %cst_90 {dimension_numbers = #tpu.dot_dimension_numbers<[1], [0], [0], [1], [0, 0, 1, 1], [], []>} : vector<8x128xf32>, vector<128x1xf32>, vector<8x1xf32> -> vector<8x1xf32>
    %217 = arith.addf %176, %216 : vector<8x1xf32>
    %c5_i32 = arith.constant 5 : i32
    %218 = arith.index_cast %c5_i32 : i32 to index
    %c0_91 = arith.constant 0 : index
    %c0_92 = arith.constant 0 : index
    %219 = vector.load %arg9[%218, %c0_91, %c0_92] : memref<8x8x512xf32, #tpu.memory_space<vmem>>, vector<1x8x512xf32>
    %220 = vector.shape_cast %219 : vector<1x8x512xf32> to vector<8x512xf32>
    %cst_93 = arith.constant dense<0.000000e+00> : vector<8x512xf32>
    %221 = tpu.matmul %212, %9, %cst_93 {dimension_numbers = #tpu.dot_dimension_numbers<[1], [0], [0], [1], [0, 0, 1, 1], [], []>} : vector<8x128xf32>, vector<128x512xf32>, vector<8x512xf32> -> vector<8x512xf32>
    %222 = arith.addf %220, %221 : vector<8x512xf32>
    %223 = vector.extract_strided_slice %222 {offsets = [0, 0], sizes = [8, 128], strides = [1, 1]} : vector<8x512xf32> to vector<8x128xf32>
    %cst_94 = arith.constant 0.000000e+00 : f32
    %224 = vector.broadcast %cst_94 : f32 to vector<8x128xf32>
    %225 = arith.subf %224, %223 : vector<8x128xf32>
    %226 = math.exp %225 : vector<8x128xf32>
    %cst_95 = arith.constant 1.000000e+00 : f32
    %227 = vector.broadcast %cst_95 : f32 to vector<8x128xf32>
    %228 = arith.addf %227, %226 : vector<8x128xf32>
    %cst_96 = arith.constant 1.000000e+00 : f32
    %229 = vector.broadcast %cst_96 : f32 to vector<8x128xf32>
    %230 = arith.divf %229, %228 : vector<8x128xf32>
    %231 = vector.extract_strided_slice %222 {offsets = [0, 128], sizes = [8, 128], strides = [1, 1]} : vector<8x512xf32> to vector<8x128xf32>
    %cst_97 = arith.constant 0.000000e+00 : f32
    %232 = vector.broadcast %cst_97 : f32 to vector<8x128xf32>
    %233 = arith.subf %232, %231 : vector<8x128xf32>
    %234 = math.exp %233 : vector<8x128xf32>
    %cst_98 = arith.constant 1.000000e+00 : f32
    %235 = vector.broadcast %cst_98 : f32 to vector<8x128xf32>
    %236 = arith.addf %235, %234 : vector<8x128xf32>
    %cst_99 = arith.constant 1.000000e+00 : f32
    %237 = vector.broadcast %cst_99 : f32 to vector<8x128xf32>
    %238 = arith.divf %237, %236 : vector<8x128xf32>
    %239 = vector.extract_strided_slice %222 {offsets = [0, 256], sizes = [8, 128], strides = [1, 1]} : vector<8x512xf32> to vector<8x128xf32>
    %240 = math.tanh %239 : vector<8x128xf32>
    %241 = vector.extract_strided_slice %222 {offsets = [0, 384], sizes = [8, 128], strides = [1, 1]} : vector<8x512xf32> to vector<8x128xf32>
    %cst_100 = arith.constant 0.000000e+00 : f32
    %242 = vector.broadcast %cst_100 : f32 to vector<8x128xf32>
    %243 = arith.subf %242, %241 : vector<8x128xf32>
    %244 = math.exp %243 : vector<8x128xf32>
    %cst_101 = arith.constant 1.000000e+00 : f32
    %245 = vector.broadcast %cst_101 : f32 to vector<8x128xf32>
    %246 = arith.addf %245, %244 : vector<8x128xf32>
    %cst_102 = arith.constant 1.000000e+00 : f32
    %247 = vector.broadcast %cst_102 : f32 to vector<8x128xf32>
    %248 = arith.divf %247, %246 : vector<8x128xf32>
    %249 = arith.mulf %238, %210 : vector<8x128xf32>
    %250 = arith.mulf %230, %240 : vector<8x128xf32>
    %251 = arith.addf %249, %250 : vector<8x128xf32>
    %252 = math.tanh %251 : vector<8x128xf32>
    %253 = arith.mulf %248, %252 : vector<8x128xf32>
    %254 = arith.index_cast %c5_i32 : i32 to index
    %c0_103 = arith.constant 0 : index
    %c0_104 = arith.constant 0 : index
    %255 = vector.load %arg4[%254, %c0_103, %c0_104] : memref<8x128x1xf32, #tpu.memory_space<vmem>>, vector<1x128x1xf32>
    %256 = vector.shape_cast %255 : vector<1x128x1xf32> to vector<128x1xf32>
    %cst_105 = arith.constant dense<0.000000e+00> : vector<8x1xf32>
    %257 = tpu.matmul %253, %256, %cst_105 {dimension_numbers = #tpu.dot_dimension_numbers<[1], [0], [0], [1], [0, 0, 1, 1], [], []>} : vector<8x128xf32>, vector<128x1xf32>, vector<8x1xf32> -> vector<8x1xf32>
    %258 = arith.addf %217, %257 : vector<8x1xf32>
    %c6_i32 = arith.constant 6 : i32
    %259 = arith.index_cast %c6_i32 : i32 to index
    %c0_106 = arith.constant 0 : index
    %c0_107 = arith.constant 0 : index
    %260 = vector.load %arg9[%259, %c0_106, %c0_107] : memref<8x8x512xf32, #tpu.memory_space<vmem>>, vector<1x8x512xf32>
    %261 = vector.shape_cast %260 : vector<1x8x512xf32> to vector<8x512xf32>
    %cst_108 = arith.constant dense<0.000000e+00> : vector<8x512xf32>
    %262 = tpu.matmul %253, %9, %cst_108 {dimension_numbers = #tpu.dot_dimension_numbers<[1], [0], [0], [1], [0, 0, 1, 1], [], []>} : vector<8x128xf32>, vector<128x512xf32>, vector<8x512xf32> -> vector<8x512xf32>
    %263 = arith.addf %261, %262 : vector<8x512xf32>
    %264 = vector.extract_strided_slice %263 {offsets = [0, 0], sizes = [8, 128], strides = [1, 1]} : vector<8x512xf32> to vector<8x128xf32>
    %cst_109 = arith.constant 0.000000e+00 : f32
    %265 = vector.broadcast %cst_109 : f32 to vector<8x128xf32>
    %266 = arith.subf %265, %264 : vector<8x128xf32>
    %267 = math.exp %266 : vector<8x128xf32>
    %cst_110 = arith.constant 1.000000e+00 : f32
    %268 = vector.broadcast %cst_110 : f32 to vector<8x128xf32>
    %269 = arith.addf %268, %267 : vector<8x128xf32>
    %cst_111 = arith.constant 1.000000e+00 : f32
    %270 = vector.broadcast %cst_111 : f32 to vector<8x128xf32>
    %271 = arith.divf %270, %269 : vector<8x128xf32>
    %272 = vector.extract_strided_slice %263 {offsets = [0, 128], sizes = [8, 128], strides = [1, 1]} : vector<8x512xf32> to vector<8x128xf32>
    %cst_112 = arith.constant 0.000000e+00 : f32
    %273 = vector.broadcast %cst_112 : f32 to vector<8x128xf32>
    %274 = arith.subf %273, %272 : vector<8x128xf32>
    %275 = math.exp %274 : vector<8x128xf32>
    %cst_113 = arith.constant 1.000000e+00 : f32
    %276 = vector.broadcast %cst_113 : f32 to vector<8x128xf32>
    %277 = arith.addf %276, %275 : vector<8x128xf32>
    %cst_114 = arith.constant 1.000000e+00 : f32
    %278 = vector.broadcast %cst_114 : f32 to vector<8x128xf32>
    %279 = arith.divf %278, %277 : vector<8x128xf32>
    %280 = vector.extract_strided_slice %263 {offsets = [0, 256], sizes = [8, 128], strides = [1, 1]} : vector<8x512xf32> to vector<8x128xf32>
    %281 = math.tanh %280 : vector<8x128xf32>
    %282 = vector.extract_strided_slice %263 {offsets = [0, 384], sizes = [8, 128], strides = [1, 1]} : vector<8x512xf32> to vector<8x128xf32>
    %cst_115 = arith.constant 0.000000e+00 : f32
    %283 = vector.broadcast %cst_115 : f32 to vector<8x128xf32>
    %284 = arith.subf %283, %282 : vector<8x128xf32>
    %285 = math.exp %284 : vector<8x128xf32>
    %cst_116 = arith.constant 1.000000e+00 : f32
    %286 = vector.broadcast %cst_116 : f32 to vector<8x128xf32>
    %287 = arith.addf %286, %285 : vector<8x128xf32>
    %cst_117 = arith.constant 1.000000e+00 : f32
    %288 = vector.broadcast %cst_117 : f32 to vector<8x128xf32>
    %289 = arith.divf %288, %287 : vector<8x128xf32>
    %290 = arith.mulf %279, %251 : vector<8x128xf32>
    %291 = arith.mulf %271, %281 : vector<8x128xf32>
    %292 = arith.addf %290, %291 : vector<8x128xf32>
    %293 = math.tanh %292 : vector<8x128xf32>
    %294 = arith.mulf %289, %293 : vector<8x128xf32>
    %295 = arith.index_cast %c6_i32 : i32 to index
    %c0_118 = arith.constant 0 : index
    %c0_119 = arith.constant 0 : index
    %296 = vector.load %arg4[%295, %c0_118, %c0_119] : memref<8x128x1xf32, #tpu.memory_space<vmem>>, vector<1x128x1xf32>
    %297 = vector.shape_cast %296 : vector<1x128x1xf32> to vector<128x1xf32>
    %cst_120 = arith.constant dense<0.000000e+00> : vector<8x1xf32>
    %298 = tpu.matmul %294, %297, %cst_120 {dimension_numbers = #tpu.dot_dimension_numbers<[1], [0], [0], [1], [0, 0, 1, 1], [], []>} : vector<8x128xf32>, vector<128x1xf32>, vector<8x1xf32> -> vector<8x1xf32>
    %299 = arith.addf %258, %298 : vector<8x1xf32>
    %c7_i32 = arith.constant 7 : i32
    %300 = arith.index_cast %c7_i32 : i32 to index
    %c0_121 = arith.constant 0 : index
    %c0_122 = arith.constant 0 : index
    %301 = vector.load %arg9[%300, %c0_121, %c0_122] : memref<8x8x512xf32, #tpu.memory_space<vmem>>, vector<1x8x512xf32>
    %302 = vector.shape_cast %301 : vector<1x8x512xf32> to vector<8x512xf32>
    %cst_123 = arith.constant dense<0.000000e+00> : vector<8x512xf32>
    %303 = tpu.matmul %294, %9, %cst_123 {dimension_numbers = #tpu.dot_dimension_numbers<[1], [0], [0], [1], [0, 0, 1, 1], [], []>} : vector<8x128xf32>, vector<128x512xf32>, vector<8x512xf32> -> vector<8x512xf32>
    %304 = arith.addf %302, %303 : vector<8x512xf32>
    %305 = vector.extract_strided_slice %304 {offsets = [0, 0], sizes = [8, 128], strides = [1, 1]} : vector<8x512xf32> to vector<8x128xf32>
    %cst_124 = arith.constant 0.000000e+00 : f32
    %306 = vector.broadcast %cst_124 : f32 to vector<8x128xf32>
    %307 = arith.subf %306, %305 : vector<8x128xf32>
    %308 = math.exp %307 : vector<8x128xf32>
    %cst_125 = arith.constant 1.000000e+00 : f32
    %309 = vector.broadcast %cst_125 : f32 to vector<8x128xf32>
    %310 = arith.addf %309, %308 : vector<8x128xf32>
    %cst_126 = arith.constant 1.000000e+00 : f32
    %311 = vector.broadcast %cst_126 : f32 to vector<8x128xf32>
    %312 = arith.divf %311, %310 : vector<8x128xf32>
    %313 = vector.extract_strided_slice %304 {offsets = [0, 128], sizes = [8, 128], strides = [1, 1]} : vector<8x512xf32> to vector<8x128xf32>
    %cst_127 = arith.constant 0.000000e+00 : f32
    %314 = vector.broadcast %cst_127 : f32 to vector<8x128xf32>
    %315 = arith.subf %314, %313 : vector<8x128xf32>
    %316 = math.exp %315 : vector<8x128xf32>
    %cst_128 = arith.constant 1.000000e+00 : f32
    %317 = vector.broadcast %cst_128 : f32 to vector<8x128xf32>
    %318 = arith.addf %317, %316 : vector<8x128xf32>
    %cst_129 = arith.constant 1.000000e+00 : f32
    %319 = vector.broadcast %cst_129 : f32 to vector<8x128xf32>
    %320 = arith.divf %319, %318 : vector<8x128xf32>
    %321 = vector.extract_strided_slice %304 {offsets = [0, 256], sizes = [8, 128], strides = [1, 1]} : vector<8x512xf32> to vector<8x128xf32>
    %322 = math.tanh %321 : vector<8x128xf32>
    %323 = vector.extract_strided_slice %304 {offsets = [0, 384], sizes = [8, 128], strides = [1, 1]} : vector<8x512xf32> to vector<8x128xf32>
    %cst_130 = arith.constant 0.000000e+00 : f32
    %324 = vector.broadcast %cst_130 : f32 to vector<8x128xf32>
    %325 = arith.subf %324, %323 : vector<8x128xf32>
    %326 = math.exp %325 : vector<8x128xf32>
    %cst_131 = arith.constant 1.000000e+00 : f32
    %327 = vector.broadcast %cst_131 : f32 to vector<8x128xf32>
    %328 = arith.addf %327, %326 : vector<8x128xf32>
    %cst_132 = arith.constant 1.000000e+00 : f32
    %329 = vector.broadcast %cst_132 : f32 to vector<8x128xf32>
    %330 = arith.divf %329, %328 : vector<8x128xf32>
    %331 = arith.mulf %320, %292 : vector<8x128xf32>
    %332 = arith.mulf %312, %322 : vector<8x128xf32>
    %333 = arith.addf %331, %332 : vector<8x128xf32>
    %334 = math.tanh %333 : vector<8x128xf32>
    %335 = arith.mulf %330, %334 : vector<8x128xf32>
    %336 = arith.index_cast %c7_i32 : i32 to index
    %c0_133 = arith.constant 0 : index
    %c0_134 = arith.constant 0 : index
    %337 = vector.load %arg4[%336, %c0_133, %c0_134] : memref<8x128x1xf32, #tpu.memory_space<vmem>>, vector<1x128x1xf32>
    %338 = vector.shape_cast %337 : vector<1x128x1xf32> to vector<128x1xf32>
    %cst_135 = arith.constant dense<0.000000e+00> : vector<8x1xf32>
    %339 = tpu.matmul %335, %338, %cst_135 {dimension_numbers = #tpu.dot_dimension_numbers<[1], [0], [0], [1], [0, 0, 1, 1], [], []>} : vector<8x128xf32>, vector<128x1xf32>, vector<8x1xf32> -> vector<8x1xf32>
    %340 = arith.addf %299, %339 : vector<8x1xf32>
    %c8_i32 = arith.constant 8 : i32
    %c0_136 = arith.constant 0 : index
    %c0_137 = arith.constant 0 : index
    %341 = vector.load %arg5[%c0_136, %c0_137] : memref<1x1xf32, #tpu.memory_space<vmem>>, vector<1x1xf32>
    %342 = vector.broadcast %341 : vector<1x1xf32> to vector<8x1xf32>
    %343 = arith.addf %340, %342 : vector<8x1xf32>
    %c0_138 = arith.constant 0 : index
    %c0_139 = arith.constant 0 : index
    %344 = vector.load %arg8[%c0_138, %c0_139] : memref<8x1xf32, #tpu.memory_space<vmem>>, vector<8x1xf32>
    tpu.vector_store %arg8[%c0_138, %c0_139], %343 {strides = array<i32>} : memref<8x1xf32, #tpu.memory_space<vmem>>, vector<8x1xf32>,
    return
  }
}

</mosaic_0001>

<llo_original>
// kernel: lstm_forward.1
$region0: #{lstm_forward.1}
  #allocation0 [shape = 'u32[]', space=smem, size = 0x4, offset = 0x4, fixed_abs, tag = 'smem constant byte address 0x4 - core index']
  #allocation1 [shape = 'u32[144,128]{1,0:T(1,128)}', space=vmem, size = 0x12000, scoped, tag = 'internal scratch']
  #allocation2 [shape = 'f32[8,8,512]{2,1,0:T(8,128)}', space=vmem, size = 0x20000, scoped, tag = 'scratch operand']
  #allocation3 [shape = 'f32[1,1]{1,0:T(1,128)S(1)}', space=vmem, size = 0x200, scoped, tag = 'scoped memory for lstm_forward.1']
  %s0 = inlined_call_operand.vmem [shape: f32[8,8,128], index: 0, kind: input, shape index: {}]
  %s1 = inlined_call_operand.vmem [shape: f32[128,512], index: 1, kind: input, shape index: {}]
  %s2 = inlined_call_operand.vmem [shape: f32[128,512], index: 2, kind: input, shape index: {}]
  %s3 = inlined_call_operand.vmem [shape: f32[1,512], index: 3, kind: input, shape index: {}]
  %s4 = inlined_call_operand.vmem [shape: f32[8,128,1], index: 4, kind: input, shape index: {}]
  %s5 = inlined_call_operand.<no memory space> [shape: f32[1,1], index: 5, kind: input, shape index: {}]
  %s6 = inlined_call_operand.vmem [shape: f32[8,128], index: 6, kind: input, shape index: {}]
  %s7 = inlined_call_operand.vmem [shape: f32[8,128], index: 7, kind: input, shape index: {}]
  %s8 = inlined_call_operand.vmem [shape: f32[8,1], index: 8, kind: output, shape index: {}]
  %s9 = sld [smem:[#allocation0]]
  $region42: #{lstm_forward.1} parent=0
    _
  %s11 = ssub.s32 1, %s9
  %s12 = scalar_select 0, %s11, %s9
  %v13 = vstv %s5
  %14 = vst [vmem:[#allocation3] sm:$0x1] %v13
  // Predicated region
  $region2: #{lstm_forward.1} parent=0 // pred_check
    _
  $region3: #{lstm_forward.1} parent=0 // pred_check_branch
    %16 = sbr.rel (0) target = $region5
  $region4: #{lstm_forward.1} parent=0 // pred_region
    _
  $region5: #{lstm_forward.1} parent=0 // pred_fallthru
    _
  // Predicated region
  $region6: #{lstm_forward.1} parent=0 // pred_check
    _
  $region7: #{lstm_forward.1} parent=0 // pred_check_branch
    %18 = sbr.rel (0) target = $region9
  $region8: #{lstm_forward.1} parent=0 // pred_region
    _
  $region9: #{lstm_forward.1} parent=0 // pred_fallthru
    _
  // Predicated region
  $region10: #{lstm_forward.1} parent=0 // pred_check
    _
  $region11: #{lstm_forward.1} parent=0 // pred_check_branch
    %20 = sbr.rel (0) target = $region13
  $region12: #{lstm_forward.1} parent=0 // pred_region
    _
  $region13: #{lstm_forward.1} parent=0 // pred_fallthru
    _
  // Predicated region
  $region14: #{lstm_forward.1} parent=0 // pred_check
    _
  $region15: #{lstm_forward.1} parent=0 // pred_check_branch
    %22 = sbr.rel (0) target = $region17
  $region16: #{lstm_forward.1} parent=0 // pred_region
    _
  $region17: #{lstm_forward.1} parent=0 // pred_fallthru
    _
  // Predicated region
  $region18: #{lstm_forward.1} parent=0 // pred_check
    _
  $region19: #{lstm_forward.1} parent=0 // pred_check_branch
    %24 = sbr.rel (0) target = $region21
  $region20: #{lstm_forward.1} parent=0 // pred_region
    _
  $region21: #{lstm_forward.1} parent=0 // pred_fallthru
    _
  // Predicated region
  $region22: #{lstm_forward.1} parent=0 // pred_check
    _
  $region23: #{lstm_forward.1} parent=0 // pred_check_branch
    %26 = sbr.rel (0) target = $region25
  $region24: #{lstm_forward.1} parent=0 // pred_region
    _
  $region25: #{lstm_forward.1} parent=0 // pred_fallthru
    _
  // Predicated region
  $region26: #{lstm_forward.1} parent=0 // pred_check
    _
  $region27: #{lstm_forward.1} parent=0 // pred_check_branch
    %28 = sbr.rel (0) target = $region29
  $region28: #{lstm_forward.1} parent=0 // pred_region
    _
  $region29: #{lstm_forward.1} parent=0 // pred_fallthru
    _
  // Predicated region
  $region30: #{lstm_forward.1} parent=0 // pred_check
    _
  $region31: #{lstm_forward.1} parent=0 // pred_check_branch
    %30 = sbr.rel (0) target = $region33
  $region32: #{lstm_forward.1} parent=0 // pred_region
    _
  $region33: #{lstm_forward.1} parent=0 // pred_fallthru
    _
  %v31 = vld [vmem:[%s0] sm:$0xff]
  %v32 = vld [vmem:[%s0 + $0x8] sm:$0xff]
  %v33 = vld [vmem:[%s0 + $0x10] sm:$0xff]
  %v34 = vld [vmem:[%s0 + $0x18] sm:$0xff]
  %v35 = vld [vmem:[%s0 + $0x20] sm:$0xff]
  %v36 = vld [vmem:[%s0 + $0x28] sm:$0xff]
  %v37 = vld [vmem:[%s0 + $0x30] sm:$0xff]
  %v38 = vld [vmem:[%s0 + $0x38] sm:$0xff]
  %v39 = vld [vmem:[%s1] sm:$0xff]
  %v40 = vld [vmem:[%s1 + $0x8] sm:$0xff]
  %v41 = vld [vmem:[%s1 + $0x10] sm:$0xff]
  %v42 = vld [vmem:[%s1 + $0x18] sm:$0xff]
  %v43 = vld [vmem:[%s1 + $0x20] sm:$0xff]
  %v44 = vld [vmem:[%s1 + $0x28] sm:$0xff]
  %v45 = vld [vmem:[%s1 + $0x30] sm:$0xff]
  %v46 = vld [vmem:[%s1 + $0x38] sm:$0xff]
  %v47 = vld [vmem:[%s1 + $0x40] sm:$0xff]
  %v48 = vld [vmem:[%s1 + $0x48] sm:$0xff]
  %v49 = vld [vmem:[%s1 + $0x50] sm:$0xff]
  %v50 = vld [vmem:[%s1 + $0x58] sm:$0xff]
  %v51 = vld [vmem:[%s1 + $0x60] sm:$0xff]
  %v52 = vld [vmem:[%s1 + $0x68] sm:$0xff]
  %v53 = vld [vmem:[%s1 + $0x70] sm:$0xff]
  %v54 = vld [vmem:[%s1 + $0x78] sm:$0xff]
  %v55 = vld [vmem:[%s1 + $0x80] sm:$0xff]
  %v56 = vld [vmem:[%s1 + $0x88] sm:$0xff]
  %v57 = vld [vmem:[%s1 + $0x90] sm:$0xff]
  %v58 = vld [vmem:[%s1 + $0x98] sm:$0xff]
  %v59 = vld [vmem:[%s1 + $0xa0] sm:$0xff]
  %v60 = vld [vmem:[%s1 + $0xa8] sm:$0xff]
  %v61 = vld [vmem:[%s1 + $0xb0] sm:$0xff]
  %v62 = vld [vmem:[%s1 + $0xb8] sm:$0xff]
  %v63 = vld [vmem:[%s1 + $0xc0] sm:$0xff]
  %v64 = vld [vmem:[%s1 + $0xc8] sm:$0xff]
  %v65 = vld [vmem:[%s1 + $0xd0] sm:$0xff]
  %v66 = vld [vmem:[%s1 + $0xd8] sm:$0xff]
  %v67 = vld [vmem:[%s1 + $0xe0] sm:$0xff]
  %v68 = vld [vmem:[%s1 + $0xe8] sm:$0xff]
  %v69 = vld [vmem:[%s1 + $0xf0] sm:$0xff]
  %v70 = vld [vmem:[%s1 + $0xf8] sm:$0xff]
  %v71 = vld [vmem:[%s1 + $0x100] sm:$0xff]
  %v72 = vld [vmem:[%s1 + $0x108] sm:$0xff]
  %v73 = vld [vmem:[%s1 + $0x110] sm:$0xff]
  %v74 = vld [vmem:[%s1 + $0x118] sm:$0xff]
  %v75 = vld [vmem:[%s1 + $0x120] sm:$0xff]
  %v76 = vld [vmem:[%s1 + $0x128] sm:$0xff]
  %v77 = vld [vmem:[%s1 + $0x130] sm:$0xff]
  %v78 = vld [vmem:[%s1 + $0x138] sm:$0xff]
  %v79 = vld [vmem:[%s1 + $0x140] sm:$0xff]
  %v80 = vld [vmem:[%s1 + $0x148] sm:$0xff]
  %v81 = vld [vmem:[%s1 + $0x150] sm:$0xff]
  %v82 = vld [vmem:[%s1 + $0x158] sm:$0xff]
  %v83 = vld [vmem:[%s1 + $0x160] sm:$0xff]
  %v84 = vld [vmem:[%s1 + $0x168] sm:$0xff]
  %v85 = vld [vmem:[%s1 + $0x170] sm:$0xff]
  %v86 = vld [vmem:[%s1 + $0x178] sm:$0xff]
  %v87 = vld [vmem:[%s1 + $0x180] sm:$0xff]
  %v88 = vld [vmem:[%s1 + $0x188] sm:$0xff]
  %v89 = vld [vmem:[%s1 + $0x190] sm:$0xff]
  %v90 = vld [vmem:[%s1 + $0x198] sm:$0xff]
  %v91 = vld [vmem:[%s1 + $0x1a0] sm:$0xff]
  %v92 = vld [vmem:[%s1 + $0x1a8] sm:$0xff]
  %v93 = vld [vmem:[%s1 + $0x1b0] sm:$0xff]
  %v94 = vld [vmem:[%s1 + $0x1b8] sm:$0xff]
  %v95 = vld [vmem:[%s1 + $0x1c0] sm:$0xff]
  %v96 = vld [vmem:[%s1 + $0x1c8] sm:$0xff]
  %v97 = vld [vmem:[%s1 + $0x1d0] sm:$0xff]
  %v98 = vld [vmem:[%s1 + $0x1d8] sm:$0xff]
  %v99 = vld [vmem:[%s1 + $0x1e0] sm:$0xff]
  %v100 = vld [vmem:[%s1 + $0x1e8] sm:$0xff]
  %v101 = vld [vmem:[%s1 + $0x1f0] sm:$0xff]
  %v102 = vld [vmem:[%s1 + $0x1f8] sm:$0xff]
  %v103 = vld [vmem:[%s3] sm:$0xf]
  %v105 = vlaneseq
  %v106 = vshrl.u32 %v105, 7
  %v107 = vsub.s32 0, %v106
  %v108 = vrot.slane %v103, %v107
  %v109 = vlaneseq
  %v110 = vshrl.u32 %v109, 7
  %v111 = vsub.s32 1, %v110
  %v112 = vrot.slane %v103, %v111
  %v113 = vlaneseq
  %v114 = vshrl.u32 %v113, 7
  %v115 = vsub.s32 2, %v114
  %v116 = vrot.slane %v103, %v115
  %v117 = vlaneseq
  %v118 = vshrl.u32 %v117, 7
  %v119 = vsub.s32 3, %v118
  %v120 = vrot.slane %v103, %v119
  %125 = vmatprep.subr.mxu0 %v40
  %126 = vmatpush1.msra.mxu0 %v39
  %127 = vmatprep.subr.mxu0 %v44
  %128 = vmatpush1.msra.mxu0 %v43
  %129 = vmatprep.subr.mxu0 %v48
  %130 = vmatpush1.msra.mxu0 %v47
  %131 = vmatprep.subr.mxu0 %v52
  %132 = vmatpush1.msra.mxu0 %v51
  %133 = vmatprep.subr.mxu0 %v56
  %134 = vmatpush1.msra.mxu0 %v55
  %135 = vmatprep.subr.mxu0 %v60
  %136 = vmatpush1.msra.mxu0 %v59
  %137 = vmatprep.subr.mxu0 %v64
  %138 = vmatpush1.msra.mxu0 %v63
  %139 = vmatprep.subr.mxu0 %v68
  %140 = vmatpush1.msra.mxu0 %v67
  %141 = vmatprep.subr.mxu0 %v72
  %142 = vmatpush1.msra.mxu0 %v71
  %143 = vmatprep.subr.mxu0 %v76
  %144 = vmatpush1.msra.mxu0 %v75
  %145 = vmatprep.subr.mxu0 %v80
  %146 = vmatpush1.msra.mxu0 %v79
  %147 = vmatprep.subr.mxu0 %v84
  %148 = vmatpush1.msra.mxu0 %v83
  %149 = vmatprep.subr.mxu0 %v88
  %150 = vmatpush1.msra.mxu0 %v87
  %151 = vmatprep.subr.mxu0 %v92
  %152 = vmatpush1.msra.mxu0 %v91
  %153 = vmatprep.subr.mxu0 %v96
  %154 = vmatpush1.msra.mxu0 %v95
  %155 = vmatprep.subr.mxu0 %v100
  %156 = vmatpush1.msra.mxu0 %v99
  %157 = vmatprep.subr.mxu0 0.0
  %158 = vmatpush1.msra.mxu0 0.0
  %159 = vmatprep.subr.mxu0 0.0
  %160 = vmatpush1.msra.mxu0 0.0
  %161 = vmatprep.subr.mxu0 0.0
  %162 = vmatpush1.msra.mxu0 0.0
  %163 = vmatprep.subr.mxu0 0.0
  %164 = vmatpush1.msra.mxu0 0.0
  %165 = vmatprep.subr.mxu0 0.0
  %166 = vmatpush1.msra.mxu0 0.0
  %167 = vmatprep.subr.mxu0 0.0
  %168 = vmatpush1.msra.mxu0 0.0
  %169 = vmatprep.subr.mxu0 0.0
  %170 = vmatpush1.msra.mxu0 0.0
  %171 = vmatprep.subr.mxu0 0.0
  %172 = vmatpush1.msra.mxu0 0.0
  %173 = vmatprep.subr.mxu0 0.0
  %174 = vmatpush1.msra.mxu0 0.0
  %175 = vmatprep.subr.mxu0 0.0
  %176 = vmatpush1.msra.mxu0 0.0
  %177 = vmatprep.subr.mxu0 0.0
  %178 = vmatpush1.msra.mxu0 0.0
  %179 = vmatprep.subr.mxu0 0.0
  %180 = vmatpush1.msra.mxu0 0.0
  %181 = vmatprep.subr.mxu0 0.0
  %182 = vmatpush1.msra.mxu0 0.0
  %183 = vmatprep.subr.mxu0 0.0
  %184 = vmatpush1.msra.mxu0 0.0
  %185 = vmatprep.subr.mxu0 0.0
  %186 = vmatpush1.msra.mxu0 0.0
  %187 = vmatprep.subr.mxu0 0.0
  %188 = vmatpush1.msra.mxu0 0.0
  %189 = vmatprep.mubr.f32.mxu0 0.0
  %190 = vmatmul.mubr.f32.gmra.mrb[0].mxu0 %v31
  %v191 = vpop.f32.mrb[0].mxu0
  %v192 = vadd.f32 %v108, %v191
  %v193 = vpop.f32.mrb[0].mxu0
  %v194 = vadd.f32 %v112, %v193
  %195 = vmatprep.mubr.f32.mxu0 0.0
  %196 = vmatmul.mubr.f32.gmra.mrb[0].mxu0 %v32
  %v197 = vpop.f32.mrb[0].mxu0
  %v198 = vadd.f32 %v108, %v197
  %v199 = vpop.f32.mrb[0].mxu0
  %v200 = vadd.f32 %v112, %v199
  %201 = vmatprep.mubr.f32.mxu0 0.0
  %202 = vmatmul.mubr.f32.gmra.mrb[0].mxu0 %v33
  %v203 = vpop.f32.mrb[0].mxu0
  %v204 = vadd.f32 %v108, %v203
  %v205 = vpop.f32.mrb[0].mxu0
  %v206 = vadd.f32 %v112, %v205
  %207 = vmatprep.mubr.f32.mxu0 0.0
  %208 = vmatmul.mubr.f32.gmra.mrb[0].mxu0 %v34
  %v209 = vpop.f32.mrb[0].mxu0
  %v210 = vadd.f32 %v108, %v209
  %v211 = vpop.f32.mrb[0].mxu0
  %v212 = vadd.f32 %v112, %v211
  %213 = vmatprep.mubr.f32.mxu0 0.0
  %214 = vmatmul.mubr.f32.gmra.mrb[0].mxu0 %v35
  %v215 = vpop.f32.mrb[0].mxu0
  %v216 = vadd.f32 %v108, %v215
  %v217 = vpop.f32.mrb[0].mxu0
  %v218 = vadd.f32 %v112, %v217
  %219 = vmatprep.mubr.f32.mxu0 0.0
  %220 = vmatmul.mubr.f32.gmra.mrb[0].mxu0 %v36
  %v221 = vpop.f32.mrb[0].mxu0
  %v222 = vadd.f32 %v108, %v221
  %v223 = vpop.f32.mrb[0].mxu0
  %v224 = vadd.f32 %v112, %v223
  %225 = vmatprep.mubr.f32.mxu0 0.0
  %226 = vmatmul.mubr.f32.gmra.mrb[0].mxu0 %v37
  %v227 = vpop.f32.mrb[0].mxu0
  %v228 = vadd.f32 %v108, %v227
  %v229 = vpop.f32.mrb[0].mxu0
  %v230 = vadd.f32 %v112, %v229
  %231 = vmatprep.mubr.f32.mxu0 0.0
  %232 = vmatmul.mubr.f32.gmra.mrb[0].mxu0 %v38
  %v233 = vpop.f32.mrb[0].mxu0
  %v234 = vadd.f32 %v108, %v233
  %v235 = vpop.f32.mrb[0].mxu0
  %v236 = vadd.f32 %v112, %v235
  %237 = vdwg.mxu0
  %238 = vmatprep.subr.mxu0 %v42
  %239 = vmatpush1.msra.mxu0 %v41
  %240 = vmatprep.subr.mxu0 %v46
  %241 = vmatpush1.msra.mxu0 %v45
  %242 = vmatprep.subr.mxu0 %v50
  %243 = vmatpush1.msra.mxu0 %v49
  %244 = vmatprep.subr.mxu0 %v54
  %245 = vmatpush1.msra.mxu0 %v53
  %246 = vmatprep.subr.mxu0 %v58
  %247 = vmatpush1.msra.mxu0 %v57
  %248 = vmatprep.subr.mxu0 %v62
  %249 = vmatpush1.msra.mxu0 %v61
  %250 = vmatprep.subr.mxu0 %v66
  %251 = vmatpush1.msra.mxu0 %v65
  %252 = vmatprep.subr.mxu0 %v70
  %253 = vmatpush1.msra.mxu0 %v69
  %254 = vmatprep.subr.mxu0 %v74
  %255 = vmatpush1.msra.mxu0 %v73
  %256 = vmatprep.subr.mxu0 %v78
  %257 = vmatpush1.msra.mxu0 %v77
  %258 = vmatprep.subr.mxu0 %v82
  %259 = vmatpush1.msra.mxu0 %v81
  %260 = vmatprep.subr.mxu0 %v86
  %261 = vmatpush1.msra.mxu0 %v85
  %262 = vmatprep.subr.mxu0 %v90
  %263 = vmatpush1.msra.mxu0 %v89
  %264 = vmatprep.subr.mxu0 %v94
  %265 = vmatpush1.msra.mxu0 %v93
  %266 = vmatprep.subr.mxu0 %v98
  %267 = vmatpush1.msra.mxu0 %v97
  %268 = vmatprep.subr.mxu0 %v102
  %269 = vmatpush1.msra.mxu0 %v101
  %270 = vmatprep.subr.mxu0 0.0
  %271 = vmatpush1.msra.mxu0 0.0
  %272 = vmatprep.subr.mxu0 0.0
  %273 = vmatpush1.msra.mxu0 0.0
  %274 = vmatprep.subr.mxu0 0.0
  %275 = vmatpush1.msra.mxu0 0.0
  %276 = vmatprep.subr.mxu0 0.0
  %277 = vmatpush1.msra.mxu0 0.0
  %278 = vmatprep.subr.mxu0 0.0
  %279 = vmatpush1.msra.mxu0 0.0
  %280 = vmatprep.subr.mxu0 0.0
  %281 = vmatpush1.msra.mxu0 0.0
  %282 = vmatprep.subr.mxu0 0.0
  %283 = vmatpush1.msra.mxu0 0.0
  %284 = vmatprep.subr.mxu0 0.0
  %285 = vmatpush1.msra.mxu0 0.0
  %286 = vmatprep.subr.mxu0 0.0
  %287 = vmatpush1.msra.mxu0 0.0
  %288 = vmatprep.subr.mxu0 0.0
  %289 = vmatpush1.msra.mxu0 0.0
  %290 = vmatprep.subr.mxu0 0.0
  %291 = vmatpush1.msra.mxu0 0.0
  %292 = vmatprep.subr.mxu0 0.0
  %293 = vmatpush1.msra.mxu0 0.0
  %294 = vmatprep.subr.mxu0 0.0
  %295 = vmatpush1.msra.mxu0 0.0
  %296 = vmatprep.subr.mxu0 0.0
  %297 = vmatpush1.msra.mxu0 0.0
  %298 = vmatprep.subr.mxu0 0.0
  %299 = vmatpush1.msra.mxu0 0.0
  %300 = vmatprep.subr.mxu0 0.0
  %301 = vmatpush1.msra.mxu0 0.0
  %302 = vmatprep.mubr.f32.mxu0 0.0
  %303 = vmatmul.mubr.f32.gmra.mrb[0].mxu0 %v31
  %v304 = vpop.f32.mrb[0].mxu0
  %v305 = vadd.f32 %v116, %v304
  %v306 = vpop.f32.mrb[0].mxu0
  %v307 = vadd.f32 %v120, %v306
  %308 = vmatprep.mubr.f32.mxu0 0.0
  %309 = vmatmul.mubr.f32.gmra.mrb[0].mxu0 %v32
  %v310 = vpop.f32.mrb[0].mxu0
  %v311 = vadd.f32 %v116, %v310
  %v312 = vpop.f32.mrb[0].mxu0
  %v313 = vadd.f32 %v120, %v312
  %314 = vmatprep.mubr.f32.mxu0 0.0
  %315 = vmatmul.mubr.f32.gmra.mrb[0].mxu0 %v33
  %v316 = vpop.f32.mrb[0].mxu0
  %v317 = vadd.f32 %v116, %v316
  %v318 = vpop.f32.mrb[0].mxu0
  %v319 = vadd.f32 %v120, %v318
  %320 = vmatprep.mubr.f32.mxu0 0.0
  %321 = vmatmul.mubr.f32.gmra.mrb[0].mxu0 %v34
  %v322 = vpop.f32.mrb[0].mxu0
  %v323 = vadd.f32 %v116, %v322
  %v324 = vpop.f32.mrb[0].mxu0
  %v325 = vadd.f32 %v120, %v324
  %326 = vmatprep.mubr.f32.mxu0 0.0
  %327 = vmatmul.mubr.f32.gmra.mrb[0].mxu0 %v35
  %v328 = vpop.f32.mrb[0].mxu0
  %v329 = vadd.f32 %v116, %v328
  %v330 = vpop.f32.mrb[0].mxu0
  %v331 = vadd.f32 %v120, %v330
  %332 = vmatprep.mubr.f32.mxu0 0.0
  %333 = vmatmul.mubr.f32.gmra.mrb[0].mxu0 %v36
  %v334 = vpop.f32.mrb[0].mxu0
  %v335 = vadd.f32 %v116, %v334
  %v336 = vpop.f32.mrb[0].mxu0
  %v337 = vadd.f32 %v120, %v336
  %338 = vmatprep.mubr.f32.mxu0 0.0
  %339 = vmatmul.mubr.f32.gmra.mrb[0].mxu0 %v37
  %v340 = vpop.f32.mrb[0].mxu0
  %v341 = vadd.f32 %v116, %v340
  %v342 = vpop.f32.mrb[0].mxu0
  %v343 = vadd.f32 %v120, %v342
  %344 = vmatprep.mubr.f32.mxu0 0.0
  %345 = vmatmul.mubr.f32.gmra.mrb[0].mxu0 %v38
  %v346 = vpop.f32.mrb[0].mxu0
  %v347 = vadd.f32 %v116, %v346
  %v348 = vpop.f32.mrb[0].mxu0
  %v349 = vadd.f32 %v120, %v348
  %350 = vdwg.mxu0
  %351 = vst [vmem:[#allocation2] sm:$0xff] %v192
  %352 = vst [vmem:[#allocation2 + $0x8] sm:$0xff] %v194
  %353 = vst [vmem:[#allocation2 + $0x10] sm:$0xff] %v305
  %354 = vst [vmem:[#allocation2 + $0x18] sm:$0xff] %v307
  %355 = vst [vmem:[#allocation2 + $0x20] sm:$0xff] %v198
  %356 = vst [vmem:[#allocation2 + $0x28] sm:$0xff] %v200
  %357 = vst [vmem:[#allocation2 + $0x30] sm:$0xff] %v311
  %358 = vst [vmem:[#allocation2 + $0x38] sm:$0xff] %v313
  %359 = vst [vmem:[#allocation2 + $0x40] sm:$0xff] %v204
  %360 = vst [vmem:[#allocation2 + $0x48] sm:$0xff] %v206
  %361 = vst [vmem:[#allocation2 + $0x50] sm:$0xff] %v317
  %362 = vst [vmem:[#allocation2 + $0x58] sm:$0xff] %v319
  %363 = vst [vmem:[#allocation2 + $0x60] sm:$0xff] %v210
  %364 = vst [vmem:[#allocation2 + $0x68] sm:$0xff] %v212
  %365 = vst [vmem:[#allocation2 + $0x70] sm:$0xff] %v323
  %366 = vst [vmem:[#allocation2 + $0x78] sm:$0xff] %v325
  %367 = vst [vmem:[#allocation2 + $0x80] sm:$0xff] %v216
  %368 = vst [vmem:[#allocation2 + $0x88] sm:$0xff] %v218
  %369 = vst [vmem:[#allocation2 + $0x90] sm:$0xff] %v329
  %370 = vst [vmem:[#allocation2 + $0x98] sm:$0xff] %v331
  %371 = vst [vmem:[#allocation2 + $0xa0] sm:$0xff] %v222
  %372 = vst [vmem:[#allocation2 + $0xa8] sm:$0xff] %v224
  %373 = vst [vmem:[#allocation2 + $0xb0] sm:$0xff] %v335
  %374 = vst [vmem:[#allocation2 + $0xb8] sm:$0xff] %v337
  %375 = vst [vmem:[#allocation2 + $0xc0] sm:$0xff] %v228
  %376 = vst [vmem:[#allocation2 + $0xc8] sm:$0xff] %v230
  %377 = vst [vmem:[#allocation2 + $0xd0] sm:$0xff] %v341
  %378 = vst [vmem:[#allocation2 + $0xd8] sm:$0xff] %v343
  %379 = vst [vmem:[#allocation2 + $0xe0] sm:$0xff] %v234
  %380 = vst [vmem:[#allocation2 + $0xe8] sm:$0xff] %v236
  %381 = vst [vmem:[#allocation2 + $0xf0] sm:$0xff] %v347
  %382 = vst [vmem:[#allocation2 + $0xf8] sm:$0xff] %v349
  %v383 = vld [vmem:[%s2] sm:$0xff]
  %v384 = vld [vmem:[%s2 + $0x8] sm:$0xff]
  %v385 = vld [vmem:[%s2 + $0x10] sm:$0xff]
  %v386 = vld [vmem:[%s2 + $0x18] sm:$0xff]
  %v387 = vld [vmem:[%s2 + $0x20] sm:$0xff]
  %v388 = vld [vmem:[%s2 + $0x28] sm:$0xff]
  %v389 = vld [vmem:[%s2 + $0x30] sm:$0xff]
  %v390 = vld [vmem:[%s2 + $0x38] sm:$0xff]
  %v391 = vld [vmem:[%s2 + $0x40] sm:$0xff]
  %v392 = vld [vmem:[%s2 + $0x48] sm:$0xff]
  %v393 = vld [vmem:[%s2 + $0x50] sm:$0xff]
  %v394 = vld [vmem:[%s2 + $0x58] sm:$0xff]
  %v395 = vld [vmem:[%s2 + $0x60] sm:$0xff]
  %v396 = vld [vmem:[%s2 + $0x68] sm:$0xff]
  %v397 = vld [vmem:[%s2 + $0x70] sm:$0xff]
  %v398 = vld [vmem:[%s2 + $0x78] sm:$0xff]
  %v399 = vld [vmem:[%s2 + $0x80] sm:$0xff]
  %v400 = vld [vmem:[%s2 + $0x88] sm:$0xff]
  %v401 = vld [vmem:[%s2 + $0x90] sm:$0xff]
  %v402 = vld [vmem:[%s2 + $0x98] sm:$0xff]
  %v403 = vld [vmem:[%s2 + $0xa0] sm:$0xff]
  %v404 = vld [vmem:[%s2 + $0xa8] sm:$0xff]
  %v405 = vld [vmem:[%s2 + $0xb0] sm:$0xff]
  %v406 = vld [vmem:[%s2 + $0xb8] sm:$0xff]
  %v407 = vld [vmem:[%s2 + $0xc0] sm:$0xff]
  %v408 = vld [vmem:[%s2 + $0xc8] sm:$0xff]
  %v409 = vld [vmem:[%s2 + $0xd0] sm:$0xff]
  %v410 = vld [vmem:[%s2 + $0xd8] sm:$0xff]
  %v411 = vld [vmem:[%s2 + $0xe0] sm:$0xff]
  %v412 = vld [vmem:[%s2 + $0xe8] sm:$0xff]
  %v413 = vld [vmem:[%s2 + $0xf0] sm:$0xff]
  %v414 = vld [vmem:[%s2 + $0xf8] sm:$0xff]
  %v415 = vld [vmem:[%s2 + $0x100] sm:$0xff]
  %v416 = vld [vmem:[%s2 + $0x108] sm:$0xff]
  %v417 = vld [vmem:[%s2 + $0x110] sm:$0xff]
  %v418 = vld [vmem:[%s2 + $0x118] sm:$0xff]
  %v419 = vld [vmem:[%s2 + $0x120] sm:$0xff]
  %v420 = vld [vmem:[%s2 + $0x128] sm:$0xff]
  %v421 = vld [vmem:[%s2 + $0x130] sm:$0xff]
  %v422 = vld [vmem:[%s2 + $0x138] sm:$0xff]
  %v423 = vld [vmem:[%s2 + $0x140] sm:$0xff]
  %v424 = vld [vmem:[%s2 + $0x148] sm:$0xff]
  %v425 = vld [vmem:[%s2 + $0x150] sm:$0xff]
  %v426 = vld [vmem:[%s2 + $0x158] sm:$0xff]
  %v427 = vld [vmem:[%s2 + $0x160] sm:$0xff]
  %v428 = vld [vmem:[%s2 + $0x168] sm:$0xff]
  %v429 = vld [vmem:[%s2 + $0x170] sm:$0xff]
  %v430 = vld [vmem:[%s2 + $0x178] sm:$0xff]
  %v431 = vld [vmem:[%s2 + $0x180] sm:$0xff]
  %v432 = vld [vmem:[%s2 + $0x188] sm:$0xff]
  %v433 = vld [vmem:[%s2 + $0x190] sm:$0xff]
  %v434 = vld [vmem:[%s2 + $0x198] sm:$0xff]
  %v435 = vld [vmem:[%s2 + $0x1a0] sm:$0xff]
  %v436 = vld [vmem:[%s2 + $0x1a8] sm:$0xff]
  %v437 = vld [vmem:[%s2 + $0x1b0] sm:$0xff]
  %v438 = vld [vmem:[%s2 + $0x1b8] sm:$0xff]
  %v439 = vld [vmem:[%s2 + $0x1c0] sm:$0xff]
  %v440 = vld [vmem:[%s2 + $0x1c8] sm:$0xff]
  %v441 = vld [vmem:[%s2 + $0x1d0] sm:$0xff]
  %v442 = vld [vmem:[%s2 + $0x1d8] sm:$0xff]
  %v443 = vld [vmem:[%s2 + $0x1e0] sm:$0xff]
  %v444 = vld [vmem:[%s2 + $0x1e8] sm:$0xff]
  %v445 = vld [vmem:[%s2 + $0x1f0] sm:$0xff]
  %v446 = vld [vmem:[%s2 + $0x1f8] sm:$0xff]
  %v447 = vld [vmem:[%s6] sm:$0xff]
  %v448 = vld [vmem:[%s7] sm:$0xff]
  %v449 = vld [vmem:[#allocation2] sm:$0xff]
  %v450 = vld [vmem:[#allocation2 + $0x8] sm:$0xff]
  %v451 = vld [vmem:[#allocation2 + $0x10] sm:$0xff]
  %v452 = vld [vmem:[#allocation2 + $0x18] sm:$0xff]
  %453 = vmatprep.subr.mxu0 %v384
  %454 = vmatpush1.msra.mxu0 %v383
  %455 = vmatprep.subr.mxu0 %v388
  %456 = vmatpush1.msra.mxu0 %v387
  %457 = vmatprep.subr.mxu0 %v392
  %458 = vmatpush1.msra.mxu0 %v391
  %459 = vmatprep.subr.mxu0 %v396
  %460 = vmatpush1.msra.mxu0 %v395
  %461 = vmatprep.subr.mxu0 %v400
  %462 = vmatpush1.msra.mxu0 %v399
  %463 = vmatprep.subr.mxu0 %v404
  %464 = vmatpush1.msra.mxu0 %v403
  %465 = vmatprep.subr.mxu0 %v408
  %466 = vmatpush1.msra.mxu0 %v407
  %467 = vmatprep.subr.mxu0 %v412
  %468 = vmatpush1.msra.mxu0 %v411
  %469 = vmatprep.subr.mxu0 %v416
  %470 = vmatpush1.msra.mxu0 %v415
  %471 = vmatprep.subr.mxu0 %v420
  %472 = vmatpush1.msra.mxu0 %v419
  %473 = vmatprep.subr.mxu0 %v424
  %474 = vmatpush1.msra.mxu0 %v423
  %475 = vmatprep.subr.mxu0 %v428
  %476 = vmatpush1.msra.mxu0 %v427
  %477 = vmatprep.subr.mxu0 %v432
  %478 = vmatpush1.msra.mxu0 %v431
  %479 = vmatprep.subr.mxu0 %v436
  %480 = vmatpush1.msra.mxu0 %v435
  %481 = vmatprep.subr.mxu0 %v440
  %482 = vmatpush1.msra.mxu0 %v439
  %483 = vmatprep.subr.mxu0 %v444
  %484 = vmatpush1.msra.mxu0 %v443
  %485 = vmatprep.subr.mxu0 0.0
  %486 = vmatpush1.msra.mxu0 0.0
  %487 = vmatprep.subr.mxu0 0.0
  %488 = vmatpush1.msra.mxu0 0.0
  %489 = vmatprep.subr.mxu0 0.0
  %490 = vmatpush1.msra.mxu0 0.0
  %491 = vmatprep.subr.mxu0 0.0
  %492 = vmatpush1.msra.mxu0 0.0
  %493 = vmatprep.subr.mxu0 0.0
  %494 = vmatpush1.msra.mxu0 0.0
  %495 = vmatprep.subr.mxu0 0.0
  %496 = vmatpush1.msra.mxu0 0.0
  %497 = vmatprep.subr.mxu0 0.0
  %498 = vmatpush1.msra.mxu0 0.0
  %499 = vmatprep.subr.mxu0 0.0
  %500 = vmatpush1.msra.mxu0 0.0
  %501 = vmatprep.subr.mxu0 0.0
  %502 = vmatpush1.msra.mxu0 0.0
  %503 = vmatprep.subr.mxu0 0.0
  %504 = vmatpush1.msra.mxu0 0.0
  %505 = vmatprep.subr.mxu0 0.0
  %506 = vmatpush1.msra.mxu0 0.0
  %507 = vmatprep.subr.mxu0 0.0
  %508 = vmatpush1.msra.mxu0 0.0
  %509 = vmatprep.subr.mxu0 0.0
  %510 = vmatpush1.msra.mxu0 0.0
  %511 = vmatprep.subr.mxu0 0.0
  %512 = vmatpush1.msra.mxu0 0.0
  %513 = vmatprep.subr.mxu0 0.0
  %514 = vmatpush1.msra.mxu0 0.0
  %515 = vmatprep.subr.mxu0 0.0
  %516 = vmatpush1.msra.mxu0 0.0
  %517 = vmatprep.mubr.f32.mxu0 0.0
  %518 = vmatmul.mubr.f32.gmra.mrb[0].mxu0 %v447
  %v519 = vpop.f32.mrb[0].mxu0
  %v520 = vadd.f32 0.0, %v519
  %v521 = vpop.f32.mrb[0].mxu0
  %v522 = vadd.f32 0.0, %v521
  %523 = vdwg.mxu0
  %524 = vmatprep.subr.mxu0 %v386
  %525 = vmatpush1.msra.mxu0 %v385
  %526 = vmatprep.subr.mxu0 %v390
  %527 = vmatpush1.msra.mxu0 %v389
  %528 = vmatprep.subr.mxu0 %v394
  %529 = vmatpush1.msra.mxu0 %v393
  %530 = vmatprep.subr.mxu0 %v398
  %531 = vmatpush1.msra.mxu0 %v397
  %532 = vmatprep.subr.mxu0 %v402
  %533 = vmatpush1.msra.mxu0 %v401
  %534 = vmatprep.subr.mxu0 %v406
  %535 = vmatpush1.msra.mxu0 %v405
  %536 = vmatprep.subr.mxu0 %v410
  %537 = vmatpush1.msra.mxu0 %v409
  %538 = vmatprep.subr.mxu0 %v414
  %539 = vmatpush1.msra.mxu0 %v413
  %540 = vmatprep.subr.mxu0 %v418
  %541 = vmatpush1.msra.mxu0 %v417
  %542 = vmatprep.subr.mxu0 %v422
  %543 = vmatpush1.msra.mxu0 %v421
  %544 = vmatprep.subr.mxu0 %v426
  %545 = vmatpush1.msra.mxu0 %v425
  %546 = vmatprep.subr.mxu0 %v430
  %547 = vmatpush1.msra.mxu0 %v429
  %548 = vmatprep.subr.mxu0 %v434
  %549 = vmatpush1.msra.mxu0 %v433
  %550 = vmatprep.subr.mxu0 %v438
  %551 = vmatpush1.msra.mxu0 %v437
  %552 = vmatprep.subr.mxu0 %v442
  %553 = vmatpush1.msra.mxu0 %v441
  %554 = vmatprep.subr.mxu0 %v446
  %555 = vmatpush1.msra.mxu0 %v445
  %556 = vmatprep.subr.mxu0 0.0
  %557 = vmatpush1.msra.mxu0 0.0
  %558 = vmatprep.subr.mxu0 0.0
  %559 = vmatpush1.msra.mxu0 0.0
  %560 = vmatprep.subr.mxu0 0.0
  %561 = vmatpush1.msra.mxu0 0.0
  %562 = vmatprep.subr.mxu0 0.0
  %563 = vmatpush1.msra.mxu0 0.0
  %564 = vmatprep.subr.mxu0 0.0
  %565 = vmatpush1.msra.mxu0 0.0
  %566 = vmatprep.subr.mxu0 0.0
  %567 = vmatpush1.msra.mxu0 0.0
  %568 = vmatprep.subr.mxu0 0.0
  %569 = vmatpush1.msra.mxu0 0.0
  %570 = vmatprep.subr.mxu0 0.0
  %571 = vmatpush1.msra.mxu0 0.0
  %572 = vmatprep.subr.mxu0 0.0
  %573 = vmatpush1.msra.mxu0 0.0
  %574 = vmatprep.subr.mxu0 0.0
  %575 = vmatpush1.msra.mxu0 0.0
  %576 = vmatprep.subr.mxu0 0.0
  %577 = vmatpush1.msra.mxu0 0.0
  %578 = vmatprep.subr.mxu0 0.0
  %579 = vmatpush1.msra.mxu0 0.0
  %580 = vmatprep.subr.mxu0 0.0
  %581 = vmatpush1.msra.mxu0 0.0
  %582 = vmatprep.subr.mxu0 0.0
  %583 = vmatpush1.msra.mxu0 0.0
  %584 = vmatprep.subr.mxu0 0.0
  %585 = vmatpush1.msra.mxu0 0.0
  %586 = vmatprep.subr.mxu0 0.0
  %587 = vmatpush1.msra.mxu0 0.0
  %588 = vmatprep.mubr.f32.mxu0 0.0
  %589 = vmatmul.mubr.f32.gmra.mrb[0].mxu0 %v447
  %v590 = vpop.f32.mrb[0].mxu0
  %v591 = vadd.f32 0.0, %v590
  %v592 = vpop.f32.mrb[0].mxu0
  %v593 = vadd.f32 0.0, %v592
  %594 = vdwg.mxu0
  %v595 = vadd.f32 %v449, %v520
  %v596 = vadd.f32 %v450, %v522
  %v597 = vadd.f32 %v451, %v591
  %v598 = vadd.f32 %v452, %v593
  %v599 = vsub.f32 0.0, %v595
  %v600 = vmul.f32 %v599, 1.442695
  %v601 = vpow.pop %v600
  %v602 = vadd.f32 %v601, 1.0
  %v603 = vrcp.pop %v602
  %v604 = vmul.f32 1.0, %v603
  %v605 = vsub.f32 0.0, %v596
  %v606 = vmul.f32 %v605, 1.442695
  %v607 = vpow.pop %v606
  %v608 = vadd.f32 %v607, 1.0
  %v609 = vrcp.pop %v608
  %v610 = vmul.f32 1.0, %v609
  %v611 = vtanh.pop %v597
  %v612 = vsub.f32 0.0, %v598
  %v613 = vmul.f32 %v612, 1.442695
  %v614 = vpow.pop %v613
  %v615 = vadd.f32 %v614, 1.0
  %v616 = vrcp.pop %v615
  %v617 = vmul.f32 1.0, %v616
  %v618 = vmul.f32 %v610, %v448
  %v619 = vmul.f32 %v604, %v611
  %v620 = vadd.f32 %v618, %v619
  %v621 = vtanh.pop %v620
  %v622 = vmul.f32 %v617, %v621
  %v623 = vld [vmem:[%s4] sm:$0xff]
  %v624 = vld [vmem:[%s4 + $0x8] sm:$0xff]
  %v625 = vld [vmem:[%s4 + $0x10] sm:$0xff]
  %v626 = vld [vmem:[%s4 + $0x18] sm:$0xff]
  %v627 = vld [vmem:[%s4 + $0x20] sm:$0xff]
  %v628 = vld [vmem:[%s4 + $0x28] sm:$0xff]
  %v629 = vld [vmem:[%s4 + $0x30] sm:$0xff]
  %v630 = vld [vmem:[%s4 + $0x38] sm:$0xff]
  %v631 = vld [vmem:[%s4 + $0x40] sm:$0xff]
  %v632 = vld [vmem:[%s4 + $0x48] sm:$0xff]
  %v633 = vld [vmem:[%s4 + $0x50] sm:$0xff]
  %v634 = vld [vmem:[%s4 + $0x58] sm:$0xff]
  %v635 = vld [vmem:[%s4 + $0x60] sm:$0xff]
  %v636 = vld [vmem:[%s4 + $0x68] sm:$0xff]
  %v637 = vld [vmem:[%s4 + $0x70] sm:$0xff]
  %v638 = vld [vmem:[%s4 + $0x78] sm:$0xff]
  %s639 = scalar_lea.vmem [#allocation2], 32
  %v640 = vld [vmem:[%s639] sm:$0xff]
  %v641 = vld [vmem:[%s639 + $0x8] sm:$0xff]
  %v642 = vld [vmem:[%s639 + $0x10] sm:$0xff]
  %v643 = vld [vmem:[%s639 + $0x18] sm:$0xff]
  %644 = vmatprep.subr.mxu0 %v384
  %645 = vmatpush1.msra.mxu0 %v383
  %646 = vmatprep.subr.mxu0 %v388
  %647 = vmatpush1.msra.mxu0 %v387
  %648 = vmatprep.subr.mxu0 %v392
  %649 = vmatpush1.msra.mxu0 %v391
  %650 = vmatprep.subr.mxu0 %v396
  %651 = vmatpush1.msra.mxu0 %v395
  %652 = vmatprep.subr.mxu0 %v400
  %653 = vmatpush1.msra.mxu0 %v399
  %654 = vmatprep.subr.mxu0 %v404
  %655 = vmatpush1.msra.mxu0 %v403
  %656 = vmatprep.subr.mxu0 %v408
  %657 = vmatpush1.msra.mxu0 %v407
  %658 = vmatprep.subr.mxu0 %v412
  %659 = vmatpush1.msra.mxu0 %v411
  %660 = vmatprep.subr.mxu0 %v416
  %661 = vmatpush1.msra.mxu0 %v415
  %662 = vmatprep.subr.mxu0 %v420
  %663 = vmatpush1.msra.mxu0 %v419
  %664 = vmatprep.subr.mxu0 %v424
  %665 = vmatpush1.msra.mxu0 %v423
  %666 = vmatprep.subr.mxu0 %v428
  %667 = vmatpush1.msra.mxu0 %v427
  %668 = vmatprep.subr.mxu0 %v432
  %669 = vmatpush1.msra.mxu0 %v431
  %670 = vmatprep.subr.mxu0 %v436
  %671 = vmatpush1.msra.mxu0 %v435
  %672 = vmatprep.subr.mxu0 %v440
  %673 = vmatpush1.msra.mxu0 %v439
  %674 = vmatprep.subr.mxu0 %v444
  %675 = vmatpush1.msra.mxu0 %v443
  %676 = vmatprep.subr.mxu0 0.0
  %677 = vmatpush1.msra.mxu0 0.0
  %678 = vmatprep.subr.mxu0 0.0
  %679 = vmatpush1.msra.mxu0 0.0
  %680 = vmatprep.subr.mxu0 0.0
  %681 = vmatpush1.msra.mxu0 0.0
  %682 = vmatprep.subr.mxu0 0.0
  %683 = vmatpush1.msra.mxu0 0.0
  %684 = vmatprep.subr.mxu0 0.0
  %685 = vmatpush1.msra.mxu0 0.0
  %686 = vmatprep.subr.mxu0 0.0
  %687 = vmatpush1.msra.mxu0 0.0
  %688 = vmatprep.subr.mxu0 0.0
  %689 = vmatpush1.msra.mxu0 0.0
  %690 = vmatprep.subr.mxu0 0.0
  %691 = vmatpush1.msra.mxu0 0.0
  %692 = vmatprep.subr.mxu0 0.0
  %693 = vmatpush1.msra.mxu0 0.0
  %694 = vmatprep.subr.mxu0 0.0
  %695 = vmatpush1.msra.mxu0 0.0
  %696 = vmatprep.subr.mxu0 0.0
  %697 = vmatpush1.msra.mxu0 0.0
  %698 = vmatprep.subr.mxu0 0.0
  %699 = vmatpush1.msra.mxu0 0.0
  %700 = vmatprep.subr.mxu0 0.0
  %701 = vmatpush1.msra.mxu0 0.0
  %702 = vmatprep.subr.mxu0 0.0
  %703 = vmatpush1.msra.mxu0 0.0
  %704 = vmatprep.subr.mxu0 0.0
  %705 = vmatpush1.msra.mxu0 0.0
  %706 = vmatprep.subr.mxu0 0.0
  %707 = vmatpush1.msra.mxu0 0.0
  %708 = vmatprep.mubr.f32.mxu0 0.0
  %709 = vmatmul.mubr.f32.gmra.mrb[0].mxu0 %v622
  %v710 = vpop.f32.mrb[0].mxu0
  %v711 = vadd.f32 0.0, %v710
  %v712 = vpop.f32.mrb[0].mxu0
  %v713 = vadd.f32 0.0, %v712
  %714 = vdwg.mxu0
  %715 = vmatprep.subr.mxu0 %v386
  %716 = vmatpush1.msra.mxu0 %v385
  %717 = vmatprep.subr.mxu0 %v390
  %718 = vmatpush1.msra.mxu0 %v389
  %719 = vmatprep.subr.mxu0 %v394
  %720 = vmatpush1.msra.mxu0 %v393
  %721 = vmatprep.subr.mxu0 %v398
  %722 = vmatpush1.msra.mxu0 %v397
  %723 = vmatprep.subr.mxu0 %v402
  %724 = vmatpush1.msra.mxu0 %v401
  %725 = vmatprep.subr.mxu0 %v406
  %726 = vmatpush1.msra.mxu0 %v405
  %727 = vmatprep.subr.mxu0 %v410
  %728 = vmatpush1.msra.mxu0 %v409
  %729 = vmatprep.subr.mxu0 %v414
  %730 = vmatpush1.msra.mxu0 %v413
  %731 = vmatprep.subr.mxu0 %v418
  %732 = vmatpush1.msra.mxu0 %v417
  %733 = vmatprep.subr.mxu0 %v422
  %734 = vmatpush1.msra.mxu0 %v421
  %735 = vmatprep.subr.mxu0 %v426
  %736 = vmatpush1.msra.mxu0 %v425
  %737 = vmatprep.subr.mxu0 %v430
  %738 = vmatpush1.msra.mxu0 %v429
  %739 = vmatprep.subr.mxu0 %v434
  %740 = vmatpush1.msra.mxu0 %v433
  %741 = vmatprep.subr.mxu0 %v438
  %742 = vmatpush1.msra.mxu0 %v437
  %743 = vmatprep.subr.mxu0 %v442
  %744 = vmatpush1.msra.mxu0 %v441
  %745 = vmatprep.subr.mxu0 %v446
  %746 = vmatpush1.msra.mxu0 %v445
  %747 = vmatprep.subr.mxu0 0.0
  %748 = vmatpush1.msra.mxu0 0.0
  %749 = vmatprep.subr.mxu0 0.0
  %750 = vmatpush1.msra.mxu0 0.0
  %751 = vmatprep.subr.mxu0 0.0
  %752 = vmatpush1.msra.mxu0 0.0
  %753 = vmatprep.subr.mxu0 0.0
  %754 = vmatpush1.msra.mxu0 0.0
  %755 = vmatprep.subr.mxu0 0.0
  %756 = vmatpush1.msra.mxu0 0.0
  %757 = vmatprep.subr.mxu0 0.0
  %758 = vmatpush1.msra.mxu0 0.0
  %759 = vmatprep.subr.mxu0 0.0
  %760 = vmatpush1.msra.mxu0 0.0
  %761 = vmatprep.subr.mxu0 0.0
  %762 = vmatpush1.msra.mxu0 0.0
  %763 = vmatprep.subr.mxu0 0.0
  %764 = vmatpush1.msra.mxu0 0.0
  %765 = vmatprep.subr.mxu0 0.0
  %766 = vmatpush1.msra.mxu0 0.0
  %767 = vmatprep.subr.mxu0 0.0
  %768 = vmatpush1.msra.mxu0 0.0
  %769 = vmatprep.subr.mxu0 0.0
  %770 = vmatpush1.msra.mxu0 0.0
  %771 = vmatprep.subr.mxu0 0.0
  %772 = vmatpush1.msra.mxu0 0.0
  %773 = vmatprep.subr.mxu0 0.0
  %774 = vmatpush1.msra.mxu0 0.0
  %775 = vmatprep.subr.mxu0 0.0
  %776 = vmatpush1.msra.mxu0 0.0
  %777 = vmatprep.subr.mxu0 0.0
  %778 = vmatpush1.msra.mxu0 0.0
  %779 = vmatprep.mubr.f32.mxu0 0.0
  %780 = vmatmul.mubr.f32.gmra.mrb[0].mxu0 %v622
  %v781 = vpop.f32.mrb[0].mxu0
  %v782 = vadd.f32 0.0, %v781
  %v783 = vpop.f32.mrb[0].mxu0
  %v784 = vadd.f32 0.0, %v783
  %785 = vdwg.mxu0
  %v786 = vadd.f32 %v640, %v711
  %v787 = vadd.f32 %v641, %v713
  %v788 = vadd.f32 %v642, %v782
  %v789 = vadd.f32 %v643, %v784
  %v790 = vsub.f32 0.0, %v786
  %v791 = vmul.f32 %v790, 1.442695
  %v792 = vpow.pop %v791
  %v793 = vadd.f32 %v792, 1.0
  %v794 = vrcp.pop %v793
  %v795 = vmul.f32 1.0, %v794
  %v796 = vsub.f32 0.0, %v787
  %v797 = vmul.f32 %v796, 1.442695
  %v798 = vpow.pop %v797
  %v799 = vadd.f32 %v798, 1.0
  %v800 = vrcp.pop %v799
  %v801 = vmul.f32 1.0, %v800
  %v802 = vtanh.pop %v788
  %v803 = vsub.f32 0.0, %v789
  %v804 = vmul.f32 %v803, 1.442695
  %v805 = vpow.pop %v804
  %v806 = vadd.f32 %v805, 1.0
  %v807 = vrcp.pop %v806
  %v808 = vmul.f32 1.0, %v807
  %v809 = vmul.f32 %v801, %v620
  %v810 = vmul.f32 %v795, %v802
  %v811 = vadd.f32 %v809, %v810
  %v812 = vtanh.pop %v811
  %v813 = vmul.f32 %v808, %v812
  %s814 = scalar_lea.vmem %s4, 128
  %v815 = vld [vmem:[%s814] sm:$0xff]
  %v816 = vld [vmem:[%s814 + $0x8] sm:$0xff]
  %v817 = vld [vmem:[%s814 + $0x10] sm:$0xff]
  %v818 = vld [vmem:[%s814 + $0x18] sm:$0xff]
  %v819 = vld [vmem:[%s814 + $0x20] sm:$0xff]
  %v820 = vld [vmem:[%s814 + $0x28] sm:$0xff]
  %v821 = vld [vmem:[%s814 + $0x30] sm:$0xff]
  %v822 = vld [vmem:[%s814 + $0x38] sm:$0xff]
  %v823 = vld [vmem:[%s814 + $0x40] sm:$0xff]
  %v824 = vld [vmem:[%s814 + $0x48] sm:$0xff]
  %v825 = vld [vmem:[%s814 + $0x50] sm:$0xff]
  %v826 = vld [vmem:[%s814 + $0x58] sm:$0xff]
  %v827 = vld [vmem:[%s814 + $0x60] sm:$0xff]
  %v828 = vld [vmem:[%s814 + $0x68] sm:$0xff]
  %v829 = vld [vmem:[%s814 + $0x70] sm:$0xff]
  %v830 = vld [vmem:[%s814 + $0x78] sm:$0xff]
  %831 = vmatprep.subr.mxu0 0.0
  %832 = vmatpush1.msra.mxu0 %v815
  %833 = vmatprep.subr.mxu0 0.0
  %834 = vmatpush1.msra.mxu0 %v816
  %835 = vmatprep.subr.mxu0 0.0
  %836 = vmatpush1.msra.mxu0 %v817
  %837 = vmatprep.subr.mxu0 0.0
  %838 = vmatpush1.msra.mxu0 %v818
  %839 = vmatprep.subr.mxu0 0.0
  %840 = vmatpush1.msra.mxu0 %v819
  %841 = vmatprep.subr.mxu0 0.0
  %842 = vmatpush1.msra.mxu0 %v820
  %843 = vmatprep.subr.mxu0 0.0
  %844 = vmatpush1.msra.mxu0 %v821
  %845 = vmatprep.subr.mxu0 0.0
  %846 = vmatpush1.msra.mxu0 %v822
  %847 = vmatprep.subr.mxu0 0.0
  %848 = vmatpush1.msra.mxu0 %v823
  %849 = vmatprep.subr.mxu0 0.0
  %850 = vmatpush1.msra.mxu0 %v824
  %851 = vmatprep.subr.mxu0 0.0
  %852 = vmatpush1.msra.mxu0 %v825
  %853 = vmatprep.subr.mxu0 0.0
  %854 = vmatpush1.msra.mxu0 %v826
  %855 = vmatprep.subr.mxu0 0.0
  %856 = vmatpush1.msra.mxu0 %v827
  %857 = vmatprep.subr.mxu0 0.0
  %858 = vmatpush1.msra.mxu0 %v828
  %859 = vmatprep.subr.mxu0 0.0
  %860 = vmatpush1.msra.mxu0 %v829
  %861 = vmatprep.subr.mxu0 0.0
  %862 = vmatpush1.msra.mxu0 %v830
  %863 = vmatprep.subr.mxu0 0.0
  %864 = vmatpush1.msra.mxu0 0.0
  %865 = vmatprep.subr.mxu0 0.0
  %866 = vmatpush1.msra.mxu0 0.0
  %867 = vmatprep.subr.mxu0 0.0
  %868 = vmatpush1.msra.mxu0 0.0
  %869 = vmatprep.subr.mxu0 0.0
  %870 = vmatpush1.msra.mxu0 0.0
  %871 = vmatprep.subr.mxu0 0.0
  %872 = vmatpush1.msra.mxu0 0.0
  %873 = vmatprep.subr.mxu0 0.0
  %874 = vmatpush1.msra.mxu0 0.0
  %875 = vmatprep.subr.mxu0 0.0
  %876 = vmatpush1.msra.mxu0 0.0
  %877 = vmatprep.subr.mxu0 0.0
  %878 = vmatpush1.msra.mxu0 0.0
  %879 = vmatprep.subr.mxu0 0.0
  %880 = vmatpush1.msra.mxu0 0.0
  %881 = vmatprep.subr.mxu0 0.0
  %882 = vmatpush1.msra.mxu0 0.0
  %883 = vmatprep.subr.mxu0 0.0
  %884 = vmatpush1.msra.mxu0 0.0
  %885 = vmatprep.subr.mxu0 0.0
  %886 = vmatpush1.msra.mxu0 0.0
  %887 = vmatprep.subr.mxu0 0.0
  %888 = vmatpush1.msra.mxu0 0.0
  %889 = vmatprep.subr.mxu0 0.0
  %890 = vmatpush1.msra.mxu0 0.0
  %891 = vmatprep.subr.mxu0 0.0
  %892 = vmatpush1.msra.mxu0 0.0
  %893 = vmatprep.subr.mxu0 0.0
  %894 = vmatpush1.msra.mxu0 0.0
  %895 = vmatprep.mubr.f32.mxu0 0.0
  %896 = vmatmul.mubr.f32.gmra.mrb[0].mxu0 %v813
  %v897 = vpop.f32.mrb[0].mxu0
  %v898 = vadd.f32 0.0, %v897
  %v899 = vpop.f32.mrb[0].mxu0
  %900 = vdwg.mxu0
  %901 = vmatprep.subr.mxu0 0.0
  %902 = vmatpush1.msra.mxu0 %v623
  %903 = vmatprep.subr.mxu0 0.0
  %904 = vmatpush1.msra.mxu0 %v624
  %905 = vmatprep.subr.mxu0 0.0
  %906 = vmatpush1.msra.mxu0 %v625
  %907 = vmatprep.subr.mxu0 0.0
  %908 = vmatpush1.msra.mxu0 %v626
  %909 = vmatprep.subr.mxu0 0.0
  %910 = vmatpush1.msra.mxu0 %v627
  %911 = vmatprep.subr.mxu0 0.0
  %912 = vmatpush1.msra.mxu0 %v628
  %913 = vmatprep.subr.mxu0 0.0
  %914 = vmatpush1.msra.mxu0 %v629
  %915 = vmatprep.subr.mxu0 0.0
  %916 = vmatpush1.msra.mxu0 %v630
  %917 = vmatprep.subr.mxu0 0.0
  %918 = vmatpush1.msra.mxu0 %v631
  %919 = vmatprep.subr.mxu0 0.0
  %920 = vmatpush1.msra.mxu0 %v632
  %921 = vmatprep.subr.mxu0 0.0
  %922 = vmatpush1.msra.mxu0 %v633
  %923 = vmatprep.subr.mxu0 0.0
  %924 = vmatpush1.msra.mxu0 %v634
  %925 = vmatprep.subr.mxu0 0.0
  %926 = vmatpush1.msra.mxu0 %v635
  %927 = vmatprep.subr.mxu0 0.0
  %928 = vmatpush1.msra.mxu0 %v636
  %929 = vmatprep.subr.mxu0 0.0
  %930 = vmatpush1.msra.mxu0 %v637
  %931 = vmatprep.subr.mxu0 0.0
  %932 = vmatpush1.msra.mxu0 %v638
  %933 = vmatprep.subr.mxu0 0.0
  %934 = vmatpush1.msra.mxu0 0.0
  %935 = vmatprep.subr.mxu0 0.0
  %936 = vmatpush1.msra.mxu0 0.0
  %937 = vmatprep.subr.mxu0 0.0
  %938 = vmatpush1.msra.mxu0 0.0
  %939 = vmatprep.subr.mxu0 0.0
  %940 = vmatpush1.msra.mxu0 0.0
  %941 = vmatprep.subr.mxu0 0.0
  %942 = vmatpush1.msra.mxu0 0.0
  %943 = vmatprep.subr.mxu0 0.0
  %944 = vmatpush1.msra.mxu0 0.0
  %945 = vmatprep.subr.mxu0 0.0
  %946 = vmatpush1.msra.mxu0 0.0
  %947 = vmatprep.subr.mxu0 0.0
  %948 = vmatpush1.msra.mxu0 0.0
  %949 = vmatprep.subr.mxu0 0.0
  %950 = vmatpush1.msra.mxu0 0.0
  %951 = vmatprep.subr.mxu0 0.0
  %952 = vmatpush1.msra.mxu0 0.0
  %953 = vmatprep.subr.mxu0 0.0
  %954 = vmatpush1.msra.mxu0 0.0
  %955 = vmatprep.subr.mxu0 0.0
  %956 = vmatpush1.msra.mxu0 0.0
  %957 = vmatprep.subr.mxu0 0.0
  %958 = vmatpush1.msra.mxu0 0.0
  %959 = vmatprep.subr.mxu0 0.0
  %960 = vmatpush1.msra.mxu0 0.0
  %961 = vmatprep.subr.mxu0 0.0
  %962 = vmatpush1.msra.mxu0 0.0
  %963 = vmatprep.subr.mxu0 0.0
  %964 = vmatpush1.msra.mxu0 0.0
  %965 = vmatprep.mubr.f32.mxu0 0.0
  %966 = vmatmul.mubr.f32.gmra.mrb[0].mxu0 %v622
  %v967 = vpop.f32.mrb[0].mxu0
  %v968 = vadd.f32 %v898, %v967
  %v969 = vpop.f32.mrb[0].mxu0
  %970 = vdwg.mxu0
  %s971 = scalar_lea.vmem [#allocation2], 64
  %v972 = vld [vmem:[%s971] sm:$0xff]
  %v973 = vld [vmem:[%s971 + $0x8] sm:$0xff]
  %v974 = vld [vmem:[%s971 + $0x10] sm:$0xff]
  %v975 = vld [vmem:[%s971 + $0x18] sm:$0xff]
  %976 = vmatprep.subr.mxu0 %v384
  %977 = vmatpush1.msra.mxu0 %v383
  %978 = vmatprep.subr.mxu0 %v388
  %979 = vmatpush1.msra.mxu0 %v387
  %980 = vmatprep.subr.mxu0 %v392
  %981 = vmatpush1.msra.mxu0 %v391
  %982 = vmatprep.subr.mxu0 %v396
  %983 = vmatpush1.msra.mxu0 %v395
  %984 = vmatprep.subr.mxu0 %v400
  %985 = vmatpush1.msra.mxu0 %v399
  %986 = vmatprep.subr.mxu0 %v404
  %987 = vmatpush1.msra.mxu0 %v403
  %988 = vmatprep.subr.mxu0 %v408
  %989 = vmatpush1.msra.mxu0 %v407
  %990 = vmatprep.subr.mxu0 %v412
  %991 = vmatpush1.msra.mxu0 %v411
  %992 = vmatprep.subr.mxu0 %v416
  %993 = vmatpush1.msra.mxu0 %v415
  %994 = vmatprep.subr.mxu0 %v420
  %995 = vmatpush1.msra.mxu0 %v419
  %996 = vmatprep.subr.mxu0 %v424
  %997 = vmatpush1.msra.mxu0 %v423
  %998 = vmatprep.subr.mxu0 %v428
  %999 = vmatpush1.msra.mxu0 %v427
  %1000 = vmatprep.subr.mxu0 %v432
  %1001 = vmatpush1.msra.mxu0 %v431
  %1002 = vmatprep.subr.mxu0 %v436
  %1003 = vmatpush1.msra.mxu0 %v435
  %1004 = vmatprep.subr.mxu0 %v440
  %1005 = vmatpush1.msra.mxu0 %v439
  %1006 = vmatprep.subr.mxu0 %v444
  %1007 = vmatpush1.msra.mxu0 %v443
  %1008 = vmatprep.subr.mxu0 0.0
  %1009 = vmatpush1.msra.mxu0 0.0
  %1010 = vmatprep.subr.mxu0 0.0
  %1011 = vmatpush1.msra.mxu0 0.0
  %1012 = vmatprep.subr.mxu0 0.0
  %1013 = vmatpush1.msra.mxu0 0.0
  %1014 = vmatprep.subr.mxu0 0.0
  %1015 = vmatpush1.msra.mxu0 0.0
  %1016 = vmatprep.subr.mxu0 0.0
  %1017 = vmatpush1.msra.mxu0 0.0
  %1018 = vmatprep.subr.mxu0 0.0
  %1019 = vmatpush1.msra.mxu0 0.0
  %1020 = vmatprep.subr.mxu0 0.0
  %1021 = vmatpush1.msra.mxu0 0.0
  %1022 = vmatprep.subr.mxu0 0.0
  %1023 = vmatpush1.msra.mxu0 0.0
  %1024 = vmatprep.subr.mxu0 0.0
  %1025 = vmatpush1.msra.mxu0 0.0
  %1026 = vmatprep.subr.mxu0 0.0
  %1027 = vmatpush1.msra.mxu0 0.0
  %1028 = vmatprep.subr.mxu0 0.0
  %1029 = vmatpush1.msra.mxu0 0.0
  %1030 = vmatprep.subr.mxu0 0.0
  %1031 = vmatpush1.msra.mxu0 0.0
  %1032 = vmatprep.subr.mxu0 0.0
  %1033 = vmatpush1.msra.mxu0 0.0
  %1034 = vmatprep.subr.mxu0 0.0
  %1035 = vmatpush1.msra.mxu0 0.0
  %1036 = vmatprep.subr.mxu0 0.0
  %1037 = vmatpush1.msra.mxu0 0.0
  %1038 = vmatprep.subr.mxu0 0.0
  %1039 = vmatpush1.msra.mxu0 0.0
  %1040 = vmatprep.mubr.f32.mxu0 0.0
  %1041 = vmatmul.mubr.f32.gmra.mrb[0].mxu0 %v813
  %v1042 = vpop.f32.mrb[0].mxu0
  %v1043 = vadd.f32 0.0, %v1042
  %v1044 = vpop.f32.mrb[0].mxu0
  %v1045 = vadd.f32 0.0, %v1044
  %1046 = vdwg.mxu0
  %1047 = vmatprep.subr.mxu0 %v386
  %1048 = vmatpush1.msra.mxu0 %v385
  %1049 = vmatprep.subr.mxu0 %v390
  %1050 = vmatpush1.msra.mxu0 %v389
  %1051 = vmatprep.subr.mxu0 %v394
  %1052 = vmatpush1.msra.mxu0 %v393
  %1053 = vmatprep.subr.mxu0 %v398
  %1054 = vmatpush1.msra.mxu0 %v397
  %1055 = vmatprep.subr.mxu0 %v402
  %1056 = vmatpush1.msra.mxu0 %v401
  %1057 = vmatprep.subr.mxu0 %v406
  %1058 = vmatpush1.msra.mxu0 %v405
  %1059 = vmatprep.subr.mxu0 %v410
  %1060 = vmatpush1.msra.mxu0 %v409
  %1061 = vmatprep.subr.mxu0 %v414
  %1062 = vmatpush1.msra.mxu0 %v413
  %1063 = vmatprep.subr.mxu0 %v418
  %1064 = vmatpush1.msra.mxu0 %v417
  %1065 = vmatprep.subr.mxu0 %v422
  %1066 = vmatpush1.msra.mxu0 %v421
  %1067 = vmatprep.subr.mxu0 %v426
  %1068 = vmatpush1.msra.mxu0 %v425
  %1069 = vmatprep.subr.mxu0 %v430
  %1070 = vmatpush1.msra.mxu0 %v429
  %1071 = vmatprep.subr.mxu0 %v434
  %1072 = vmatpush1.msra.mxu0 %v433
  %1073 = vmatprep.subr.mxu0 %v438
  %1074 = vmatpush1.msra.mxu0 %v437
  %1075 = vmatprep.subr.mxu0 %v442
  %1076 = vmatpush1.msra.mxu0 %v441
  %1077 = vmatprep.subr.mxu0 %v446
  %1078 = vmatpush1.msra.mxu0 %v445
  %1079 = vmatprep.subr.mxu0 0.0
  %1080 = vmatpush1.msra.mxu0 0.0
  %1081 = vmatprep.subr.mxu0 0.0
  %1082 = vmatpush1.msra.mxu0 0.0
  %1083 = vmatprep.subr.mxu0 0.0
  %1084 = vmatpush1.msra.mxu0 0.0
  %1085 = vmatprep.subr.mxu0 0.0
  %1086 = vmatpush1.msra.mxu0 0.0
  %1087 = vmatprep.subr.mxu0 0.0
  %1088 = vmatpush1.msra.mxu0 0.0
  %1089 = vmatprep.subr.mxu0 0.0
  %1090 = vmatpush1.msra.mxu0 0.0
  %1091 = vmatprep.subr.mxu0 0.0
  %1092 = vmatpush1.msra.mxu0 0.0
  %1093 = vmatprep.subr.mxu0 0.0
  %1094 = vmatpush1.msra.mxu0 0.0
  %1095 = vmatprep.subr.mxu0 0.0
  %1096 = vmatpush1.msra.mxu0 0.0
  %1097 = vmatprep.subr.mxu0 0.0
  %1098 = vmatpush1.msra.mxu0 0.0
  %1099 = vmatprep.subr.mxu0 0.0
  %1100 = vmatpush1.msra.mxu0 0.0
  %1101 = vmatprep.subr.mxu0 0.0
  %1102 = vmatpush1.msra.mxu0 0.0
  %1103 = vmatprep.subr.mxu0 0.0
  %1104 = vmatpush1.msra.mxu0 0.0
  %1105 = vmatprep.subr.mxu0 0.0
  %1106 = vmatpush1.msra.mxu0 0.0
  %1107 = vmatprep.subr.mxu0 0.0
  %1108 = vmatpush1.msra.mxu0 0.0
  %1109 = vmatprep.subr.mxu0 0.0
  %1110 = vmatpush1.msra.mxu0 0.0
  %1111 = vmatprep.mubr.f32.mxu0 0.0
  %1112 = vmatmul.mubr.f32.gmra.mrb[0].mxu0 %v813
  %v1113 = vpop.f32.mrb[0].mxu0
  %v1114 = vadd.f32 0.0, %v1113
  %v1115 = vpop.f32.mrb[0].mxu0
  %v1116 = vadd.f32 0.0, %v1115
  %1117 = vdwg.mxu0
  %v1118 = vadd.f32 %v972, %v1043
  %v1119 = vadd.f32 %v973, %v1045
  %v1120 = vadd.f32 %v974, %v1114
  %v1121 = vadd.f32 %v975, %v1116
  %v1122 = vsub.f32 0.0, %v1118
  %v1123 = vmul.f32 %v1122, 1.442695
  %v1124 = vpow.pop %v1123
  %v1125 = vadd.f32 %v1124, 1.0
  %v1126 = vrcp.pop %v1125
  %v1127 = vmul.f32 1.0, %v1126
  %v1128 = vsub.f32 0.0, %v1119
  %v1129 = vmul.f32 %v1128, 1.442695
  %v1130 = vpow.pop %v1129
  %v1131 = vadd.f32 %v1130, 1.0
  %v1132 = vrcp.pop %v1131
  %v1133 = vmul.f32 1.0, %v1132
  %v1134 = vtanh.pop %v1120
  %v1135 = vsub.f32 0.0, %v1121
  %v1136 = vmul.f32 %v1135, 1.442695
  %v1137 = vpow.pop %v1136
  %v1138 = vadd.f32 %v1137, 1.0
  %v1139 = vrcp.pop %v1138
  %v1140 = vmul.f32 1.0, %v1139
  %v1141 = vmul.f32 %v1133, %v811
  %v1142 = vmul.f32 %v1127, %v1134
  %v1143 = vadd.f32 %v1141, %v1142
  %v1144 = vtanh.pop %v1143
  %v1145 = vmul.f32 %v1140, %v1144
  %s1146 = scalar_lea.vmem %s4, 256
  %v1147 = vld [vmem:[%s1146] sm:$0xff]
  %v1148 = vld [vmem:[%s1146 + $0x8] sm:$0xff]
  %v1149 = vld [vmem:[%s1146 + $0x10] sm:$0xff]
  %v1150 = vld [vmem:[%s1146 + $0x18] sm:$0xff]
  %v1151 = vld [vmem:[%s1146 + $0x20] sm:$0xff]
  %v1152 = vld [vmem:[%s1146 + $0x28] sm:$0xff]
  %v1153 = vld [vmem:[%s1146 + $0x30] sm:$0xff]
  %v1154 = vld [vmem:[%s1146 + $0x38] sm:$0xff]
  %v1155 = vld [vmem:[%s1146 + $0x40] sm:$0xff]
  %v1156 = vld [vmem:[%s1146 + $0x48] sm:$0xff]
  %v1157 = vld [vmem:[%s1146 + $0x50] sm:$0xff]
  %v1158 = vld [vmem:[%s1146 + $0x58] sm:$0xff]
  %v1159 = vld [vmem:[%s1146 + $0x60] sm:$0xff]
  %v1160 = vld [vmem:[%s1146 + $0x68] sm:$0xff]
  %v1161 = vld [vmem:[%s1146 + $0x70] sm:$0xff]
  %v1162 = vld [vmem:[%s1146 + $0x78] sm:$0xff]
  %1163 = vmatprep.subr.mxu0 0.0
  %1164 = vmatpush1.msra.mxu0 %v1147
  %1165 = vmatprep.subr.mxu0 0.0
  %1166 = vmatpush1.msra.mxu0 %v1148
  %1167 = vmatprep.subr.mxu0 0.0
  %1168 = vmatpush1.msra.mxu0 %v1149
  %1169 = vmatprep.subr.mxu0 0.0
  %1170 = vmatpush1.msra.mxu0 %v1150
  %1171 = vmatprep.subr.mxu0 0.0
  %1172 = vmatpush1.msra.mxu0 %v1151
  %1173 = vmatprep.subr.mxu0 0.0
  %1174 = vmatpush1.msra.mxu0 %v1152
  %1175 = vmatprep.subr.mxu0 0.0
  %1176 = vmatpush1.msra.mxu0 %v1153
  %1177 = vmatprep.subr.mxu0 0.0
  %1178 = vmatpush1.msra.mxu0 %v1154
  %1179 = vmatprep.subr.mxu0 0.0
  %1180 = vmatpush1.msra.mxu0 %v1155
  %1181 = vmatprep.subr.mxu0 0.0
  %1182 = vmatpush1.msra.mxu0 %v1156
  %1183 = vmatprep.subr.mxu0 0.0
  %1184 = vmatpush1.msra.mxu0 %v1157
  %1185 = vmatprep.subr.mxu0 0.0
  %1186 = vmatpush1.msra.mxu0 %v1158
  %1187 = vmatprep.subr.mxu0 0.0
  %1188 = vmatpush1.msra.mxu0 %v1159
  %1189 = vmatprep.subr.mxu0 0.0
  %1190 = vmatpush1.msra.mxu0 %v1160
  %1191 = vmatprep.subr.mxu0 0.0
  %1192 = vmatpush1.msra.mxu0 %v1161
  %1193 = vmatprep.subr.mxu0 0.0
  %1194 = vmatpush1.msra.mxu0 %v1162
  %1195 = vmatprep.subr.mxu0 0.0
  %1196 = vmatpush1.msra.mxu0 0.0
  %1197 = vmatprep.subr.mxu0 0.0
  %1198 = vmatpush1.msra.mxu0 0.0
  %1199 = vmatprep.subr.mxu0 0.0
  %1200 = vmatpush1.msra.mxu0 0.0
  %1201 = vmatprep.subr.mxu0 0.0
  %1202 = vmatpush1.msra.mxu0 0.0
  %1203 = vmatprep.subr.mxu0 0.0
  %1204 = vmatpush1.msra.mxu0 0.0
  %1205 = vmatprep.subr.mxu0 0.0
  %1206 = vmatpush1.msra.mxu0 0.0
  %1207 = vmatprep.subr.mxu0 0.0
  %1208 = vmatpush1.msra.mxu0 0.0
  %1209 = vmatprep.subr.mxu0 0.0
  %1210 = vmatpush1.msra.mxu0 0.0
  %1211 = vmatprep.subr.mxu0 0.0
  %1212 = vmatpush1.msra.mxu0 0.0
  %1213 = vmatprep.subr.mxu0 0.0
  %1214 = vmatpush1.msra.mxu0 0.0
  %1215 = vmatprep.subr.mxu0 0.0
  %1216 = vmatpush1.msra.mxu0 0.0
  %1217 = vmatprep.subr.mxu0 0.0
  %1218 = vmatpush1.msra.mxu0 0.0
  %1219 = vmatprep.subr.mxu0 0.0
  %1220 = vmatpush1.msra.mxu0 0.0
  %1221 = vmatprep.subr.mxu0 0.0
  %1222 = vmatpush1.msra.mxu0 0.0
  %1223 = vmatprep.subr.mxu0 0.0
  %1224 = vmatpush1.msra.mxu0 0.0
  %1225 = vmatprep.subr.mxu0 0.0
  %1226 = vmatpush1.msra.mxu0 0.0
  %1227 = vmatprep.mubr.f32.mxu0 0.0
  %1228 = vmatmul.mubr.f32.gmra.mrb[0].mxu0 %v1145
  %v1229 = vpop.f32.mrb[0].mxu0
  %v1230 = vadd.f32 0.0, %v1229
  %v1231 = vpop.f32.mrb[0].mxu0
  %1232 = vdwg.mxu0
  %v1233 = vadd.f32 %v968, %v1230
  %s1234 = scalar_lea.vmem [#allocation2], 96
  %v1235 = vld [vmem:[%s1234] sm:$0xff]
  %v1236 = vld [vmem:[%s1234 + $0x8] sm:$0xff]
  %v1237 = vld [vmem:[%s1234 + $0x10] sm:$0xff]
  %v1238 = vld [vmem:[%s1234 + $0x18] sm:$0xff]
  %1239 = vmatprep.subr.mxu0 %v384
  %1240 = vmatpush1.msra.mxu0 %v383
  %1241 = vmatprep.subr.mxu0 %v388
  %1242 = vmatpush1.msra.mxu0 %v387
  %1243 = vmatprep.subr.mxu0 %v392
  %1244 = vmatpush1.msra.mxu0 %v391
  %1245 = vmatprep.subr.mxu0 %v396
  %1246 = vmatpush1.msra.mxu0 %v395
  %1247 = vmatprep.subr.mxu0 %v400
  %1248 = vmatpush1.msra.mxu0 %v399
  %1249 = vmatprep.subr.mxu0 %v404
  %1250 = vmatpush1.msra.mxu0 %v403
  %1251 = vmatprep.subr.mxu0 %v408
  %1252 = vmatpush1.msra.mxu0 %v407
  %1253 = vmatprep.subr.mxu0 %v412
  %1254 = vmatpush1.msra.mxu0 %v411
  %1255 = vmatprep.subr.mxu0 %v416
  %1256 = vmatpush1.msra.mxu0 %v415
  %1257 = vmatprep.subr.mxu0 %v420
  %1258 = vmatpush1.msra.mxu0 %v419
  %1259 = vmatprep.subr.mxu0 %v424
  %1260 = vmatpush1.msra.mxu0 %v423
  %1261 = vmatprep.subr.mxu0 %v428
  %1262 = vmatpush1.msra.mxu0 %v427
  %1263 = vmatprep.subr.mxu0 %v432
  %1264 = vmatpush1.msra.mxu0 %v431
  %1265 = vmatprep.subr.mxu0 %v436
  %1266 = vmatpush1.msra.mxu0 %v435
  %1267 = vmatprep.subr.mxu0 %v440
  %1268 = vmatpush1.msra.mxu0 %v439
  %1269 = vmatprep.subr.mxu0 %v444
  %1270 = vmatpush1.msra.mxu0 %v443
  %1271 = vmatprep.subr.mxu0 0.0
  %1272 = vmatpush1.msra.mxu0 0.0
  %1273 = vmatprep.subr.mxu0 0.0
  %1274 = vmatpush1.msra.mxu0 0.0
  %1275 = vmatprep.subr.mxu0 0.0
  %1276 = vmatpush1.msra.mxu0 0.0
  %1277 = vmatprep.subr.mxu0 0.0
  %1278 = vmatpush1.msra.mxu0 0.0
  %1279 = vmatprep.subr.mxu0 0.0
  %1280 = vmatpush1.msra.mxu0 0.0
  %1281 = vmatprep.subr.mxu0 0.0
  %1282 = vmatpush1.msra.mxu0 0.0
  %1283 = vmatprep.subr.mxu0 0.0
  %1284 = vmatpush1.msra.mxu0 0.0
  %1285 = vmatprep.subr.mxu0 0.0
  %1286 = vmatpush1.msra.mxu0 0.0
  %1287 = vmatprep.subr.mxu0 0.0
  %1288 = vmatpush1.msra.mxu0 0.0
  %1289 = vmatprep.subr.mxu0 0.0
  %1290 = vmatpush1.msra.mxu0 0.0
  %1291 = vmatprep.subr.mxu0 0.0
  %1292 = vmatpush1.msra.mxu0 0.0
  %1293 = vmatprep.subr.mxu0 0.0
  %1294 = vmatpush1.msra.mxu0 0.0
  %1295 = vmatprep.subr.mxu0 0.0
  %1296 = vmatpush1.msra.mxu0 0.0
  %1297 = vmatprep.subr.mxu0 0.0
  %1298 = vmatpush1.msra.mxu0 0.0
  %1299 = vmatprep.subr.mxu0 0.0
  %1300 = vmatpush1.msra.mxu0 0.0
  %1301 = vmatprep.subr.mxu0 0.0
  %1302 = vmatpush1.msra.mxu0 0.0
  %1303 = vmatprep.mubr.f32.mxu0 0.0
  %1304 = vmatmul.mubr.f32.gmra.mrb[0].mxu0 %v1145
  %v1305 = vpop.f32.mrb[0].mxu0
  %v1306 = vadd.f32 0.0, %v1305
  %v1307 = vpop.f32.mrb[0].mxu0
  %v1308 = vadd.f32 0.0, %v1307
  %1309 = vdwg.mxu0
  %1310 = vmatprep.subr.mxu0 %v386
  %1311 = vmatpush1.msra.mxu0 %v385
  %1312 = vmatprep.subr.mxu0 %v390
  %1313 = vmatpush1.msra.mxu0 %v389
  %1314 = vmatprep.subr.mxu0 %v394
  %1315 = vmatpush1.msra.mxu0 %v393
  %1316 = vmatprep.subr.mxu0 %v398
  %1317 = vmatpush1.msra.mxu0 %v397
  %1318 = vmatprep.subr.mxu0 %v402
  %1319 = vmatpush1.msra.mxu0 %v401
  %1320 = vmatprep.subr.mxu0 %v406
  %1321 = vmatpush1.msra.mxu0 %v405
  %1322 = vmatprep.subr.mxu0 %v410
  %1323 = vmatpush1.msra.mxu0 %v409
  %1324 = vmatprep.subr.mxu0 %v414
  %1325 = vmatpush1.msra.mxu0 %v413
  %1326 = vmatprep.subr.mxu0 %v418
  %1327 = vmatpush1.msra.mxu0 %v417
  %1328 = vmatprep.subr.mxu0 %v422
  %1329 = vmatpush1.msra.mxu0 %v421
  %1330 = vmatprep.subr.mxu0 %v426
  %1331 = vmatpush1.msra.mxu0 %v425
  %1332 = vmatprep.subr.mxu0 %v430
  %1333 = vmatpush1.msra.mxu0 %v429
  %1334 = vmatprep.subr.mxu0 %v434
  %1335 = vmatpush1.msra.mxu0 %v433
  %1336 = vmatprep.subr.mxu0 %v438
  %1337 = vmatpush1.msra.mxu0 %v437
  %1338 = vmatprep.subr.mxu0 %v442
  %1339 = vmatpush1.msra.mxu0 %v441
  %1340 = vmatprep.subr.mxu0 %v446
  %1341 = vmatpush1.msra.mxu0 %v445
  %1342 = vmatprep.subr.mxu0 0.0
  %1343 = vmatpush1.msra.mxu0 0.0
  %1344 = vmatprep.subr.mxu0 0.0
  %1345 = vmatpush1.msra.mxu0 0.0
  %1346 = vmatprep.subr.mxu0 0.0
  %1347 = vmatpush1.msra.mxu0 0.0
  %1348 = vmatprep.subr.mxu0 0.0
  %1349 = vmatpush1.msra.mxu0 0.0
  %1350 = vmatprep.subr.mxu0 0.0
  %1351 = vmatpush1.msra.mxu0 0.0
  %1352 = vmatprep.subr.mxu0 0.0
  %1353 = vmatpush1.msra.mxu0 0.0
  %1354 = vmatprep.subr.mxu0 0.0
  %1355 = vmatpush1.msra.mxu0 0.0
  %1356 = vmatprep.subr.mxu0 0.0
  %1357 = vmatpush1.msra.mxu0 0.0
  %1358 = vmatprep.subr.mxu0 0.0
  %1359 = vmatpush1.msra.mxu0 0.0
  %1360 = vmatprep.subr.mxu0 0.0
  %1361 = vmatpush1.msra.mxu0 0.0
  %1362 = vmatprep.subr.mxu0 0.0
  %1363 = vmatpush1.msra.mxu0 0.0
  %1364 = vmatprep.subr.mxu0 0.0
  %1365 = vmatpush1.msra.mxu0 0.0
  %1366 = vmatprep.subr.mxu0 0.0
  %1367 = vmatpush1.msra.mxu0 0.0
  %1368 = vmatprep.subr.mxu0 0.0
  %1369 = vmatpush1.msra.mxu0 0.0
  %1370 = vmatprep.subr.mxu0 0.0
  %1371 = vmatpush1.msra.mxu0 0.0
  %1372 = vmatprep.subr.mxu0 0.0
  %1373 = vmatpush1.msra.mxu0 0.0
  %1374 = vmatprep.mubr.f32.mxu0 0.0
  %1375 = vmatmul.mubr.f32.gmra.mrb[0].mxu0 %v1145
  %v1376 = vpop.f32.mrb[0].mxu0
  %v1377 = vadd.f32 0.0, %v1376
  %v1378 = vpop.f32.mrb[0].mxu0
  %v1379 = vadd.f32 0.0, %v1378
  %1380 = vdwg.mxu0
  %v1381 = vadd.f32 %v1235, %v1306
  %v1382 = vadd.f32 %v1236, %v1308
  %v1383 = vadd.f32 %v1237, %v1377
  %v1384 = vadd.f32 %v1238, %v1379
  %v1385 = vsub.f32 0.0, %v1381
  %v1386 = vmul.f32 %v1385, 1.442695
  %v1387 = vpow.pop %v1386
  %v1388 = vadd.f32 %v1387, 1.0
  %v1389 = vrcp.pop %v1388
  %v1390 = vmul.f32 1.0, %v1389
  %v1391 = vsub.f32 0.0, %v1382
  %v1392 = vmul.f32 %v1391, 1.442695
  %v1393 = vpow.pop %v1392
  %v1394 = vadd.f32 %v1393, 1.0
  %v1395 = vrcp.pop %v1394
  %v1396 = vmul.f32 1.0, %v1395
  %v1397 = vtanh.pop %v1383
  %v1398 = vsub.f32 0.0, %v1384
  %v1399 = vmul.f32 %v1398, 1.442695
  %v1400 = vpow.pop %v1399
  %v1401 = vadd.f32 %v1400, 1.0
  %v1402 = vrcp.pop %v1401
  %v1403 = vmul.f32 1.0, %v1402
  %v1404 = vmul.f32 %v1396, %v1143
  %v1405 = vmul.f32 %v1390, %v1397
  %v1406 = vadd.f32 %v1404, %v1405
  %v1407 = vtanh.pop %v1406
  %v1408 = vmul.f32 %v1403, %v1407
  %s1409 = scalar_lea.vmem %s4, 384
  %v1410 = vld [vmem:[%s1409] sm:$0xff]
  %v1411 = vld [vmem:[%s1409 + $0x8] sm:$0xff]
  %v1412 = vld [vmem:[%s1409 + $0x10] sm:$0xff]
  %v1413 = vld [vmem:[%s1409 + $0x18] sm:$0xff]
  %v1414 = vld [vmem:[%s1409 + $0x20] sm:$0xff]
  %v1415 = vld [vmem:[%s1409 + $0x28] sm:$0xff]
  %v1416 = vld [vmem:[%s1409 + $0x30] sm:$0xff]
  %v1417 = vld [vmem:[%s1409 + $0x38] sm:$0xff]
  %v1418 = vld [vmem:[%s1409 + $0x40] sm:$0xff]
  %v1419 = vld [vmem:[%s1409 + $0x48] sm:$0xff]
  %v1420 = vld [vmem:[%s1409 + $0x50] sm:$0xff]
  %v1421 = vld [vmem:[%s1409 + $0x58] sm:$0xff]
  %v1422 = vld [vmem:[%s1409 + $0x60] sm:$0xff]
  %v1423 = vld [vmem:[%s1409 + $0x68] sm:$0xff]
  %v1424 = vld [vmem:[%s1409 + $0x70] sm:$0xff]
  %v1425 = vld [vmem:[%s1409 + $0x78] sm:$0xff]
  %1426 = vmatprep.subr.mxu0 0.0
  %1427 = vmatpush1.msra.mxu0 %v1410
  %1428 = vmatprep.subr.mxu0 0.0
  %1429 = vmatpush1.msra.mxu0 %v1411
  %1430 = vmatprep.subr.mxu0 0.0
  %1431 = vmatpush1.msra.mxu0 %v1412
  %1432 = vmatprep.subr.mxu0 0.0
  %1433 = vmatpush1.msra.mxu0 %v1413
  %1434 = vmatprep.subr.mxu0 0.0
  %1435 = vmatpush1.msra.mxu0 %v1414
  %1436 = vmatprep.subr.mxu0 0.0
  %1437 = vmatpush1.msra.mxu0 %v1415
  %1438 = vmatprep.subr.mxu0 0.0
  %1439 = vmatpush1.msra.mxu0 %v1416
  %1440 = vmatprep.subr.mxu0 0.0
  %1441 = vmatpush1.msra.mxu0 %v1417
  %1442 = vmatprep.subr.mxu0 0.0
  %1443 = vmatpush1.msra.mxu0 %v1418
  %1444 = vmatprep.subr.mxu0 0.0
  %1445 = vmatpush1.msra.mxu0 %v1419
  %1446 = vmatprep.subr.mxu0 0.0
  %1447 = vmatpush1.msra.mxu0 %v1420
  %1448 = vmatprep.subr.mxu0 0.0
  %1449 = vmatpush1.msra.mxu0 %v1421
  %1450 = vmatprep.subr.mxu0 0.0
  %1451 = vmatpush1.msra.mxu0 %v1422
  %1452 = vmatprep.subr.mxu0 0.0
  %1453 = vmatpush1.msra.mxu0 %v1423
  %1454 = vmatprep.subr.mxu0 0.0
  %1455 = vmatpush1.msra.mxu0 %v1424
  %1456 = vmatprep.subr.mxu0 0.0
  %1457 = vmatpush1.msra.mxu0 %v1425
  %1458 = vmatprep.subr.mxu0 0.0
  %1459 = vmatpush1.msra.mxu0 0.0
  %1460 = vmatprep.subr.mxu0 0.0
  %1461 = vmatpush1.msra.mxu0 0.0
  %1462 = vmatprep.subr.mxu0 0.0
  %1463 = vmatpush1.msra.mxu0 0.0
  %1464 = vmatprep.subr.mxu0 0.0
  %1465 = vmatpush1.msra.mxu0 0.0
  %1466 = vmatprep.subr.mxu0 0.0
  %1467 = vmatpush1.msra.mxu0 0.0
  %1468 = vmatprep.subr.mxu0 0.0
  %1469 = vmatpush1.msra.mxu0 0.0
  %1470 = vmatprep.subr.mxu0 0.0
  %1471 = vmatpush1.msra.mxu0 0.0
  %1472 = vmatprep.subr.mxu0 0.0
  %1473 = vmatpush1.msra.mxu0 0.0
  %1474 = vmatprep.subr.mxu0 0.0
  %1475 = vmatpush1.msra.mxu0 0.0
  %1476 = vmatprep.subr.mxu0 0.0
  %1477 = vmatpush1.msra.mxu0 0.0
  %1478 = vmatprep.subr.mxu0 0.0
  %1479 = vmatpush1.msra.mxu0 0.0
  %1480 = vmatprep.subr.mxu0 0.0
  %1481 = vmatpush1.msra.mxu0 0.0
  %1482 = vmatprep.subr.mxu0 0.0
  %1483 = vmatpush1.msra.mxu0 0.0
  %1484 = vmatprep.subr.mxu0 0.0
  %1485 = vmatpush1.msra.mxu0 0.0
  %1486 = vmatprep.subr.mxu0 0.0
  %1487 = vmatpush1.msra.mxu0 0.0
  %1488 = vmatprep.subr.mxu0 0.0
  %1489 = vmatpush1.msra.mxu0 0.0
  %1490 = vmatprep.mubr.f32.mxu0 0.0
  %1491 = vmatmul.mubr.f32.gmra.mrb[0].mxu0 %v1408
  %v1492 = vpop.f32.mrb[0].mxu0
  %v1493 = vadd.f32 0.0, %v1492
  %v1494 = vpop.f32.mrb[0].mxu0
  %1495 = vdwg.mxu0
  %v1496 = vadd.f32 %v1233, %v1493
  %s1497 = scalar_lea.vmem [#allocation2], 128
  %v1498 = vld [vmem:[%s1497] sm:$0xff]
  %v1499 = vld [vmem:[%s1497 + $0x8] sm:$0xff]
  %v1500 = vld [vmem:[%s1497 + $0x10] sm:$0xff]
  %v1501 = vld [vmem:[%s1497 + $0x18] sm:$0xff]
  %1502 = vmatprep.subr.mxu0 %v384
  %1503 = vmatpush1.msra.mxu0 %v383
  %1504 = vmatprep.subr.mxu0 %v388
  %1505 = vmatpush1.msra.mxu0 %v387
  %1506 = vmatprep.subr.mxu0 %v392
  %1507 = vmatpush1.msra.mxu0 %v391
  %1508 = vmatprep.subr.mxu0 %v396
  %1509 = vmatpush1.msra.mxu0 %v395
  %1510 = vmatprep.subr.mxu0 %v400
  %1511 = vmatpush1.msra.mxu0 %v399
  %1512 = vmatprep.subr.mxu0 %v404
  %1513 = vmatpush1.msra.mxu0 %v403
  %1514 = vmatprep.subr.mxu0 %v408
  %1515 = vmatpush1.msra.mxu0 %v407
  %1516 = vmatprep.subr.mxu0 %v412
  %1517 = vmatpush1.msra.mxu0 %v411
  %1518 = vmatprep.subr.mxu0 %v416
  %1519 = vmatpush1.msra.mxu0 %v415
  %1520 = vmatprep.subr.mxu0 %v420
  %1521 = vmatpush1.msra.mxu0 %v419
  %1522 = vmatprep.subr.mxu0 %v424
  %1523 = vmatpush1.msra.mxu0 %v423
  %1524 = vmatprep.subr.mxu0 %v428
  %1525 = vmatpush1.msra.mxu0 %v427
  %1526 = vmatprep.subr.mxu0 %v432
  %1527 = vmatpush1.msra.mxu0 %v431
  %1528 = vmatprep.subr.mxu0 %v436
  %1529 = vmatpush1.msra.mxu0 %v435
  %1530 = vmatprep.subr.mxu0 %v440
  %1531 = vmatpush1.msra.mxu0 %v439
  %1532 = vmatprep.subr.mxu0 %v444
  %1533 = vmatpush1.msra.mxu0 %v443
  %1534 = vmatprep.subr.mxu0 0.0
  %1535 = vmatpush1.msra.mxu0 0.0
  %1536 = vmatprep.subr.mxu0 0.0
  %1537 = vmatpush1.msra.mxu0 0.0
  %1538 = vmatprep.subr.mxu0 0.0
  %1539 = vmatpush1.msra.mxu0 0.0
  %1540 = vmatprep.subr.mxu0 0.0
  %1541 = vmatpush1.msra.mxu0 0.0
  %1542 = vmatprep.subr.mxu0 0.0
  %1543 = vmatpush1.msra.mxu0 0.0
  %1544 = vmatprep.subr.mxu0 0.0
  %1545 = vmatpush1.msra.mxu0 0.0
  %1546 = vmatprep.subr.mxu0 0.0
  %1547 = vmatpush1.msra.mxu0 0.0
  %1548 = vmatprep.subr.mxu0 0.0
  %1549 = vmatpush1.msra.mxu0 0.0
  %1550 = vmatprep.subr.mxu0 0.0
  %1551 = vmatpush1.msra.mxu0 0.0
  %1552 = vmatprep.subr.mxu0 0.0
  %1553 = vmatpush1.msra.mxu0 0.0
  %1554 = vmatprep.subr.mxu0 0.0
  %1555 = vmatpush1.msra.mxu0 0.0
  %1556 = vmatprep.subr.mxu0 0.0
  %1557 = vmatpush1.msra.mxu0 0.0
  %1558 = vmatprep.subr.mxu0 0.0
  %1559 = vmatpush1.msra.mxu0 0.0
  %1560 = vmatprep.subr.mxu0 0.0
  %1561 = vmatpush1.msra.mxu0 0.0
  %1562 = vmatprep.subr.mxu0 0.0
  %1563 = vmatpush1.msra.mxu0 0.0
  %1564 = vmatprep.subr.mxu0 0.0
  %1565 = vmatpush1.msra.mxu0 0.0
  %1566 = vmatprep.mubr.f32.mxu0 0.0
  %1567 = vmatmul.mubr.f32.gmra.mrb[0].mxu0 %v1408
  %v1568 = vpop.f32.mrb[0].mxu0
  %v1569 = vadd.f32 0.0, %v1568
  %v1570 = vpop.f32.mrb[0].mxu0
  %v1571 = vadd.f32 0.0, %v1570
  %1572 = vdwg.mxu0
  %1573 = vmatprep.subr.mxu0 %v386
  %1574 = vmatpush1.msra.mxu0 %v385
  %1575 = vmatprep.subr.mxu0 %v390
  %1576 = vmatpush1.msra.mxu0 %v389
  %1577 = vmatprep.subr.mxu0 %v394
  %1578 = vmatpush1.msra.mxu0 %v393
  %1579 = vmatprep.subr.mxu0 %v398
  %1580 = vmatpush1.msra.mxu0 %v397
  %1581 = vmatprep.subr.mxu0 %v402
  %1582 = vmatpush1.msra.mxu0 %v401
  %1583 = vmatprep.subr.mxu0 %v406
  %1584 = vmatpush1.msra.mxu0 %v405
  %1585 = vmatprep.subr.mxu0 %v410
  %1586 = vmatpush1.msra.mxu0 %v409
  %1587 = vmatprep.subr.mxu0 %v414
  %1588 = vmatpush1.msra.mxu0 %v413
  %1589 = vmatprep.subr.mxu0 %v418
  %1590 = vmatpush1.msra.mxu0 %v417
  %1591 = vmatprep.subr.mxu0 %v422
  %1592 = vmatpush1.msra.mxu0 %v421
  %1593 = vmatprep.subr.mxu0 %v426
  %1594 = vmatpush1.msra.mxu0 %v425
  %1595 = vmatprep.subr.mxu0 %v430
  %1596 = vmatpush1.msra.mxu0 %v429
  %1597 = vmatprep.subr.mxu0 %v434
  %1598 = vmatpush1.msra.mxu0 %v433
  %1599 = vmatprep.subr.mxu0 %v438
  %1600 = vmatpush1.msra.mxu0 %v437
  %1601 = vmatprep.subr.mxu0 %v442
  %1602 = vmatpush1.msra.mxu0 %v441
  %1603 = vmatprep.subr.mxu0 %v446
  %1604 = vmatpush1.msra.mxu0 %v445
  %1605 = vmatprep.subr.mxu0 0.0
  %1606 = vmatpush1.msra.mxu0 0.0
  %1607 = vmatprep.subr.mxu0 0.0
  %1608 = vmatpush1.msra.mxu0 0.0
  %1609 = vmatprep.subr.mxu0 0.0
  %1610 = vmatpush1.msra.mxu0 0.0
  %1611 = vmatprep.subr.mxu0 0.0
  %1612 = vmatpush1.msra.mxu0 0.0
  %1613 = vmatprep.subr.mxu0 0.0
  %1614 = vmatpush1.msra.mxu0 0.0
  %1615 = vmatprep.subr.mxu0 0.0
  %1616 = vmatpush1.msra.mxu0 0.0
  %1617 = vmatprep.subr.mxu0 0.0
  %1618 = vmatpush1.msra.mxu0 0.0
  %1619 = vmatprep.subr.mxu0 0.0
  %1620 = vmatpush1.msra.mxu0 0.0
  %1621 = vmatprep.subr.mxu0 0.0
  %1622 = vmatpush1.msra.mxu0 0.0
  %1623 = vmatprep.subr.mxu0 0.0
  %1624 = vmatpush1.msra.mxu0 0.0
  %1625 = vmatprep.subr.mxu0 0.0
  %1626 = vmatpush1.msra.mxu0 0.0
  %1627 = vmatprep.subr.mxu0 0.0
  %1628 = vmatpush1.msra.mxu0 0.0
  %1629 = vmatprep.subr.mxu0 0.0
  %1630 = vmatpush1.msra.mxu0 0.0
  %1631 = vmatprep.subr.mxu0 0.0
  %1632 = vmatpush1.msra.mxu0 0.0
  %1633 = vmatprep.subr.mxu0 0.0
  %1634 = vmatpush1.msra.mxu0 0.0
  %1635 = vmatprep.subr.mxu0 0.0
  %1636 = vmatpush1.msra.mxu0 0.0
  %1637 = vmatprep.mubr.f32.mxu0 0.0
  %1638 = vmatmul.mubr.f32.gmra.mrb[0].mxu0 %v1408
  %v1639 = vpop.f32.mrb[0].mxu0
  %v1640 = vadd.f32 0.0, %v1639
  %v1641 = vpop.f32.mrb[0].mxu0
  %v1642 = vadd.f32 0.0, %v1641
  %1643 = vdwg.mxu0
  %v1644 = vadd.f32 %v1498, %v1569
  %v1645 = vadd.f32 %v1499, %v1571
  %v1646 = vadd.f32 %v1500, %v1640
  %v1647 = vadd.f32 %v1501, %v1642
  %v1648 = vsub.f32 0.0, %v1644
  %v1649 = vmul.f32 %v1648, 1.442695
  %v1650 = vpow.pop %v1649
  %v1651 = vadd.f32 %v1650, 1.0
  %v1652 = vrcp.pop %v1651
  %v1653 = vmul.f32 1.0, %v1652
  %v1654 = vsub.f32 0.0, %v1645
  %v1655 = vmul.f32 %v1654, 1.442695
  %v1656 = vpow.pop %v1655
  %v1657 = vadd.f32 %v1656, 1.0
  %v1658 = vrcp.pop %v1657
  %v1659 = vmul.f32 1.0, %v1658
  %v1660 = vtanh.pop %v1646
  %v1661 = vsub.f32 0.0, %v1647
  %v1662 = vmul.f32 %v1661, 1.442695
  %v1663 = vpow.pop %v1662
  %v1664 = vadd.f32 %v1663, 1.0
  %v1665 = vrcp.pop %v1664
  %v1666 = vmul.f32 1.0, %v1665
  %v1667 = vmul.f32 %v1659, %v1406
  %v1668 = vmul.f32 %v1653, %v1660
  %v1669 = vadd.f32 %v1667, %v1668
  %v1670 = vtanh.pop %v1669
  %v1671 = vmul.f32 %v1666, %v1670
  %s1672 = scalar_lea.vmem %s4, 512
  %v1673 = vld [vmem:[%s1672] sm:$0xff]
  %v1674 = vld [vmem:[%s1672 + $0x8] sm:$0xff]
  %v1675 = vld [vmem:[%s1672 + $0x10] sm:$0xff]
  %v1676 = vld [vmem:[%s1672 + $0x18] sm:$0xff]
  %v1677 = vld [vmem:[%s1672 + $0x20] sm:$0xff]
  %v1678 = vld [vmem:[%s1672 + $0x28] sm:$0xff]
  %v1679 = vld [vmem:[%s1672 + $0x30] sm:$0xff]
  %v1680 = vld [vmem:[%s1672 + $0x38] sm:$0xff]
  %v1681 = vld [vmem:[%s1672 + $0x40] sm:$0xff]
  %v1682 = vld [vmem:[%s1672 + $0x48] sm:$0xff]
  %v1683 = vld [vmem:[%s1672 + $0x50] sm:$0xff]
  %v1684 = vld [vmem:[%s1672 + $0x58] sm:$0xff]
  %v1685 = vld [vmem:[%s1672 + $0x60] sm:$0xff]
  %v1686 = vld [vmem:[%s1672 + $0x68] sm:$0xff]
  %v1687 = vld [vmem:[%s1672 + $0x70] sm:$0xff]
  %v1688 = vld [vmem:[%s1672 + $0x78] sm:$0xff]
  %1689 = vmatprep.subr.mxu0 0.0
  %1690 = vmatpush1.msra.mxu0 %v1673
  %1691 = vmatprep.subr.mxu0 0.0
  %1692 = vmatpush1.msra.mxu0 %v1674
  %1693 = vmatprep.subr.mxu0 0.0
  %1694 = vmatpush1.msra.mxu0 %v1675
  %1695 = vmatprep.subr.mxu0 0.0
  %1696 = vmatpush1.msra.mxu0 %v1676
  %1697 = vmatprep.subr.mxu0 0.0
  %1698 = vmatpush1.msra.mxu0 %v1677
  %1699 = vmatprep.subr.mxu0 0.0
  %1700 = vmatpush1.msra.mxu0 %v1678
  %1701 = vmatprep.subr.mxu0 0.0
  %1702 = vmatpush1.msra.mxu0 %v1679
  %1703 = vmatprep.subr.mxu0 0.0
  %1704 = vmatpush1.msra.mxu0 %v1680
  %1705 = vmatprep.subr.mxu0 0.0
  %1706 = vmatpush1.msra.mxu0 %v1681
  %1707 = vmatprep.subr.mxu0 0.0
  %1708 = vmatpush1.msra.mxu0 %v1682
  %1709 = vmatprep.subr.mxu0 0.0
  %1710 = vmatpush1.msra.mxu0 %v1683
  %1711 = vmatprep.subr.mxu0 0.0
  %1712 = vmatpush1.msra.mxu0 %v1684
  %1713 = vmatprep.subr.mxu0 0.0
  %1714 = vmatpush1.msra.mxu0 %v1685
  %1715 = vmatprep.subr.mxu0 0.0
  %1716 = vmatpush1.msra.mxu0 %v1686
  %1717 = vmatprep.subr.mxu0 0.0
  %1718 = vmatpush1.msra.mxu0 %v1687
  %1719 = vmatprep.subr.mxu0 0.0
  %1720 = vmatpush1.msra.mxu0 %v1688
  %1721 = vmatprep.subr.mxu0 0.0
  %1722 = vmatpush1.msra.mxu0 0.0
  %1723 = vmatprep.subr.mxu0 0.0
  %1724 = vmatpush1.msra.mxu0 0.0
  %1725 = vmatprep.subr.mxu0 0.0
  %1726 = vmatpush1.msra.mxu0 0.0
  %1727 = vmatprep.subr.mxu0 0.0
  %1728 = vmatpush1.msra.mxu0 0.0
  %1729 = vmatprep.subr.mxu0 0.0
  %1730 = vmatpush1.msra.mxu0 0.0
  %1731 = vmatprep.subr.mxu0 0.0
  %1732 = vmatpush1.msra.mxu0 0.0
  %1733 = vmatprep.subr.mxu0 0.0
  %1734 = vmatpush1.msra.mxu0 0.0
  %1735 = vmatprep.subr.mxu0 0.0
  %1736 = vmatpush1.msra.mxu0 0.0
  %1737 = vmatprep.subr.mxu0 0.0
  %1738 = vmatpush1.msra.mxu0 0.0
  %1739 = vmatprep.subr.mxu0 0.0
  %1740 = vmatpush1.msra.mxu0 0.0
  %1741 = vmatprep.subr.mxu0 0.0
  %1742 = vmatpush1.msra.mxu0 0.0
  %1743 = vmatprep.subr.mxu0 0.0
  %1744 = vmatpush1.msra.mxu0 0.0
  %1745 = vmatprep.subr.mxu0 0.0
  %1746 = vmatpush1.msra.mxu0 0.0
  %1747 = vmatprep.subr.mxu0 0.0
  %1748 = vmatpush1.msra.mxu0 0.0
  %1749 = vmatprep.subr.mxu0 0.0
  %1750 = vmatpush1.msra.mxu0 0.0
  %1751 = vmatprep.subr.mxu0 0.0
  %1752 = vmatpush1.msra.mxu0 0.0
  %1753 = vmatprep.mubr.f32.mxu0 0.0
  %1754 = vmatmul.mubr.f32.gmra.mrb[0].mxu0 %v1671
  %v1755 = vpop.f32.mrb[0].mxu0
  %v1756 = vadd.f32 0.0, %v1755
  %v1757 = vpop.f32.mrb[0].mxu0
  %1758 = vdwg.mxu0
  %v1759 = vadd.f32 %v1496, %v1756
  %s1760 = scalar_lea.vmem [#allocation2], 160
  %v1761 = vld [vmem:[%s1760] sm:$0xff]
  %v1762 = vld [vmem:[%s1760 + $0x8] sm:$0xff]
  %v1763 = vld [vmem:[%s1760 + $0x10] sm:$0xff]
  %v1764 = vld [vmem:[%s1760 + $0x18] sm:$0xff]
  %1765 = vmatprep.subr.mxu0 %v384
  %1766 = vmatpush1.msra.mxu0 %v383
  %1767 = vmatprep.subr.mxu0 %v388
  %1768 = vmatpush1.msra.mxu0 %v387
  %1769 = vmatprep.subr.mxu0 %v392
  %1770 = vmatpush1.msra.mxu0 %v391
  %1771 = vmatprep.subr.mxu0 %v396
  %1772 = vmatpush1.msra.mxu0 %v395
  %1773 = vmatprep.subr.mxu0 %v400
  %1774 = vmatpush1.msra.mxu0 %v399
  %1775 = vmatprep.subr.mxu0 %v404
  %1776 = vmatpush1.msra.mxu0 %v403
  %1777 = vmatprep.subr.mxu0 %v408
  %1778 = vmatpush1.msra.mxu0 %v407
  %1779 = vmatprep.subr.mxu0 %v412
  %1780 = vmatpush1.msra.mxu0 %v411
  %1781 = vmatprep.subr.mxu0 %v416
  %1782 = vmatpush1.msra.mxu0 %v415
  %1783 = vmatprep.subr.mxu0 %v420
  %1784 = vmatpush1.msra.mxu0 %v419
  %1785 = vmatprep.subr.mxu0 %v424
  %1786 = vmatpush1.msra.mxu0 %v423
  %1787 = vmatprep.subr.mxu0 %v428
  %1788 = vmatpush1.msra.mxu0 %v427
  %1789 = vmatprep.subr.mxu0 %v432
  %1790 = vmatpush1.msra.mxu0 %v431
  %1791 = vmatprep.subr.mxu0 %v436
  %1792 = vmatpush1.msra.mxu0 %v435
  %1793 = vmatprep.subr.mxu0 %v440
  %1794 = vmatpush1.msra.mxu0 %v439
  %1795 = vmatprep.subr.mxu0 %v444
  %1796 = vmatpush1.msra.mxu0 %v443
  %1797 = vmatprep.subr.mxu0 0.0
  %1798 = vmatpush1.msra.mxu0 0.0
  %1799 = vmatprep.subr.mxu0 0.0
  %1800 = vmatpush1.msra.mxu0 0.0
  %1801 = vmatprep.subr.mxu0 0.0
  %1802 = vmatpush1.msra.mxu0 0.0
  %1803 = vmatprep.subr.mxu0 0.0
  %1804 = vmatpush1.msra.mxu0 0.0
  %1805 = vmatprep.subr.mxu0 0.0
  %1806 = vmatpush1.msra.mxu0 0.0
  %1807 = vmatprep.subr.mxu0 0.0
  %1808 = vmatpush1.msra.mxu0 0.0
  %1809 = vmatprep.subr.mxu0 0.0
  %1810 = vmatpush1.msra.mxu0 0.0
  %1811 = vmatprep.subr.mxu0 0.0
  %1812 = vmatpush1.msra.mxu0 0.0
  %1813 = vmatprep.subr.mxu0 0.0
  %1814 = vmatpush1.msra.mxu0 0.0
  %1815 = vmatprep.subr.mxu0 0.0
  %1816 = vmatpush1.msra.mxu0 0.0
  %1817 = vmatprep.subr.mxu0 0.0
  %1818 = vmatpush1.msra.mxu0 0.0
  %1819 = vmatprep.subr.mxu0 0.0
  %1820 = vmatpush1.msra.mxu0 0.0
  %1821 = vmatprep.subr.mxu0 0.0
  %1822 = vmatpush1.msra.mxu0 0.0
  %1823 = vmatprep.subr.mxu0 0.0
  %1824 = vmatpush1.msra.mxu0 0.0
  %1825 = vmatprep.subr.mxu0 0.0
  %1826 = vmatpush1.msra.mxu0 0.0
  %1827 = vmatprep.subr.mxu0 0.0
  %1828 = vmatpush1.msra.mxu0 0.0
  %1829 = vmatprep.mubr.f32.mxu0 0.0
  %1830 = vmatmul.mubr.f32.gmra.mrb[0].mxu0 %v1671
  %v1831 = vpop.f32.mrb[0].mxu0
  %v1832 = vadd.f32 0.0, %v1831
  %v1833 = vpop.f32.mrb[0].mxu0
  %v1834 = vadd.f32 0.0, %v1833
  %1835 = vdwg.mxu0
  %1836 = vmatprep.subr.mxu0 %v386
  %1837 = vmatpush1.msra.mxu0 %v385
  %1838 = vmatprep.subr.mxu0 %v390
  %1839 = vmatpush1.msra.mxu0 %v389
  %1840 = vmatprep.subr.mxu0 %v394
  %1841 = vmatpush1.msra.mxu0 %v393
  %1842 = vmatprep.subr.mxu0 %v398
  %1843 = vmatpush1.msra.mxu0 %v397
  %1844 = vmatprep.subr.mxu0 %v402
  %1845 = vmatpush1.msra.mxu0 %v401
  %1846 = vmatprep.subr.mxu0 %v406
  %1847 = vmatpush1.msra.mxu0 %v405
  %1848 = vmatprep.subr.mxu0 %v410
  %1849 = vmatpush1.msra.mxu0 %v409
  %1850 = vmatprep.subr.mxu0 %v414
  %1851 = vmatpush1.msra.mxu0 %v413
  %1852 = vmatprep.subr.mxu0 %v418
  %1853 = vmatpush1.msra.mxu0 %v417
  %1854 = vmatprep.subr.mxu0 %v422
  %1855 = vmatpush1.msra.mxu0 %v421
  %1856 = vmatprep.subr.mxu0 %v426
  %1857 = vmatpush1.msra.mxu0 %v425
  %1858 = vmatprep.subr.mxu0 %v430
  %1859 = vmatpush1.msra.mxu0 %v429
  %1860 = vmatprep.subr.mxu0 %v434
  %1861 = vmatpush1.msra.mxu0 %v433
  %1862 = vmatprep.subr.mxu0 %v438
  %1863 = vmatpush1.msra.mxu0 %v437
  %1864 = vmatprep.subr.mxu0 %v442
  %1865 = vmatpush1.msra.mxu0 %v441
  %1866 = vmatprep.subr.mxu0 %v446
  %1867 = vmatpush1.msra.mxu0 %v445
  %1868 = vmatprep.subr.mxu0 0.0
  %1869 = vmatpush1.msra.mxu0 0.0
  %1870 = vmatprep.subr.mxu0 0.0
  %1871 = vmatpush1.msra.mxu0 0.0
  %1872 = vmatprep.subr.mxu0 0.0
  %1873 = vmatpush1.msra.mxu0 0.0
  %1874 = vmatprep.subr.mxu0 0.0
  %1875 = vmatpush1.msra.mxu0 0.0
  %1876 = vmatprep.subr.mxu0 0.0
  %1877 = vmatpush1.msra.mxu0 0.0
  %1878 = vmatprep.subr.mxu0 0.0
  %1879 = vmatpush1.msra.mxu0 0.0
  %1880 = vmatprep.subr.mxu0 0.0
  %1881 = vmatpush1.msra.mxu0 0.0
  %1882 = vmatprep.subr.mxu0 0.0
  %1883 = vmatpush1.msra.mxu0 0.0
  %1884 = vmatprep.subr.mxu0 0.0
  %1885 = vmatpush1.msra.mxu0 0.0
  %1886 = vmatprep.subr.mxu0 0.0
  %1887 = vmatpush1.msra.mxu0 0.0
  %1888 = vmatprep.subr.mxu0 0.0
  %1889 = vmatpush1.msra.mxu0 0.0
  %1890 = vmatprep.subr.mxu0 0.0
  %1891 = vmatpush1.msra.mxu0 0.0
  %1892 = vmatprep.subr.mxu0 0.0
  %1893 = vmatpush1.msra.mxu0 0.0
  %1894 = vmatprep.subr.mxu0 0.0
  %1895 = vmatpush1.msra.mxu0 0.0
  %1896 = vmatprep.subr.mxu0 0.0
  %1897 = vmatpush1.msra.mxu0 0.0
  %1898 = vmatprep.subr.mxu0 0.0
  %1899 = vmatpush1.msra.mxu0 0.0
  %1900 = vmatprep.mubr.f32.mxu0 0.0
  %1901 = vmatmul.mubr.f32.gmra.mrb[0].mxu0 %v1671
  %v1902 = vpop.f32.mrb[0].mxu0
  %v1903 = vadd.f32 0.0, %v1902
  %v1904 = vpop.f32.mrb[0].mxu0
  %v1905 = vadd.f32 0.0, %v1904
  %1906 = vdwg.mxu0
  %v1907 = vadd.f32 %v1761, %v1832
  %v1908 = vadd.f32 %v1762, %v1834
  %v1909 = vadd.f32 %v1763, %v1903
  %v1910 = vadd.f32 %v1764, %v1905
  %v1911 = vsub.f32 0.0, %v1907
  %v1912 = vmul.f32 %v1911, 1.442695
  %v1913 = vpow.pop %v1912
  %v1914 = vadd.f32 %v1913, 1.0
  %v1915 = vrcp.pop %v1914
  %v1916 = vmul.f32 1.0, %v1915
  %v1917 = vsub.f32 0.0, %v1908
  %v1918 = vmul.f32 %v1917, 1.442695
  %v1919 = vpow.pop %v1918
  %v1920 = vadd.f32 %v1919, 1.0
  %v1921 = vrcp.pop %v1920
  %v1922 = vmul.f32 1.0, %v1921
  %v1923 = vtanh.pop %v1909
  %v1924 = vsub.f32 0.0, %v1910
  %v1925 = vmul.f32 %v1924, 1.442695
  %v1926 = vpow.pop %v1925
  %v1927 = vadd.f32 %v1926, 1.0
  %v1928 = vrcp.pop %v1927
  %v1929 = vmul.f32 1.0, %v1928
  %v1930 = vmul.f32 %v1922, %v1669
  %v1931 = vmul.f32 %v1916, %v1923
  %v1932 = vadd.f32 %v1930, %v1931
  %v1933 = vtanh.pop %v1932
  %v1934 = vmul.f32 %v1929, %v1933
  %s1935 = scalar_lea.vmem %s4, 640
  %v1936 = vld [vmem:[%s1935] sm:$0xff]
  %v1937 = vld [vmem:[%s1935 + $0x8] sm:$0xff]
  %v1938 = vld [vmem:[%s1935 + $0x10] sm:$0xff]
  %v1939 = vld [vmem:[%s1935 + $0x18] sm:$0xff]
  %v1940 = vld [vmem:[%s1935 + $0x20] sm:$0xff]
  %v1941 = vld [vmem:[%s1935 + $0x28] sm:$0xff]
  %v1942 = vld [vmem:[%s1935 + $0x30] sm:$0xff]
  %v1943 = vld [vmem:[%s1935 + $0x38] sm:$0xff]
  %v1944 = vld [vmem:[%s1935 + $0x40] sm:$0xff]
  %v1945 = vld [vmem:[%s1935 + $0x48] sm:$0xff]
  %v1946 = vld [vmem:[%s1935 + $0x50] sm:$0xff]
  %v1947 = vld [vmem:[%s1935 + $0x58] sm:$0xff]
  %v1948 = vld [vmem:[%s1935 + $0x60] sm:$0xff]
  %v1949 = vld [vmem:[%s1935 + $0x68] sm:$0xff]
  %v1950 = vld [vmem:[%s1935 + $0x70] sm:$0xff]
  %v1951 = vld [vmem:[%s1935 + $0x78] sm:$0xff]
  %1952 = vmatprep.subr.mxu0 0.0
  %1953 = vmatpush1.msra.mxu0 %v1936
  %1954 = vmatprep.subr.mxu0 0.0
  %1955 = vmatpush1.msra.mxu0 %v1937
  %1956 = vmatprep.subr.mxu0 0.0
  %1957 = vmatpush1.msra.mxu0 %v1938
  %1958 = vmatprep.subr.mxu0 0.0
  %1959 = vmatpush1.msra.mxu0 %v1939
  %1960 = vmatprep.subr.mxu0 0.0
  %1961 = vmatpush1.msra.mxu0 %v1940
  %1962 = vmatprep.subr.mxu0 0.0
  %1963 = vmatpush1.msra.mxu0 %v1941
  %1964 = vmatprep.subr.mxu0 0.0
  %1965 = vmatpush1.msra.mxu0 %v1942
  %1966 = vmatprep.subr.mxu0 0.0
  %1967 = vmatpush1.msra.mxu0 %v1943
  %1968 = vmatprep.subr.mxu0 0.0
  %1969 = vmatpush1.msra.mxu0 %v1944
  %1970 = vmatprep.subr.mxu0 0.0
  %1971 = vmatpush1.msra.mxu0 %v1945
  %1972 = vmatprep.subr.mxu0 0.0
  %1973 = vmatpush1.msra.mxu0 %v1946
  %1974 = vmatprep.subr.mxu0 0.0
  %1975 = vmatpush1.msra.mxu0 %v1947
  %1976 = vmatprep.subr.mxu0 0.0
  %1977 = vmatpush1.msra.mxu0 %v1948
  %1978 = vmatprep.subr.mxu0 0.0
  %1979 = vmatpush1.msra.mxu0 %v1949
  %1980 = vmatprep.subr.mxu0 0.0
  %1981 = vmatpush1.msra.mxu0 %v1950
  %1982 = vmatprep.subr.mxu0 0.0
  %1983 = vmatpush1.msra.mxu0 %v1951
  %1984 = vmatprep.subr.mxu0 0.0
  %1985 = vmatpush1.msra.mxu0 0.0
  %1986 = vmatprep.subr.mxu0 0.0
  %1987 = vmatpush1.msra.mxu0 0.0
  %1988 = vmatprep.subr.mxu0 0.0
  %1989 = vmatpush1.msra.mxu0 0.0
  %1990 = vmatprep.subr.mxu0 0.0
  %1991 = vmatpush1.msra.mxu0 0.0
  %1992 = vmatprep.subr.mxu0 0.0
  %1993 = vmatpush1.msra.mxu0 0.0
  %1994 = vmatprep.subr.mxu0 0.0
  %1995 = vmatpush1.msra.mxu0 0.0
  %1996 = vmatprep.subr.mxu0 0.0
  %1997 = vmatpush1.msra.mxu0 0.0
  %1998 = vmatprep.subr.mxu0 0.0
  %1999 = vmatpush1.msra.mxu0 0.0
  %2000 = vmatprep.subr.mxu0 0.0
  %2001 = vmatpush1.msra.mxu0 0.0
  %2002 = vmatprep.subr.mxu0 0.0
  %2003 = vmatpush1.msra.mxu0 0.0
  %2004 = vmatprep.subr.mxu0 0.0
  %2005 = vmatpush1.msra.mxu0 0.0
  %2006 = vmatprep.subr.mxu0 0.0
  %2007 = vmatpush1.msra.mxu0 0.0
  %2008 = vmatprep.subr.mxu0 0.0
  %2009 = vmatpush1.msra.mxu0 0.0
  %2010 = vmatprep.subr.mxu0 0.0
  %2011 = vmatpush1.msra.mxu0 0.0
  %2012 = vmatprep.subr.mxu0 0.0
  %2013 = vmatpush1.msra.mxu0 0.0
  %2014 = vmatprep.subr.mxu0 0.0
  %2015 = vmatpush1.msra.mxu0 0.0
  %2016 = vmatprep.mubr.f32.mxu0 0.0
  %2017 = vmatmul.mubr.f32.gmra.mrb[0].mxu0 %v1934
  %v2018 = vpop.f32.mrb[0].mxu0
  %v2019 = vadd.f32 0.0, %v2018
  %v2020 = vpop.f32.mrb[0].mxu0
  %2021 = vdwg.mxu0
  %v2022 = vadd.f32 %v1759, %v2019
  %s2023 = scalar_lea.vmem [#allocation2], 192
  %v2024 = vld [vmem:[%s2023] sm:$0xff]
  %v2025 = vld [vmem:[%s2023 + $0x8] sm:$0xff]
  %v2026 = vld [vmem:[%s2023 + $0x10] sm:$0xff]
  %v2027 = vld [vmem:[%s2023 + $0x18] sm:$0xff]
  %2028 = vmatprep.subr.mxu0 %v384
  %2029 = vmatpush1.msra.mxu0 %v383
  %2030 = vmatprep.subr.mxu0 %v388
  %2031 = vmatpush1.msra.mxu0 %v387
  %2032 = vmatprep.subr.mxu0 %v392
  %2033 = vmatpush1.msra.mxu0 %v391
  %2034 = vmatprep.subr.mxu0 %v396
  %2035 = vmatpush1.msra.mxu0 %v395
  %2036 = vmatprep.subr.mxu0 %v400
  %2037 = vmatpush1.msra.mxu0 %v399
  %2038 = vmatprep.subr.mxu0 %v404
  %2039 = vmatpush1.msra.mxu0 %v403
  %2040 = vmatprep.subr.mxu0 %v408
  %2041 = vmatpush1.msra.mxu0 %v407
  %2042 = vmatprep.subr.mxu0 %v412
  %2043 = vmatpush1.msra.mxu0 %v411
  %2044 = vmatprep.subr.mxu0 %v416
  %2045 = vmatpush1.msra.mxu0 %v415
  %2046 = vmatprep.subr.mxu0 %v420
  %2047 = vmatpush1.msra.mxu0 %v419
  %2048 = vmatprep.subr.mxu0 %v424
  %2049 = vmatpush1.msra.mxu0 %v423
  %2050 = vmatprep.subr.mxu0 %v428
  %2051 = vmatpush1.msra.mxu0 %v427
  %2052 = vmatprep.subr.mxu0 %v432
  %2053 = vmatpush1.msra.mxu0 %v431
  %2054 = vmatprep.subr.mxu0 %v436
  %2055 = vmatpush1.msra.mxu0 %v435
  %2056 = vmatprep.subr.mxu0 %v440
  %2057 = vmatpush1.msra.mxu0 %v439
  %2058 = vmatprep.subr.mxu0 %v444
  %2059 = vmatpush1.msra.mxu0 %v443
  %2060 = vmatprep.subr.mxu0 0.0
  %2061 = vmatpush1.msra.mxu0 0.0
  %2062 = vmatprep.subr.mxu0 0.0
  %2063 = vmatpush1.msra.mxu0 0.0
  %2064 = vmatprep.subr.mxu0 0.0
  %2065 = vmatpush1.msra.mxu0 0.0
  %2066 = vmatprep.subr.mxu0 0.0
  %2067 = vmatpush1.msra.mxu0 0.0
  %2068 = vmatprep.subr.mxu0 0.0
  %2069 = vmatpush1.msra.mxu0 0.0
  %2070 = vmatprep.subr.mxu0 0.0
  %2071 = vmatpush1.msra.mxu0 0.0
  %2072 = vmatprep.subr.mxu0 0.0
  %2073 = vmatpush1.msra.mxu0 0.0
  %2074 = vmatprep.subr.mxu0 0.0
  %2075 = vmatpush1.msra.mxu0 0.0
  %2076 = vmatprep.subr.mxu0 0.0
  %2077 = vmatpush1.msra.mxu0 0.0
  %2078 = vmatprep.subr.mxu0 0.0
  %2079 = vmatpush1.msra.mxu0 0.0
  %2080 = vmatprep.subr.mxu0 0.0
  %2081 = vmatpush1.msra.mxu0 0.0
  %2082 = vmatprep.subr.mxu0 0.0
  %2083 = vmatpush1.msra.mxu0 0.0
  %2084 = vmatprep.subr.mxu0 0.0
  %2085 = vmatpush1.msra.mxu0 0.0
  %2086 = vmatprep.subr.mxu0 0.0
  %2087 = vmatpush1.msra.mxu0 0.0
  %2088 = vmatprep.subr.mxu0 0.0
  %2089 = vmatpush1.msra.mxu0 0.0
  %2090 = vmatprep.subr.mxu0 0.0
  %2091 = vmatpush1.msra.mxu0 0.0
  %2092 = vmatprep.mubr.f32.mxu0 0.0
  %2093 = vmatmul.mubr.f32.gmra.mrb[0].mxu0 %v1934
  %v2094 = vpop.f32.mrb[0].mxu0
  %v2095 = vadd.f32 0.0, %v2094
  %v2096 = vpop.f32.mrb[0].mxu0
  %v2097 = vadd.f32 0.0, %v2096
  %2098 = vdwg.mxu0
  %2099 = vmatprep.subr.mxu0 %v386
  %2100 = vmatpush1.msra.mxu0 %v385
  %2101 = vmatprep.subr.mxu0 %v390
  %2102 = vmatpush1.msra.mxu0 %v389
  %2103 = vmatprep.subr.mxu0 %v394
  %2104 = vmatpush1.msra.mxu0 %v393
  %2105 = vmatprep.subr.mxu0 %v398
  %2106 = vmatpush1.msra.mxu0 %v397
  %2107 = vmatprep.subr.mxu0 %v402
  %2108 = vmatpush1.msra.mxu0 %v401
  %2109 = vmatprep.subr.mxu0 %v406
  %2110 = vmatpush1.msra.mxu0 %v405
  %2111 = vmatprep.subr.mxu0 %v410
  %2112 = vmatpush1.msra.mxu0 %v409
  %2113 = vmatprep.subr.mxu0 %v414
  %2114 = vmatpush1.msra.mxu0 %v413
  %2115 = vmatprep.subr.mxu0 %v418
  %2116 = vmatpush1.msra.mxu0 %v417
  %2117 = vmatprep.subr.mxu0 %v422
  %2118 = vmatpush1.msra.mxu0 %v421
  %2119 = vmatprep.subr.mxu0 %v426
  %2120 = vmatpush1.msra.mxu0 %v425
  %2121 = vmatprep.subr.mxu0 %v430
  %2122 = vmatpush1.msra.mxu0 %v429
  %2123 = vmatprep.subr.mxu0 %v434
  %2124 = vmatpush1.msra.mxu0 %v433
  %2125 = vmatprep.subr.mxu0 %v438
  %2126 = vmatpush1.msra.mxu0 %v437
  %2127 = vmatprep.subr.mxu0 %v442
  %2128 = vmatpush1.msra.mxu0 %v441
  %2129 = vmatprep.subr.mxu0 %v446
  %2130 = vmatpush1.msra.mxu0 %v445
  %2131 = vmatprep.subr.mxu0 0.0
  %2132 = vmatpush1.msra.mxu0 0.0
  %2133 = vmatprep.subr.mxu0 0.0
  %2134 = vmatpush1.msra.mxu0 0.0
  %2135 = vmatprep.subr.mxu0 0.0
  %2136 = vmatpush1.msra.mxu0 0.0
  %2137 = vmatprep.subr.mxu0 0.0
  %2138 = vmatpush1.msra.mxu0 0.0
  %2139 = vmatprep.subr.mxu0 0.0
  %2140 = vmatpush1.msra.mxu0 0.0
  %2141 = vmatprep.subr.mxu0 0.0
  %2142 = vmatpush1.msra.mxu0 0.0
  %2143 = vmatprep.subr.mxu0 0.0
  %2144 = vmatpush1.msra.mxu0 0.0
  %2145 = vmatprep.subr.mxu0 0.0
  %2146 = vmatpush1.msra.mxu0 0.0
  %2147 = vmatprep.subr.mxu0 0.0
  %2148 = vmatpush1.msra.mxu0 0.0
  %2149 = vmatprep.subr.mxu0 0.0
  %2150 = vmatpush1.msra.mxu0 0.0
  %2151 = vmatprep.subr.mxu0 0.0
  %2152 = vmatpush1.msra.mxu0 0.0
  %2153 = vmatprep.subr.mxu0 0.0
  %2154 = vmatpush1.msra.mxu0 0.0
  %2155 = vmatprep.subr.mxu0 0.0
  %2156 = vmatpush1.msra.mxu0 0.0
  %2157 = vmatprep.subr.mxu0 0.0
  %2158 = vmatpush1.msra.mxu0 0.0
  %2159 = vmatprep.subr.mxu0 0.0
  %2160 = vmatpush1.msra.mxu0 0.0
  %2161 = vmatprep.subr.mxu0 0.0
  %2162 = vmatpush1.msra.mxu0 0.0
  %2163 = vmatprep.mubr.f32.mxu0 0.0
  %2164 = vmatmul.mubr.f32.gmra.mrb[0].mxu0 %v1934
  %v2165 = vpop.f32.mrb[0].mxu0
  %v2166 = vadd.f32 0.0, %v2165
  %v2167 = vpop.f32.mrb[0].mxu0
  %v2168 = vadd.f32 0.0, %v2167
  %2169 = vdwg.mxu0
  %v2170 = vadd.f32 %v2024, %v2095
  %v2171 = vadd.f32 %v2025, %v2097
  %v2172 = vadd.f32 %v2026, %v2166
  %v2173 = vadd.f32 %v2027, %v2168
  %v2174 = vsub.f32 0.0, %v2170
  %v2175 = vmul.f32 %v2174, 1.442695
  %v2176 = vpow.pop %v2175
  %v2177 = vadd.f32 %v2176, 1.0
  %v2178 = vrcp.pop %v2177
  %v2179 = vmul.f32 1.0, %v2178
  %v2180 = vsub.f32 0.0, %v2171
  %v2181 = vmul.f32 %v2180, 1.442695
  %v2182 = vpow.pop %v2181
  %v2183 = vadd.f32 %v2182, 1.0
  %v2184 = vrcp.pop %v2183
  %v2185 = vmul.f32 1.0, %v2184
  %v2186 = vtanh.pop %v2172
  %v2187 = vsub.f32 0.0, %v2173
  %v2188 = vmul.f32 %v2187, 1.442695
  %v2189 = vpow.pop %v2188
  %v2190 = vadd.f32 %v2189, 1.0
  %v2191 = vrcp.pop %v2190
  %v2192 = vmul.f32 1.0, %v2191
  %v2193 = vmul.f32 %v2185, %v1932
  %v2194 = vmul.f32 %v2179, %v2186
  %v2195 = vadd.f32 %v2193, %v2194
  %v2196 = vtanh.pop %v2195
  %v2197 = vmul.f32 %v2192, %v2196
  %s2198 = scalar_lea.vmem %s4, 768
  %v2199 = vld [vmem:[%s2198] sm:$0xff]
  %v2200 = vld [vmem:[%s2198 + $0x8] sm:$0xff]
  %v2201 = vld [vmem:[%s2198 + $0x10] sm:$0xff]
  %v2202 = vld [vmem:[%s2198 + $0x18] sm:$0xff]
  %v2203 = vld [vmem:[%s2198 + $0x20] sm:$0xff]
  %v2204 = vld [vmem:[%s2198 + $0x28] sm:$0xff]
  %v2205 = vld [vmem:[%s2198 + $0x30] sm:$0xff]
  %v2206 = vld [vmem:[%s2198 + $0x38] sm:$0xff]
  %v2207 = vld [vmem:[%s2198 + $0x40] sm:$0xff]
  %v2208 = vld [vmem:[%s2198 + $0x48] sm:$0xff]
  %v2209 = vld [vmem:[%s2198 + $0x50] sm:$0xff]
  %v2210 = vld [vmem:[%s2198 + $0x58] sm:$0xff]
  %v2211 = vld [vmem:[%s2198 + $0x60] sm:$0xff]
  %v2212 = vld [vmem:[%s2198 + $0x68] sm:$0xff]
  %v2213 = vld [vmem:[%s2198 + $0x70] sm:$0xff]
  %v2214 = vld [vmem:[%s2198 + $0x78] sm:$0xff]
  %2215 = vmatprep.subr.mxu0 0.0
  %2216 = vmatpush1.msra.mxu0 %v2199
  %2217 = vmatprep.subr.mxu0 0.0
  %2218 = vmatpush1.msra.mxu0 %v2200
  %2219 = vmatprep.subr.mxu0 0.0
  %2220 = vmatpush1.msra.mxu0 %v2201
  %2221 = vmatprep.subr.mxu0 0.0
  %2222 = vmatpush1.msra.mxu0 %v2202
  %2223 = vmatprep.subr.mxu0 0.0
  %2224 = vmatpush1.msra.mxu0 %v2203
  %2225 = vmatprep.subr.mxu0 0.0
  %2226 = vmatpush1.msra.mxu0 %v2204
  %2227 = vmatprep.subr.mxu0 0.0
  %2228 = vmatpush1.msra.mxu0 %v2205
  %2229 = vmatprep.subr.mxu0 0.0
  %2230 = vmatpush1.msra.mxu0 %v2206
  %2231 = vmatprep.subr.mxu0 0.0
  %2232 = vmatpush1.msra.mxu0 %v2207
  %2233 = vmatprep.subr.mxu0 0.0
  %2234 = vmatpush1.msra.mxu0 %v2208
  %2235 = vmatprep.subr.mxu0 0.0
  %2236 = vmatpush1.msra.mxu0 %v2209
  %2237 = vmatprep.subr.mxu0 0.0
  %2238 = vmatpush1.msra.mxu0 %v2210
  %2239 = vmatprep.subr.mxu0 0.0
  %2240 = vmatpush1.msra.mxu0 %v2211
  %2241 = vmatprep.subr.mxu0 0.0
  %2242 = vmatpush1.msra.mxu0 %v2212
  %2243 = vmatprep.subr.mxu0 0.0
  %2244 = vmatpush1.msra.mxu0 %v2213
  %2245 = vmatprep.subr.mxu0 0.0
  %2246 = vmatpush1.msra.mxu0 %v2214
  %2247 = vmatprep.subr.mxu0 0.0
  %2248 = vmatpush1.msra.mxu0 0.0
  %2249 = vmatprep.subr.mxu0 0.0
  %2250 = vmatpush1.msra.mxu0 0.0
  %2251 = vmatprep.subr.mxu0 0.0
  %2252 = vmatpush1.msra.mxu0 0.0
  %2253 = vmatprep.subr.mxu0 0.0
  %2254 = vmatpush1.msra.mxu0 0.0
  %2255 = vmatprep.subr.mxu0 0.0
  %2256 = vmatpush1.msra.mxu0 0.0
  %2257 = vmatprep.subr.mxu0 0.0
  %2258 = vmatpush1.msra.mxu0 0.0
  %2259 = vmatprep.subr.mxu0 0.0
  %2260 = vmatpush1.msra.mxu0 0.0
  %2261 = vmatprep.subr.mxu0 0.0
  %2262 = vmatpush1.msra.mxu0 0.0
  %2263 = vmatprep.subr.mxu0 0.0
  %2264 = vmatpush1.msra.mxu0 0.0
  %2265 = vmatprep.subr.mxu0 0.0
  %2266 = vmatpush1.msra.mxu0 0.0
  %2267 = vmatprep.subr.mxu0 0.0
  %2268 = vmatpush1.msra.mxu0 0.0
  %2269 = vmatprep.subr.mxu0 0.0
  %2270 = vmatpush1.msra.mxu0 0.0
  %2271 = vmatprep.subr.mxu0 0.0
  %2272 = vmatpush1.msra.mxu0 0.0
  %2273 = vmatprep.subr.mxu0 0.0
  %2274 = vmatpush1.msra.mxu0 0.0
  %2275 = vmatprep.subr.mxu0 0.0
  %2276 = vmatpush1.msra.mxu0 0.0
  %2277 = vmatprep.subr.mxu0 0.0
  %2278 = vmatpush1.msra.mxu0 0.0
  %2279 = vmatprep.mubr.f32.mxu0 0.0
  %2280 = vmatmul.mubr.f32.gmra.mrb[0].mxu0 %v2197
  %v2281 = vpop.f32.mrb[0].mxu0
  %v2282 = vadd.f32 0.0, %v2281
  %v2283 = vpop.f32.mrb[0].mxu0
  %2284 = vdwg.mxu0
  %v2285 = vadd.f32 %v2022, %v2282
  %s2286 = scalar_lea.vmem [#allocation2], 224
  %v2287 = vld [vmem:[%s2286] sm:$0xff]
  %v2288 = vld [vmem:[%s2286 + $0x8] sm:$0xff]
  %v2289 = vld [vmem:[%s2286 + $0x10] sm:$0xff]
  %v2290 = vld [vmem:[%s2286 + $0x18] sm:$0xff]
  %2291 = vmatprep.subr.mxu0 %v384
  %2292 = vmatpush1.msra.mxu0 %v383
  %2293 = vmatprep.subr.mxu0 %v388
  %2294 = vmatpush1.msra.mxu0 %v387
  %2295 = vmatprep.subr.mxu0 %v392
  %2296 = vmatpush1.msra.mxu0 %v391
  %2297 = vmatprep.subr.mxu0 %v396
  %2298 = vmatpush1.msra.mxu0 %v395
  %2299 = vmatprep.subr.mxu0 %v400
  %2300 = vmatpush1.msra.mxu0 %v399
  %2301 = vmatprep.subr.mxu0 %v404
  %2302 = vmatpush1.msra.mxu0 %v403
  %2303 = vmatprep.subr.mxu0 %v408
  %2304 = vmatpush1.msra.mxu0 %v407
  %2305 = vmatprep.subr.mxu0 %v412
  %2306 = vmatpush1.msra.mxu0 %v411
  %2307 = vmatprep.subr.mxu0 %v416
  %2308 = vmatpush1.msra.mxu0 %v415
  %2309 = vmatprep.subr.mxu0 %v420
  %2310 = vmatpush1.msra.mxu0 %v419
  %2311 = vmatprep.subr.mxu0 %v424
  %2312 = vmatpush1.msra.mxu0 %v423
  %2313 = vmatprep.subr.mxu0 %v428
  %2314 = vmatpush1.msra.mxu0 %v427
  %2315 = vmatprep.subr.mxu0 %v432
  %2316 = vmatpush1.msra.mxu0 %v431
  %2317 = vmatprep.subr.mxu0 %v436
  %2318 = vmatpush1.msra.mxu0 %v435
  %2319 = vmatprep.subr.mxu0 %v440
  %2320 = vmatpush1.msra.mxu0 %v439
  %2321 = vmatprep.subr.mxu0 %v444
  %2322 = vmatpush1.msra.mxu0 %v443
  %2323 = vmatprep.subr.mxu0 0.0
  %2324 = vmatpush1.msra.mxu0 0.0
  %2325 = vmatprep.subr.mxu0 0.0
  %2326 = vmatpush1.msra.mxu0 0.0
  %2327 = vmatprep.subr.mxu0 0.0
  %2328 = vmatpush1.msra.mxu0 0.0
  %2329 = vmatprep.subr.mxu0 0.0
  %2330 = vmatpush1.msra.mxu0 0.0
  %2331 = vmatprep.subr.mxu0 0.0
  %2332 = vmatpush1.msra.mxu0 0.0
  %2333 = vmatprep.subr.mxu0 0.0
  %2334 = vmatpush1.msra.mxu0 0.0
  %2335 = vmatprep.subr.mxu0 0.0
  %2336 = vmatpush1.msra.mxu0 0.0
  %2337 = vmatprep.subr.mxu0 0.0
  %2338 = vmatpush1.msra.mxu0 0.0
  %2339 = vmatprep.subr.mxu0 0.0
  %2340 = vmatpush1.msra.mxu0 0.0
  %2341 = vmatprep.subr.mxu0 0.0
  %2342 = vmatpush1.msra.mxu0 0.0
  %2343 = vmatprep.subr.mxu0 0.0
  %2344 = vmatpush1.msra.mxu0 0.0
  %2345 = vmatprep.subr.mxu0 0.0
  %2346 = vmatpush1.msra.mxu0 0.0
  %2347 = vmatprep.subr.mxu0 0.0
  %2348 = vmatpush1.msra.mxu0 0.0
  %2349 = vmatprep.subr.mxu0 0.0
  %2350 = vmatpush1.msra.mxu0 0.0
  %2351 = vmatprep.subr.mxu0 0.0
  %2352 = vmatpush1.msra.mxu0 0.0
  %2353 = vmatprep.subr.mxu0 0.0
  %2354 = vmatpush1.msra.mxu0 0.0
  %2355 = vmatprep.mubr.f32.mxu0 0.0
  %2356 = vmatmul.mubr.f32.gmra.mrb[0].mxu0 %v2197
  %v2357 = vpop.f32.mrb[0].mxu0
  %v2358 = vadd.f32 0.0, %v2357
  %v2359 = vpop.f32.mrb[0].mxu0
  %v2360 = vadd.f32 0.0, %v2359
  %2361 = vdwg.mxu0
  %2362 = vmatprep.subr.mxu0 %v386
  %2363 = vmatpush1.msra.mxu0 %v385
  %2364 = vmatprep.subr.mxu0 %v390
  %2365 = vmatpush1.msra.mxu0 %v389
  %2366 = vmatprep.subr.mxu0 %v394
  %2367 = vmatpush1.msra.mxu0 %v393
  %2368 = vmatprep.subr.mxu0 %v398
  %2369 = vmatpush1.msra.mxu0 %v397
  %2370 = vmatprep.subr.mxu0 %v402
  %2371 = vmatpush1.msra.mxu0 %v401
  %2372 = vmatprep.subr.mxu0 %v406
  %2373 = vmatpush1.msra.mxu0 %v405
  %2374 = vmatprep.subr.mxu0 %v410
  %2375 = vmatpush1.msra.mxu0 %v409
  %2376 = vmatprep.subr.mxu0 %v414
  %2377 = vmatpush1.msra.mxu0 %v413
  %2378 = vmatprep.subr.mxu0 %v418
  %2379 = vmatpush1.msra.mxu0 %v417
  %2380 = vmatprep.subr.mxu0 %v422
  %2381 = vmatpush1.msra.mxu0 %v421
  %2382 = vmatprep.subr.mxu0 %v426
  %2383 = vmatpush1.msra.mxu0 %v425
  %2384 = vmatprep.subr.mxu0 %v430
  %2385 = vmatpush1.msra.mxu0 %v429
  %2386 = vmatprep.subr.mxu0 %v434
  %2387 = vmatpush1.msra.mxu0 %v433
  %2388 = vmatprep.subr.mxu0 %v438
  %2389 = vmatpush1.msra.mxu0 %v437
  %2390 = vmatprep.subr.mxu0 %v442
  %2391 = vmatpush1.msra.mxu0 %v441
  %2392 = vmatprep.subr.mxu0 %v446
  %2393 = vmatpush1.msra.mxu0 %v445
  %2394 = vmatprep.subr.mxu0 0.0
  %2395 = vmatpush1.msra.mxu0 0.0
  %2396 = vmatprep.subr.mxu0 0.0
  %2397 = vmatpush1.msra.mxu0 0.0
  %2398 = vmatprep.subr.mxu0 0.0
  %2399 = vmatpush1.msra.mxu0 0.0
  %2400 = vmatprep.subr.mxu0 0.0
  %2401 = vmatpush1.msra.mxu0 0.0
  %2402 = vmatprep.subr.mxu0 0.0
  %2403 = vmatpush1.msra.mxu0 0.0
  %2404 = vmatprep.subr.mxu0 0.0
  %2405 = vmatpush1.msra.mxu0 0.0
  %2406 = vmatprep.subr.mxu0 0.0
  %2407 = vmatpush1.msra.mxu0 0.0
  %2408 = vmatprep.subr.mxu0 0.0
  %2409 = vmatpush1.msra.mxu0 0.0
  %2410 = vmatprep.subr.mxu0 0.0
  %2411 = vmatpush1.msra.mxu0 0.0
  %2412 = vmatprep.subr.mxu0 0.0
  %2413 = vmatpush1.msra.mxu0 0.0
  %2414 = vmatprep.subr.mxu0 0.0
  %2415 = vmatpush1.msra.mxu0 0.0
  %2416 = vmatprep.subr.mxu0 0.0
  %2417 = vmatpush1.msra.mxu0 0.0
  %2418 = vmatprep.subr.mxu0 0.0
  %2419 = vmatpush1.msra.mxu0 0.0
  %2420 = vmatprep.subr.mxu0 0.0
  %2421 = vmatpush1.msra.mxu0 0.0
  %2422 = vmatprep.subr.mxu0 0.0
  %2423 = vmatpush1.msra.mxu0 0.0
  %2424 = vmatprep.subr.mxu0 0.0
  %2425 = vmatpush1.msra.mxu0 0.0
  %2426 = vmatprep.mubr.f32.mxu0 0.0
  %2427 = vmatmul.mubr.f32.gmra.mrb[0].mxu0 %v2197
  %v2428 = vpop.f32.mrb[0].mxu0
  %v2429 = vadd.f32 0.0, %v2428
  %v2430 = vpop.f32.mrb[0].mxu0
  %v2431 = vadd.f32 0.0, %v2430
  %2432 = vdwg.mxu0
  %v2433 = vadd.f32 %v2287, %v2358
  %v2434 = vadd.f32 %v2288, %v2360
  %v2435 = vadd.f32 %v2289, %v2429
  %v2436 = vadd.f32 %v2290, %v2431
  %v2437 = vsub.f32 0.0, %v2433
  %v2438 = vmul.f32 %v2437, 1.442695
  %v2439 = vpow.pop %v2438
  %v2440 = vadd.f32 %v2439, 1.0
  %v2441 = vrcp.pop %v2440
  %v2442 = vmul.f32 1.0, %v2441
  %v2443 = vsub.f32 0.0, %v2434
  %v2444 = vmul.f32 %v2443, 1.442695
  %v2445 = vpow.pop %v2444
  %v2446 = vadd.f32 %v2445, 1.0
  %v2447 = vrcp.pop %v2446
  %v2448 = vmul.f32 1.0, %v2447
  %v2449 = vtanh.pop %v2435
  %v2450 = vsub.f32 0.0, %v2436
  %v2451 = vmul.f32 %v2450, 1.442695
  %v2452 = vpow.pop %v2451
  %v2453 = vadd.f32 %v2452, 1.0
  %v2454 = vrcp.pop %v2453
  %v2455 = vmul.f32 1.0, %v2454
  %v2456 = vmul.f32 %v2448, %v2195
  %v2457 = vmul.f32 %v2442, %v2449
  %v2458 = vadd.f32 %v2456, %v2457
  %v2459 = vtanh.pop %v2458
  %v2460 = vmul.f32 %v2455, %v2459
  %s2461 = scalar_lea.vmem %s4, 896
  %v2462 = vld [vmem:[%s2461] sm:$0xff]
  %v2463 = vld [vmem:[%s2461 + $0x8] sm:$0xff]
  %v2464 = vld [vmem:[%s2461 + $0x10] sm:$0xff]
  %v2465 = vld [vmem:[%s2461 + $0x18] sm:$0xff]
  %v2466 = vld [vmem:[%s2461 + $0x20] sm:$0xff]
  %v2467 = vld [vmem:[%s2461 + $0x28] sm:$0xff]
  %v2468 = vld [vmem:[%s2461 + $0x30] sm:$0xff]
  %v2469 = vld [vmem:[%s2461 + $0x38] sm:$0xff]
  %v2470 = vld [vmem:[%s2461 + $0x40] sm:$0xff]
  %v2471 = vld [vmem:[%s2461 + $0x48] sm:$0xff]
  %v2472 = vld [vmem:[%s2461 + $0x50] sm:$0xff]
  %v2473 = vld [vmem:[%s2461 + $0x58] sm:$0xff]
  %v2474 = vld [vmem:[%s2461 + $0x60] sm:$0xff]
  %v2475 = vld [vmem:[%s2461 + $0x68] sm:$0xff]
  %v2476 = vld [vmem:[%s2461 + $0x70] sm:$0xff]
  %v2477 = vld [vmem:[%s2461 + $0x78] sm:$0xff]
  %2478 = vmatprep.subr.mxu0 0.0
  %2479 = vmatpush1.msra.mxu0 %v2462
  %2480 = vmatprep.subr.mxu0 0.0
  %2481 = vmatpush1.msra.mxu0 %v2463
  %2482 = vmatprep.subr.mxu0 0.0
  %2483 = vmatpush1.msra.mxu0 %v2464
  %2484 = vmatprep.subr.mxu0 0.0
  %2485 = vmatpush1.msra.mxu0 %v2465
  %2486 = vmatprep.subr.mxu0 0.0
  %2487 = vmatpush1.msra.mxu0 %v2466
  %2488 = vmatprep.subr.mxu0 0.0
  %2489 = vmatpush1.msra.mxu0 %v2467
  %2490 = vmatprep.subr.mxu0 0.0
  %2491 = vmatpush1.msra.mxu0 %v2468
  %2492 = vmatprep.subr.mxu0 0.0
  %2493 = vmatpush1.msra.mxu0 %v2469
  %2494 = vmatprep.subr.mxu0 0.0
  %2495 = vmatpush1.msra.mxu0 %v2470
  %2496 = vmatprep.subr.mxu0 0.0
  %2497 = vmatpush1.msra.mxu0 %v2471
  %2498 = vmatprep.subr.mxu0 0.0
  %2499 = vmatpush1.msra.mxu0 %v2472
  %2500 = vmatprep.subr.mxu0 0.0
  %2501 = vmatpush1.msra.mxu0 %v2473
  %2502 = vmatprep.subr.mxu0 0.0
  %2503 = vmatpush1.msra.mxu0 %v2474
  %2504 = vmatprep.subr.mxu0 0.0
  %2505 = vmatpush1.msra.mxu0 %v2475
  %2506 = vmatprep.subr.mxu0 0.0
  %2507 = vmatpush1.msra.mxu0 %v2476
  %2508 = vmatprep.subr.mxu0 0.0
  %2509 = vmatpush1.msra.mxu0 %v2477
  %2510 = vmatprep.subr.mxu0 0.0
  %2511 = vmatpush1.msra.mxu0 0.0
  %2512 = vmatprep.subr.mxu0 0.0
  %2513 = vmatpush1.msra.mxu0 0.0
  %2514 = vmatprep.subr.mxu0 0.0
  %2515 = vmatpush1.msra.mxu0 0.0
  %2516 = vmatprep.subr.mxu0 0.0
  %2517 = vmatpush1.msra.mxu0 0.0
  %2518 = vmatprep.subr.mxu0 0.0
  %2519 = vmatpush1.msra.mxu0 0.0
  %2520 = vmatprep.subr.mxu0 0.0
  %2521 = vmatpush1.msra.mxu0 0.0
  %2522 = vmatprep.subr.mxu0 0.0
  %2523 = vmatpush1.msra.mxu0 0.0
  %2524 = vmatprep.subr.mxu0 0.0
  %2525 = vmatpush1.msra.mxu0 0.0
  %2526 = vmatprep.subr.mxu0 0.0
  %2527 = vmatpush1.msra.mxu0 0.0
  %2528 = vmatprep.subr.mxu0 0.0
  %2529 = vmatpush1.msra.mxu0 0.0
  %2530 = vmatprep.subr.mxu0 0.0
  %2531 = vmatpush1.msra.mxu0 0.0
  %2532 = vmatprep.subr.mxu0 0.0
  %2533 = vmatpush1.msra.mxu0 0.0
  %2534 = vmatprep.subr.mxu0 0.0
  %2535 = vmatpush1.msra.mxu0 0.0
  %2536 = vmatprep.subr.mxu0 0.0
  %2537 = vmatpush1.msra.mxu0 0.0
  %2538 = vmatprep.subr.mxu0 0.0
  %2539 = vmatpush1.msra.mxu0 0.0
  %2540 = vmatprep.subr.mxu0 0.0
  %2541 = vmatpush1.msra.mxu0 0.0
  %2542 = vmatprep.mubr.f32.mxu0 0.0
  %2543 = vmatmul.mubr.f32.gmra.mrb[0].mxu0 %v2460
  %v2544 = vpop.f32.mrb[0].mxu0
  %v2545 = vadd.f32 0.0, %v2544
  %v2546 = vpop.f32.mrb[0].mxu0
  %2547 = vdwg.mxu0
  %v2548 = vadd.f32 %v2285, %v2545
  %v2549 = vld [vmem:[#allocation3] sm:$0x1]
  %v2551 = vlaneseq
  %v2552 = vshrl.u32 %v2551, 7
  %v2553 = vsub.s32 0, %v2552
  %v2554 = vrot.slane %v2549, %v2553
  %v2556 = vadd.f32 %v2548, %v2554
  %vm2557 = vcmask 7168
  %2558 = vst.msk [vmem:[%s8] sm:$0xff] %vm2557, %v2556
  // Predicated region
  $region34: #{lstm_forward.1} parent=0 // pred_check
    _
  $region35: #{lstm_forward.1} parent=0 // pred_check_branch
    %2560 = sbr.rel (0) target = $region37
  $region36: #{lstm_forward.1} parent=0 // pred_region
    _
  $region37: #{lstm_forward.1} parent=0 // pred_fallthru
    _
  // Predicated region
  $region38: #{lstm_forward.1} parent=0 // pred_check
    _
  $region39: #{lstm_forward.1} parent=0 // pred_check_branch
    %2562 = sbr.rel (0) target = $region41
  $region40: #{lstm_forward.1} parent=0 // pred_region
    _
  $region41: #{lstm_forward.1} parent=0 // pred_fallthru
    _

</llo_original>
